<compile_context>
chip_gen: v5e
topology: v5e:2x2
jax: 0.10.0
libtpu: 0.0.40
codegen_flags: <defaults>
</compile_context>

<pallas_src>
import functools

import jax
import jax.numpy as jnp
from jax.experimental import pallas as pl
from jax.experimental.pallas import tpu as pltpu


# ---------------------------------------------------------------------------
# Generation-aware VMEM budget (v7x: 64 MiB physical -> ~48 MiB usable;
# v5e/v6e: 128 MiB -> up to 96 MiB).
# ---------------------------------------------------------------------------
@functools.lru_cache(maxsize=None)
def _vmem_limit_bytes():
    cap = 128 * 1024 * 1024
    try:
        cap = int(getattr(pltpu.get_tpu_info(), "vmem_capacity_bytes", cap))
    except Exception:
        pass
    return int(min(96 * 2**20, max(32 * 2**20, int(cap * 0.75))))


def _largest_divisor(dim, pref, multiple=1):
    """Largest divisor of `dim` that is <= pref and a multiple of `multiple`.
    Falls back to the full dim only when no such divisor exists (full-extent
    blocks are always layout-legal)."""
    pref = max(1, min(int(pref), dim))
    for c in range(pref, 0, -1):
        if dim % c == 0 and c % multiple == 0:
            return c
    return dim


# ---------------------------------------------------------------------------
# Fused highway kernel:  relu(relu(x @ W1 + b1) @ W2 + b2)
# Both weights live resident in VMEM; only M tiles stream from HBM.
# ---------------------------------------------------------------------------
def highway_kernel(x_ref, w1_ref, b1_ref, w2_ref, b2_ref, o_ref):
    x = x_ref[...].astype(jnp.bfloat16)
    h = jnp.dot(x, w1_ref[...], preferred_element_type=jnp.float32) + b1_ref[...]
    h = jnp.maximum(h, 0.0).astype(jnp.bfloat16)
    h = jnp.dot(h, w2_ref[...], preferred_element_type=jnp.float32) + b2_ref[...]
    o_ref[...] = jnp.maximum(h, 0.0).astype(o_ref.dtype)


def highway(x2d, w1, b1, w2, b2, *, out_dtype=jnp.bfloat16, tm_pref=512):
    M, Din = x2d.shape
    H = w1.shape[1]
    vlim = _vmem_limit_bytes()
    # double-buffered f32 input rows + bf16 output rows + resident weights
    weight_bytes = (Din * H + H * H) * 2 + 2 * H * 4
    per_row = 2 * Din * 4 + 2 * H * 2 + 3 * H * 4
    cap = max(8, (vlim // 2 - weight_bytes) // max(per_row, 1))
    tm = _largest_divisor(M, min(tm_pref, cap), multiple=8)

    return pl.pallas_call(
        highway_kernel,
        out_shape=jax.ShapeDtypeStruct((M, H), out_dtype),
        grid_spec=pltpu.PrefetchScalarGridSpec(
            num_scalar_prefetch=0,
            grid=(M // tm,),
            in_specs=[
                pl.BlockSpec((tm, Din), lambda i: (i, 0)),
                pl.BlockSpec((Din, H), lambda i: (0, 0)),
                pl.BlockSpec((1, H), lambda i: (0, 0)),
                pl.BlockSpec((H, H), lambda i: (0, 0)),
                pl.BlockSpec((1, H), lambda i: (0, 0)),
            ],
            out_specs=pl.BlockSpec((tm, H), lambda i: (i, 0)),
        ),
        compiler_params=pltpu.CompilerParams(
            dimension_semantics=("parallel",),
            vmem_limit_bytes=vlim,
        ),
    )(x2d, w1, b1, w2, b2)


# ---------------------------------------------------------------------------
# Fused bidirectional GRU: input projection + fwd/bwd recurrences in ONE
# kernel.  Grid iterates time chunks; fwd consumes chunk t, bwd consumes
# chunk nT-1-t (index_map reversal), both chains advance interleaved with
# static per-step indices.
#
#   x parts : tuple of (T, B, Dg) bf16 arrays (1 part for layer 0, 2 parts
#             -- prev fwd / prev bwd outputs -- for deeper layers)
#   wih     : (2, sum Dg, 3H) bf16      bih : (2, 1, 3H) f32
#   whh     : (2, H, 3H)      bf16      bhh : (2, 1, 3H) f32
#   outputs : out_f, out_b each (T, B, H) in out_dtype
# ---------------------------------------------------------------------------
def bigru_kernel(*refs, n_parts, part_dims, chunk, batch, hidden):
    H, B = hidden, batch
    xf = refs[:n_parts]
    xb = refs[n_parts:2 * n_parts]
    wih_ref, bih_ref, whh_ref, bhh_ref = refs[2 * n_parts:2 * n_parts + 4]
    of_ref, ob_ref, hf_scr, hb_scr = refs[2 * n_parts + 4:]

    @pl.when(pl.program_id(0) == 0)
    def _():
        hf_scr[...] = jnp.zeros_like(hf_scr)
        hb_scr[...] = jnp.zeros_like(hb_scr)

    wih = wih_ref[...]      # (2, Dtot, 3H) bf16
    bih = bih_ref[...]      # (2, 1, 3H)    f32
    whh = whh_ref[...]      # (2, H, 3H)    bf16
    bhh = bhh_ref[...]      # (2, 1, 3H)    f32

    def in_proj(parts, d):
        # xp[t*B+b, :] = sum_g x_g[t, b] @ Wih_g^T + bih   (f32 accumulate)
        xp = None
        off = 0
        for g in range(n_parts):
            xg = parts[g][...].reshape(chunk * B, part_dims[g])     # bf16
            wg = wih[d, off:off + part_dims[g], :]                  # (Dg, 3H)
            pg = jnp.dot(xg, wg, preferred_element_type=jnp.float32)
            xp = pg if xp is None else xp + pg
            off += part_dims[g]
        return xp + bih[d]                                          # (chunk*B, 3H)

    xp_f = in_proj(xf, 0)
    xp_b = in_proj(xb, 1)

    whh_f, whh_b = whh[0], whh[1]
    bhh_f, bhh_b = bhh[0], bhh[1]

    def gru_step(xp_t, h, whh_d, bhh_d):
        # bf16 MXU matmul on the critical path, f32 state / gate math.
        gh = jnp.dot(h.astype(jnp.bfloat16), whh_d,
                     preferred_element_type=jnp.float32) + bhh_d
        r = jax.nn.sigmoid(xp_t[:, :H] + gh[:, :H])
        z = jax.nn.sigmoid(xp_t[:, H:2 * H] + gh[:, H:2 * H])
        n = jnp.tanh(xp_t[:, 2 * H:] + r * gh[:, 2 * H:])
        return (1.0 - z) * n + z * h

    hf = hf_scr[...]
    hb = hb_scr[...]
    for i in range(chunk):                 # static unroll, fwd/bwd interleaved
        j = chunk - 1 - i
        hf = gru_step(xp_f[i * B:(i + 1) * B], hf, whh_f, bhh_f)
        hb = gru_step(xp_b[j * B:(j + 1) * B], hb, whh_b, bhh_b)
        of_ref[i] = hf.astype(of_ref.dtype)
        ob_ref[j] = hb.astype(ob_ref.dtype)
    hf_scr[...] = hf
    hb_scr[...] = hb


def bigru(x_parts, wih, bih, whh, bhh, hidden, *, out_dtype, chunk_pref=16):
    T, B = x_parts[0].shape[:2]
    part_dims = tuple(int(p.shape[-1]) for p in x_parts)
    Dtot = sum(part_dims)
    H = hidden

    vlim = _vmem_limit_bytes()
    weight_bytes = 2 * (Dtot * 3 * H + H * 3 * H) * 2 + 4 * 3 * H * 4
    per_step = (4 * B * Dtot * 2      # fwd+bwd input blocks, double-buffered
                + 4 * B * H * 4       # fwd+bwd output blocks, double-buffered
                + 2 * B * 3 * H * 4)  # xp_f / xp_b temporaries
    cap = max(1, (vlim // 2 - weight_bytes) // max(per_step, 1))
    chunk = _largest_divisor(T, min(chunk_pref, cap))
    nT = T // chunk

    fwd_map = lambda t: (t, 0, 0)
    bwd_map = lambda t: (nT - 1 - t, 0, 0)
    w_map = lambda t: (0, 0, 0)

    in_specs = (
        [pl.BlockSpec((chunk, B, d), fwd_map) for d in part_dims]
        + [pl.BlockSpec((chunk, B, d), bwd_map) for d in part_dims]
        + [pl.BlockSpec(wih.shape, w_map),
           pl.BlockSpec(bih.shape, w_map),
           pl.BlockSpec(whh.shape, w_map),
           pl.BlockSpec(bhh.shape, w_map)])

    kernel = functools.partial(bigru_kernel, n_parts=len(x_parts),
                               part_dims=part_dims, chunk=chunk,
                               batch=B, hidden=H)

    return pl.pallas_call(
        kernel,
        out_shape=(jax.ShapeDtypeStruct((T, B, H), out_dtype),
                   jax.ShapeDtypeStruct((T, B, H), out_dtype)),
        grid_spec=pltpu.PrefetchScalarGridSpec(
            num_scalar_prefetch=0,
            grid=(nT,),
            in_specs=in_specs,
            out_specs=[pl.BlockSpec((chunk, B, H), fwd_map),
                       pl.BlockSpec((chunk, B, H), bwd_map)],
            scratch_shapes=[pltpu.VMEM((B, H), jnp.float32),
                            pltpu.VMEM((B, H), jnp.float32)],
        ),
        compiler_params=pltpu.CompilerParams(
            dimension_semantics=("arbitrary",),   # sequential recurrence
            vmem_limit_bytes=vlim,
        ),
    )(*x_parts, *x_parts, wih, bih, whh, bhh)


# ---------------------------------------------------------------------------
# Parameter preparation (ONCE, outside the forward): pre-transposed weights,
# per-direction stacking, bf16 casts for all MXU operands.
# ---------------------------------------------------------------------------
def prepare_params(params, input_dim, hidden_dim, num_layers=2):
    H = hidden_dim
    bf16 = jnp.bfloat16
    prep = {
        "hw_w1": params["hw_w1"].T.astype(bf16),          # (Din, H)
        "hw_b1": params["hw_b1"].reshape(1, H),
        "hw_w2": params["hw_w2"].T.astype(bf16),          # (H, H)
        "hw_b2": params["hw_b2"].reshape(1, H),
    }
    for layer in range(num_layers):
        wih = jnp.stack([params[f"l{layer}_d{d}_wih"].T for d in range(2)])
        bih = jnp.stack([params[f"l{layer}_d{d}_bih"].reshape(1, 3 * H)
                         for d in range(2)])
        whh = jnp.stack([params[f"l{layer}_d{d}_whh"].T for d in range(2)])
        bhh = jnp.stack([params[f"l{layer}_d{d}_bhh"].reshape(1, 3 * H)
                         for d in range(2)])
        prep[f"l{layer}_wih"] = wih.astype(bf16)           # (2, in_dim, 3H)
        prep[f"l{layer}_bih"] = bih                        # (2, 1, 3H)
        prep[f"l{layer}_whh"] = whh.astype(bf16)           # (2, H, 3H)
        prep[f"l{layer}_bhh"] = bhh                        # (2, 1, 3H)
    return prep


# ---------------------------------------------------------------------------
# Encoder forward (Pallas)
# ---------------------------------------------------------------------------
def encoder_forward(x, prep, hidden_dim, num_layers=2):
    T, B, Din = x.shape
    H = hidden_dim
    M = T * B

    hw = highway(x.reshape(M, Din), prep["hw_w1"], prep["hw_b1"],
                 prep["hw_w2"], prep["hw_b2"], out_dtype=jnp.bfloat16)
    parts = (hw.reshape(T, B, H),)

    hiddens = []
    out_f = out_b = None
    for layer in range(num_layers):
        last = layer == num_layers - 1
        out_f, out_b = bigru(parts, prep[f"l{layer}_wih"],
                             prep[f"l{layer}_bih"], prep[f"l{layer}_whh"],
                             prep[f"l{layer}_bhh"], H,
                             out_dtype=jnp.float32 if last else jnp.bfloat16)
        hiddens.append(out_f[T - 1].astype(jnp.float32))   # forward last h
        hiddens.append(out_b[0].astype(jnp.float32))       # backward last h
        parts = (out_f, out_b)   # fed as two parts -> no concat copy
        # TODO(synk): inter-layer dropout(0.2) in training mode not implemented

    output = jnp.concatenate([out_f, out_b], axis=-1)       # (T, B, 2H)
    hidden = jnp.stack(hiddens, axis=0)                     # (2*L, B, H)
    # TODO(synk): output dropout(0.1) in training mode not implemented
    return output, hidden


# ---------------------------------------------------------------------------
# Pure-JAX f32 reference (correctness check)
# ---------------------------------------------------------------------------
def gru_dir_ref(x, Wih, Whh, bih, bhh, reverse):
    H = Whh.shape[1]

    def step(h, xt):
        gi = xt @ Wih.T + bih
        gh = h @ Whh.T + bhh
        r = jax.nn.sigmoid(gi[:, :H] + gh[:, :H])
        z = jax.nn.sigmoid(gi[:, H:2 * H] + gh[:, H:2 * H])
        n = jnp.tanh(gi[:, 2 * H:] + r * gh[:, 2 * H:])
        hn = (1.0 - z) * n + z * h
        return hn, hn

    xs = x[::-1] if reverse else x
    h0 = jnp.zeros((x.shape[1], H), jnp.float32)
    hT, ys = jax.lax.scan(step, h0, xs)
    if reverse:
        ys = ys[::-1]
    return ys, hT


def encoder_ref(x, params, hidden_dim, num_layers=2):
    h = jnp.maximum(x @ params["hw_w1"].T + params["hw_b1"], 0.0)
    h = jnp.maximum(h @ params["hw_w2"].T + params["hw_b2"], 0.0)
    layer_in = h
    hiddens = []
    for layer in range(num_layers):
        outs = []
        for d in range(2):
            key = f"l{layer}_d{d}"
            o, hl = gru_dir_ref(layer_in, params[key + "_wih"],
                                params[key + "_whh"], params[key + "_bih"],
                                params[key + "_bhh"], reverse=(d == 1))
            outs.append(o)
            hiddens.append(hl)
        layer_in = jnp.concatenate(outs, axis=-1)
    return layer_in, jnp.stack(hiddens, axis=0)


# ---------------------------------------------------------------------------
# Deterministic parameter init (shapes from Encoder.__init__)
# ---------------------------------------------------------------------------
def init_params(key, input_dim, hidden_dim, num_layers=2):
    H = hidden_dim
    params = {}

    def uni(k, shape, fan_in):
        bound = fan_in ** -0.5
        return jax.random.uniform(k, shape, jnp.float32, -bound, bound)

    keys = jax.random.split(key, 4 + num_layers * 2 * 4)
    ki = iter(keys)
    params["hw_w1"] = uni(next(ki), (H, input_dim), input_dim)
    params["hw_b1"] = uni(next(ki), (H,), input_dim)
    params["hw_w2"] = uni(next(ki), (H, H), H)
    params["hw_b2"] = uni(next(ki), (H,), H)

    for layer in range(num_layers):
        in_dim = H if layer == 0 else 2 * H
        for d in range(2):
            key_p = f"l{layer}_d{d}"
            params[key_p + "_wih"] = uni(next(ki), (3 * H, in_dim), H)
            params[key_p + "_whh"] = uni(next(ki), (3 * H, H), H)
            params[key_p + "_bih"] = uni(next(ki), (3 * H,), H)
            params[key_p + "_bhh"] = uni(next(ki), (3 * H,), H)
    return params


# ---------------------------------------------------------------------------
if __name__ == "__main__":
    T, B, INPUT_DIM, HIDDEN_DIM, NUM_LAYERS = 8, 2, 16, 32, 2

    root = jax.random.PRNGKey(0)
    k_x, k_p = jax.random.split(root)
    x = jax.random.normal(k_x, (T, B, INPUT_DIM), jnp.float32)
    params = init_params(k_p, INPUT_DIM, HIDDEN_DIM, NUM_LAYERS)
    prep = prepare_params(params, INPUT_DIM, HIDDEN_DIM, NUM_LAYERS)

    fwd = jax.jit(lambda xx, pp: encoder_forward(xx, pp, HIDDEN_DIM,
                                                 NUM_LAYERS))
    output, hidden = fwd(x, prep)
    output = jax.block_until_ready(output)
    hidden = jax.block_until_ready(hidden)

    assert output.shape == (T, B, 2 * HIDDEN_DIM), output.shape
    assert hidden.shape == (2 * NUM_LAYERS, B, HIDDEN_DIM), hidden.shape

    # f32 reference (Pallas path runs highway / GRU matmuls in bf16 on the
    # MXU with f32 accumulation, so tolerance is loosened accordingly).
    with jax.default_matmul_precision("highest"):
        out_ref, hid_ref = encoder_ref(x, params, HIDDEN_DIM, NUM_LAYERS)
    assert jnp.allclose(output, out_ref, atol=5e-2, rtol=5e-2)
    assert jnp.allclose(hidden, hid_ref, atol=5e-2, rtol=5e-2)

    print("KERNEL_OK")
</pallas_src>

<mosaic_0001>
module attributes {stable_mosaic.version = 11 : i64} {
  func.func @highway_kernel(%arg0: i32, %arg1: memref<16x16xf32, #tpu.memory_space<vmem>>, %arg2: memref<16x32xbf16, #tpu.memory_space<vmem>>, %arg3: memref<1x32xf32, #tpu.memory_space<vmem>>, %arg4: memref<32x32xbf16, #tpu.memory_space<vmem>>, %arg5: memref<1x32xf32, #tpu.memory_space<vmem>>, %arg6: memref<16x32xbf16, #tpu.memory_space<vmem>>) attributes {dimension_semantics = [#tpu.dimension_semantics<parallel>], iteration_bounds = array<i64: 1>, scalar_prefetch = 0 : i64, scratch_operands = 0 : i64, tpu.core_type = #tpu.core_type<tc>, window_params = [{transform_indices = @transform_0, window_bounds = array<i64: 16, 16>}, {pipeline_mode = #tpu.pipeline_mode<synchronous>, transform_indices = @transform_1, window_bounds = array<i64: 16, 32>}, {pipeline_mode = #tpu.pipeline_mode<synchronous>, transform_indices = @transform_2, window_bounds = array<i64: 1, 32>}, {pipeline_mode = #tpu.pipeline_mode<synchronous>, transform_indices = @transform_3, window_bounds = array<i64: 32, 32>}, {pipeline_mode = #tpu.pipeline_mode<synchronous>, transform_indices = @transform_4, window_bounds = array<i64: 1, 32>}, {transform_indices = @transform_5, window_bounds = array<i64: 16, 32>}]} {
    %c0 = arith.constant 0 : index
    %c0_0 = arith.constant 0 : index
    %0 = vector.load %arg1[%c0, %c0_0] : memref<16x16xf32, #tpu.memory_space<vmem>>, vector<16x16xf32>
    %1 = arith.truncf %0 : vector<16x16xf32> to vector<16x16xbf16>
    %c0_1 = arith.constant 0 : index
    %c0_2 = arith.constant 0 : index
    %2 = vector.load %arg2[%c0_1, %c0_2] : memref<16x32xbf16, #tpu.memory_space<vmem>>, vector<16x32xbf16>
    %cst = arith.constant dense<0.000000e+00> : vector<16x32xf32>
    %3 = tpu.matmul %1, %2, %cst {dimension_numbers = #tpu.dot_dimension_numbers<[1], [0], [0], [1], [0, 0, 1, 1], [], []>} : vector<16x16xbf16>, vector<16x32xbf16>, vector<16x32xf32> -> vector<16x32xf32>
    %c0_3 = arith.constant 0 : index
    %c0_4 = arith.constant 0 : index
    %4 = vector.load %arg3[%c0_3, %c0_4] : memref<1x32xf32, #tpu.memory_space<vmem>>, vector<1x32xf32>
    %5 = vector.broadcast %4 : vector<1x32xf32> to vector<16x32xf32>
    %6 = arith.addf %3, %5 : vector<16x32xf32>
    %cst_5 = arith.constant 0.000000e+00 : f32
    %7 = vector.broadcast %cst_5 : f32 to vector<16x32xf32>
    %8 = arith.maximumf %6, %7 : vector<16x32xf32>
    %9 = arith.truncf %8 : vector<16x32xf32> to vector<16x32xbf16>
    %c0_6 = arith.constant 0 : index
    %c0_7 = arith.constant 0 : index
    %10 = vector.load %arg4[%c0_6, %c0_7] : memref<32x32xbf16, #tpu.memory_space<vmem>>, vector<32x32xbf16>
    %cst_8 = arith.constant dense<0.000000e+00> : vector<16x32xf32>
    %11 = tpu.matmul %9, %10, %cst_8 {dimension_numbers = #tpu.dot_dimension_numbers<[1], [0], [0], [1], [0, 0, 1, 1], [], []>} : vector<16x32xbf16>, vector<32x32xbf16>, vector<16x32xf32> -> vector<16x32xf32>
    %c0_9 = arith.constant 0 : index
    %c0_10 = arith.constant 0 : index
    %12 = vector.load %arg5[%c0_9, %c0_10] : memref<1x32xf32, #tpu.memory_space<vmem>>, vector<1x32xf32>
    %13 = vector.broadcast %12 : vector<1x32xf32> to vector<16x32xf32>
    %14 = arith.addf %11, %13 : vector<16x32xf32>
    %cst_11 = arith.constant 0.000000e+00 : f32
    %15 = vector.broadcast %cst_11 : f32 to vector<16x32xf32>
    %16 = arith.maximumf %14, %15 : vector<16x32xf32>
    %17 = arith.truncf %16 : vector<16x32xf32> to vector<16x32xbf16>
    %c0_12 = arith.constant 0 : index
    %c0_13 = arith.constant 0 : index
    %18 = vector.load %arg6[%c0_12, %c0_13] : memref<16x32xbf16, #tpu.memory_space<vmem>>, vector<16x32xbf16>
    tpu.vector_store %arg6[%c0_12, %c0_13], %17 {strides = array<i32>} : memref<16x32xbf16, #tpu.memory_space<vmem>>, vector<16x32xbf16>,
    return
  }
  func.func @transform_0(%arg0: i32) -> (i32, i32) {
    %c0_i32 = arith.constant 0 : i32
    %c0_i32_0 = arith.constant 0 : i32
    return %arg0, %c0_i32 : i32, i32
  }
  func.func @transform_1(%arg0: i32) -> (i32, i32) {
    %c0_i32 = arith.constant 0 : i32
    %c0_i32_0 = arith.constant 0 : i32
    %c0_i32_1 = arith.constant 0 : i32
    return %c0_i32, %c0_i32_0 : i32, i32
  }
  func.func @transform_2(%arg0: i32) -> (i32, i32) {
    %c0_i32 = arith.constant 0 : i32
    %c0_i32_0 = arith.constant 0 : i32
    %c0_i32_1 = arith.constant 0 : i32
    return %c0_i32, %c0_i32_0 : i32, i32
  }
  func.func @transform_3(%arg0: i32) -> (i32, i32) {
    %c0_i32 = arith.constant 0 : i32
    %c0_i32_0 = arith.constant 0 : i32
    %c0_i32_1 = arith.constant 0 : i32
    return %c0_i32, %c0_i32_0 : i32, i32
  }
  func.func @transform_4(%arg0: i32) -> (i32, i32) {
    %c0_i32 = arith.constant 0 : i32
    %c0_i32_0 = arith.constant 0 : i32
    %c0_i32_1 = arith.constant 0 : i32
    return %c0_i32, %c0_i32_0 : i32, i32
  }
  func.func @transform_5(%arg0: i32) -> (i32, i32) {
    %c0_i32 = arith.constant 0 : i32
    %c0_i32_0 = arith.constant 0 : i32
    return %arg0, %c0_i32 : i32, i32
  }
}

module attributes {stable_mosaic.version = 11 : i64} {
  func.func @bigru_kernel(%arg0: i32, %arg1: memref<8x2x32xbf16, #tpu.memory_space<vmem>>, %arg2: memref<8x2x32xbf16, #tpu.memory_space<vmem>>, %arg3: memref<2x32x96xbf16, #tpu.memory_space<vmem>>, %arg4: memref<2x1x96xf32, #tpu.memory_space<vmem>>, %arg5: memref<2x32x96xbf16, #tpu.memory_space<vmem>>, %arg6: memref<2x1x96xf32, #tpu.memory_space<vmem>>, %arg7: memref<8x2x32xbf16, #tpu.memory_space<vmem>>, %arg8: memref<8x2x32xbf16, #tpu.memory_space<vmem>>, %arg9: memref<2x32xf32, #tpu.memory_space<vmem>>, %arg10: memref<2x32xf32, #tpu.memory_space<vmem>>) attributes {dimension_semantics = [#tpu.dimension_semantics<arbitrary>], iteration_bounds = array<i64: 1>, scalar_prefetch = 0 : i64, scratch_operands = 2 : i64, tpu.core_type = #tpu.core_type<tc>, window_params = [{transform_indices = @transform_0, window_bounds = array<i64: 8, 2, 32>}, {transform_indices = @transform_1, window_bounds = array<i64: 8, 2, 32>}, {pipeline_mode = #tpu.pipeline_mode<synchronous>, transform_indices = @transform_2, window_bounds = array<i64: 2, 32, 96>}, {pipeline_mode = #tpu.pipeline_mode<synchronous>, transform_indices = @transform_3, window_bounds = array<i64: 2, 1, 96>}, {pipeline_mode = #tpu.pipeline_mode<synchronous>, transform_indices = @transform_4, window_bounds = array<i64: 2, 32, 96>}, {pipeline_mode = #tpu.pipeline_mode<synchronous>, transform_indices = @transform_5, window_bounds = array<i64: 2, 1, 96>}, {transform_indices = @transform_6, window_bounds = array<i64: 8, 2, 32>}, {transform_indices = @transform_7, window_bounds = array<i64: 8, 2, 32>}]} {
    %c0_i32 = arith.constant 0 : i32
    %0 = arith.cmpi eq, %arg0, %c0_i32 : i32
    %1 = arith.extui %0 : i1 to i32
    %c0_i32_0 = arith.constant 0 : i32
    %2 = arith.cmpi ne, %1, %c0_i32_0 : i32
    scf.if %2 {
      %cst_132 = arith.constant 0.000000e+00 : f32
      %597 = vector.broadcast %cst_132 : f32 to vector<2x32xf32>
      %c0_133 = arith.constant 0 : index
      %c0_134 = arith.constant 0 : index
      %598 = vector.load %arg9[%c0_133, %c0_134] : memref<2x32xf32, #tpu.memory_space<vmem>>, vector<2x32xf32>
      tpu.vector_store %arg9[%c0_133, %c0_134], %597 {strides = array<i32>} : memref<2x32xf32, #tpu.memory_space<vmem>>, vector<2x32xf32>,
      %cst_135 = arith.constant 0.000000e+00 : f32
      %599 = vector.broadcast %cst_135 : f32 to vector<2x32xf32>
      %c0_136 = arith.constant 0 : index
      %c0_137 = arith.constant 0 : index
      %600 = vector.load %arg10[%c0_136, %c0_137] : memref<2x32xf32, #tpu.memory_space<vmem>>, vector<2x32xf32>
      tpu.vector_store %arg10[%c0_136, %c0_137], %599 {strides = array<i32>} : memref<2x32xf32, #tpu.memory_space<vmem>>, vector<2x32xf32>,
    } else {
    }
    %c0 = arith.constant 0 : index
    %c0_1 = arith.constant 0 : index
    %c0_2 = arith.constant 0 : index
    %3 = vector.load %arg3[%c0, %c0_1, %c0_2] : memref<2x32x96xbf16, #tpu.memory_space<vmem>>, vector<2x32x96xbf16>
    %c0_3 = arith.constant 0 : index
    %c0_4 = arith.constant 0 : index
    %c0_5 = arith.constant 0 : index
    %4 = vector.load %arg4[%c0_3, %c0_4, %c0_5] : memref<2x1x96xf32, #tpu.memory_space<vmem>>, vector<2x1x96xf32>
    %c0_6 = arith.constant 0 : index
    %c0_7 = arith.constant 0 : index
    %c0_8 = arith.constant 0 : index
    %5 = vector.load %arg5[%c0_6, %c0_7, %c0_8] : memref<2x32x96xbf16, #tpu.memory_space<vmem>>, vector<2x32x96xbf16>
    %c0_9 = arith.constant 0 : index
    %c0_10 = arith.constant 0 : index
    %c0_11 = arith.constant 0 : index
    %6 = vector.load %arg6[%c0_9, %c0_10, %c0_11] : memref<2x1x96xf32, #tpu.memory_space<vmem>>, vector<2x1x96xf32>
    %c0_12 = arith.constant 0 : index
    %c0_13 = arith.constant 0 : index
    %c0_14 = arith.constant 0 : index
    %7 = vector.load %arg1[%c0_12, %c0_13, %c0_14] : memref<8x2x32xbf16, #tpu.memory_space<vmem>>, vector<8x2x32xbf16>
    %8 = vector.shape_cast %7 : vector<8x2x32xbf16> to vector<16x32xbf16>
    %9 = vector.extract_strided_slice %3 {offsets = [0, 0, 0], sizes = [1, 32, 96], strides = [1, 1, 1]} : vector<2x32x96xbf16> to vector<1x32x96xbf16>
    %10 = vector.shape_cast %9 : vector<1x32x96xbf16> to vector<32x96xbf16>
    %cst = arith.constant dense<0.000000e+00> : vector<16x96xf32>
    %11 = tpu.matmul %8, %10, %cst {dimension_numbers = #tpu.dot_dimension_numbers<[1], [0], [0], [1], [0, 0, 1, 1], [], []>} : vector<16x32xbf16>, vector<32x96xbf16>, vector<16x96xf32> -> vector<16x96xf32>
    %12 = vector.extract_strided_slice %4 {offsets = [0, 0, 0], sizes = [1, 1, 96], strides = [1, 1, 1]} : vector<2x1x96xf32> to vector<1x1x96xf32>
    %13 = vector.shape_cast %12 : vector<1x1x96xf32> to vector<1x96xf32>
    %14 = vector.broadcast %13 : vector<1x96xf32> to vector<16x96xf32>
    %15 = arith.addf %11, %14 : vector<16x96xf32>
    %c0_15 = arith.constant 0 : index
    %c0_16 = arith.constant 0 : index
    %c0_17 = arith.constant 0 : index
    %16 = vector.load %arg2[%c0_15, %c0_16, %c0_17] : memref<8x2x32xbf16, #tpu.memory_space<vmem>>, vector<8x2x32xbf16>
    %17 = vector.shape_cast %16 : vector<8x2x32xbf16> to vector<16x32xbf16>
    %18 = vector.extract_strided_slice %3 {offsets = [1, 0, 0], sizes = [1, 32, 96], strides = [1, 1, 1]} : vector<2x32x96xbf16> to vector<1x32x96xbf16>
    %19 = vector.shape_cast %18 : vector<1x32x96xbf16> to vector<32x96xbf16>
    %cst_18 = arith.constant dense<0.000000e+00> : vector<16x96xf32>
    %20 = tpu.matmul %17, %19, %cst_18 {dimension_numbers = #tpu.dot_dimension_numbers<[1], [0], [0], [1], [0, 0, 1, 1], [], []>} : vector<16x32xbf16>, vector<32x96xbf16>, vector<16x96xf32> -> vector<16x96xf32>
    %21 = vector.extract_strided_slice %4 {offsets = [1, 0, 0], sizes = [1, 1, 96], strides = [1, 1, 1]} : vector<2x1x96xf32> to vector<1x1x96xf32>
    %22 = vector.shape_cast %21 : vector<1x1x96xf32> to vector<1x96xf32>
    %23 = vector.broadcast %22 : vector<1x96xf32> to vector<16x96xf32>
    %24 = arith.addf %20, %23 : vector<16x96xf32>
    %25 = vector.extract_strided_slice %5 {offsets = [0, 0, 0], sizes = [1, 32, 96], strides = [1, 1, 1]} : vector<2x32x96xbf16> to vector<1x32x96xbf16>
    %26 = vector.shape_cast %25 : vector<1x32x96xbf16> to vector<32x96xbf16>
    %27 = vector.extract_strided_slice %5 {offsets = [1, 0, 0], sizes = [1, 32, 96], strides = [1, 1, 1]} : vector<2x32x96xbf16> to vector<1x32x96xbf16>
    %28 = vector.shape_cast %27 : vector<1x32x96xbf16> to vector<32x96xbf16>
    %29 = vector.extract_strided_slice %6 {offsets = [0, 0, 0], sizes = [1, 1, 96], strides = [1, 1, 1]} : vector<2x1x96xf32> to vector<1x1x96xf32>
    %30 = vector.shape_cast %29 : vector<1x1x96xf32> to vector<1x96xf32>
    %31 = vector.extract_strided_slice %6 {offsets = [1, 0, 0], sizes = [1, 1, 96], strides = [1, 1, 1]} : vector<2x1x96xf32> to vector<1x1x96xf32>
    %32 = vector.shape_cast %31 : vector<1x1x96xf32> to vector<1x96xf32>
    %c0_19 = arith.constant 0 : index
    %c0_20 = arith.constant 0 : index
    %33 = vector.load %arg9[%c0_19, %c0_20] : memref<2x32xf32, #tpu.memory_space<vmem>>, vector<2x32xf32>
    %c0_21 = arith.constant 0 : index
    %c0_22 = arith.constant 0 : index
    %34 = vector.load %arg10[%c0_21, %c0_22] : memref<2x32xf32, #tpu.memory_space<vmem>>, vector<2x32xf32>
    %35 = vector.extract_strided_slice %15 {offsets = [0, 0], sizes = [2, 96], strides = [1, 1]} : vector<16x96xf32> to vector<2x96xf32>
    %36 = arith.truncf %33 : vector<2x32xf32> to vector<2x32xbf16>
    %cst_23 = arith.constant dense<0.000000e+00> : vector<2x96xf32>
    %37 = tpu.matmul %36, %26, %cst_23 {dimension_numbers = #tpu.dot_dimension_numbers<[1], [0], [0], [1], [0, 0, 1, 1], [], []>} : vector<2x32xbf16>, vector<32x96xbf16>, vector<2x96xf32> -> vector<2x96xf32>
    %38 = vector.broadcast %30 : vector<1x96xf32> to vector<2x96xf32>
    %39 = arith.addf %37, %38 : vector<2x96xf32>
    %40 = vector.extract_strided_slice %35 {offsets = [0, 0], sizes = [2, 32], strides = [1, 1]} : vector<2x96xf32> to vector<2x32xf32>
    %41 = vector.extract_strided_slice %39 {offsets = [0, 0], sizes = [2, 32], strides = [1, 1]} : vector<2x96xf32> to vector<2x32xf32>
    %42 = arith.addf %40, %41 : vector<2x32xf32>
    %43 = arith.negf %42 : vector<2x32xf32>
    %44 = math.exp %43 : vector<2x32xf32>
    %cst_24 = arith.constant 1.000000e+00 : f32
    %45 = vector.broadcast %cst_24 : f32 to vector<2x32xf32>
    %46 = arith.addf %45, %44 : vector<2x32xf32>
    %47 = arith.divf %45, %46 : vector<2x32xf32>
    %48 = vector.extract_strided_slice %35 {offsets = [0, 32], sizes = [2, 32], strides = [1, 1]} : vector<2x96xf32> to vector<2x32xf32>
    %49 = vector.extract_strided_slice %39 {offsets = [0, 32], sizes = [2, 32], strides = [1, 1]} : vector<2x96xf32> to vector<2x32xf32>
    %50 = arith.addf %48, %49 : vector<2x32xf32>
    %51 = arith.negf %50 : vector<2x32xf32>
    %52 = math.exp %51 : vector<2x32xf32>
    %cst_25 = arith.constant 1.000000e+00 : f32
    %53 = vector.broadcast %cst_25 : f32 to vector<2x32xf32>
    %54 = arith.addf %53, %52 : vector<2x32xf32>
    %55 = arith.divf %53, %54 : vector<2x32xf32>
    %56 = vector.extract_strided_slice %35 {offsets = [0, 64], sizes = [2, 32], strides = [1, 1]} : vector<2x96xf32> to vector<2x32xf32>
    %57 = vector.extract_strided_slice %39 {offsets = [0, 64], sizes = [2, 32], strides = [1, 1]} : vector<2x96xf32> to vector<2x32xf32>
    %58 = arith.mulf %47, %57 : vector<2x32xf32>
    %59 = arith.addf %56, %58 : vector<2x32xf32>
    %60 = math.tanh %59 : vector<2x32xf32>
    %cst_26 = arith.constant 1.000000e+00 : f32
    %61 = vector.broadcast %cst_26 : f32 to vector<2x32xf32>
    %62 = arith.subf %61, %55 : vector<2x32xf32>
    %63 = arith.mulf %62, %60 : vector<2x32xf32>
    %64 = arith.mulf %55, %33 : vector<2x32xf32>
    %65 = arith.addf %63, %64 : vector<2x32xf32>
    %66 = vector.extract_strided_slice %24 {offsets = [14, 0], sizes = [2, 96], strides = [1, 1]} : vector<16x96xf32> to vector<2x96xf32>
    %67 = arith.truncf %34 : vector<2x32xf32> to vector<2x32xbf16>
    %cst_27 = arith.constant dense<0.000000e+00> : vector<2x96xf32>
    %68 = tpu.matmul %67, %28, %cst_27 {dimension_numbers = #tpu.dot_dimension_numbers<[1], [0], [0], [1], [0, 0, 1, 1], [], []>} : vector<2x32xbf16>, vector<32x96xbf16>, vector<2x96xf32> -> vector<2x96xf32>
    %69 = vector.broadcast %32 : vector<1x96xf32> to vector<2x96xf32>
    %70 = arith.addf %68, %69 : vector<2x96xf32>
    %71 = vector.extract_strided_slice %66 {offsets = [0, 0], sizes = [2, 32], strides = [1, 1]} : vector<2x96xf32> to vector<2x32xf32>
    %72 = vector.extract_strided_slice %70 {offsets = [0, 0], sizes = [2, 32], strides = [1, 1]} : vector<2x96xf32> to vector<2x32xf32>
    %73 = arith.addf %71, %72 : vector<2x32xf32>
    %74 = arith.negf %73 : vector<2x32xf32>
    %75 = math.exp %74 : vector<2x32xf32>
    %cst_28 = arith.constant 1.000000e+00 : f32
    %76 = vector.broadcast %cst_28 : f32 to vector<2x32xf32>
    %77 = arith.addf %76, %75 : vector<2x32xf32>
    %78 = arith.divf %76, %77 : vector<2x32xf32>
    %79 = vector.extract_strided_slice %66 {offsets = [0, 32], sizes = [2, 32], strides = [1, 1]} : vector<2x96xf32> to vector<2x32xf32>
    %80 = vector.extract_strided_slice %70 {offsets = [0, 32], sizes = [2, 32], strides = [1, 1]} : vector<2x96xf32> to vector<2x32xf32>
    %81 = arith.addf %79, %80 : vector<2x32xf32>
    %82 = arith.negf %81 : vector<2x32xf32>
    %83 = math.exp %82 : vector<2x32xf32>
    %cst_29 = arith.constant 1.000000e+00 : f32
    %84 = vector.broadcast %cst_29 : f32 to vector<2x32xf32>
    %85 = arith.addf %84, %83 : vector<2x32xf32>
    %86 = arith.divf %84, %85 : vector<2x32xf32>
    %87 = vector.extract_strided_slice %66 {offsets = [0, 64], sizes = [2, 32], strides = [1, 1]} : vector<2x96xf32> to vector<2x32xf32>
    %88 = vector.extract_strided_slice %70 {offsets = [0, 64], sizes = [2, 32], strides = [1, 1]} : vector<2x96xf32> to vector<2x32xf32>
    %89 = arith.mulf %78, %88 : vector<2x32xf32>
    %90 = arith.addf %87, %89 : vector<2x32xf32>
    %91 = math.tanh %90 : vector<2x32xf32>
    %cst_30 = arith.constant 1.000000e+00 : f32
    %92 = vector.broadcast %cst_30 : f32 to vector<2x32xf32>
    %93 = arith.subf %92, %86 : vector<2x32xf32>
    %94 = arith.mulf %93, %91 : vector<2x32xf32>
    %95 = arith.mulf %86, %34 : vector<2x32xf32>
    %96 = arith.addf %94, %95 : vector<2x32xf32>
    %97 = arith.truncf %65 : vector<2x32xf32> to vector<2x32xbf16>
    %c0_31 = arith.constant 0 : index
    %c0_32 = arith.constant 0 : index
    %c0_33 = arith.constant 0 : index
    %98 = vector.load %arg7[%c0_31, %c0_32, %c0_33] : memref<8x2x32xbf16, #tpu.memory_space<vmem>>, vector<1x2x32xbf16>
    %99 = vector.shape_cast %98 : vector<1x2x32xbf16> to vector<2x32xbf16>
    %100 = vector.shape_cast %97 : vector<2x32xbf16> to vector<1x2x32xbf16>
    tpu.vector_store %arg7[%c0_31, %c0_32, %c0_33], %100 {strides = array<i32>} : memref<8x2x32xbf16, #tpu.memory_space<vmem>>, vector<1x2x32xbf16>,
    %101 = arith.truncf %96 : vector<2x32xf32> to vector<2x32xbf16>
    %c7 = arith.constant 7 : index
    %c0_34 = arith.constant 0 : index
    %c0_35 = arith.constant 0 : index
    %102 = vector.load %arg8[%c7, %c0_34, %c0_35] : memref<8x2x32xbf16, #tpu.memory_space<vmem>>, vector<1x2x32xbf16>
    %103 = vector.shape_cast %102 : vector<1x2x32xbf16> to vector<2x32xbf16>
    %104 = vector.shape_cast %101 : vector<2x32xbf16> to vector<1x2x32xbf16>
    tpu.vector_store %arg8[%c7, %c0_34, %c0_35], %104 {strides = array<i32>} : memref<8x2x32xbf16, #tpu.memory_space<vmem>>, vector<1x2x32xbf16>,
    %105 = vector.extract_strided_slice %15 {offsets = [2, 0], sizes = [2, 96], strides = [1, 1]} : vector<16x96xf32> to vector<2x96xf32>
    %106 = arith.truncf %65 : vector<2x32xf32> to vector<2x32xbf16>
    %cst_36 = arith.constant dense<0.000000e+00> : vector<2x96xf32>
    %107 = tpu.matmul %106, %26, %cst_36 {dimension_numbers = #tpu.dot_dimension_numbers<[1], [0], [0], [1], [0, 0, 1, 1], [], []>} : vector<2x32xbf16>, vector<32x96xbf16>, vector<2x96xf32> -> vector<2x96xf32>
    %108 = vector.broadcast %30 : vector<1x96xf32> to vector<2x96xf32>
    %109 = arith.addf %107, %108 : vector<2x96xf32>
    %110 = vector.extract_strided_slice %105 {offsets = [0, 0], sizes = [2, 32], strides = [1, 1]} : vector<2x96xf32> to vector<2x32xf32>
    %111 = vector.extract_strided_slice %109 {offsets = [0, 0], sizes = [2, 32], strides = [1, 1]} : vector<2x96xf32> to vector<2x32xf32>
    %112 = arith.addf %110, %111 : vector<2x32xf32>
    %113 = arith.negf %112 : vector<2x32xf32>
    %114 = math.exp %113 : vector<2x32xf32>
    %cst_37 = arith.constant 1.000000e+00 : f32
    %115 = vector.broadcast %cst_37 : f32 to vector<2x32xf32>
    %116 = arith.addf %115, %114 : vector<2x32xf32>
    %117 = arith.divf %115, %116 : vector<2x32xf32>
    %118 = vector.extract_strided_slice %105 {offsets = [0, 32], sizes = [2, 32], strides = [1, 1]} : vector<2x96xf32> to vector<2x32xf32>
    %119 = vector.extract_strided_slice %109 {offsets = [0, 32], sizes = [2, 32], strides = [1, 1]} : vector<2x96xf32> to vector<2x32xf32>
    %120 = arith.addf %118, %119 : vector<2x32xf32>
    %121 = arith.negf %120 : vector<2x32xf32>
    %122 = math.exp %121 : vector<2x32xf32>
    %cst_38 = arith.constant 1.000000e+00 : f32
    %123 = vector.broadcast %cst_38 : f32 to vector<2x32xf32>
    %124 = arith.addf %123, %122 : vector<2x32xf32>
    %125 = arith.divf %123, %124 : vector<2x32xf32>
    %126 = vector.extract_strided_slice %105 {offsets = [0, 64], sizes = [2, 32], strides = [1, 1]} : vector<2x96xf32> to vector<2x32xf32>
    %127 = vector.extract_strided_slice %109 {offsets = [0, 64], sizes = [2, 32], strides = [1, 1]} : vector<2x96xf32> to vector<2x32xf32>
    %128 = arith.mulf %117, %127 : vector<2x32xf32>
    %129 = arith.addf %126, %128 : vector<2x32xf32>
    %130 = math.tanh %129 : vector<2x32xf32>
    %cst_39 = arith.constant 1.000000e+00 : f32
    %131 = vector.broadcast %cst_39 : f32 to vector<2x32xf32>
    %132 = arith.subf %131, %125 : vector<2x32xf32>
    %133 = arith.mulf %132, %130 : vector<2x32xf32>
    %134 = arith.mulf %125, %65 : vector<2x32xf32>
    %135 = arith.addf %133, %134 : vector<2x32xf32>
    %136 = vector.extract_strided_slice %24 {offsets = [12, 0], sizes = [2, 96], strides = [1, 1]} : vector<16x96xf32> to vector<2x96xf32>
    %137 = arith.truncf %96 : vector<2x32xf32> to vector<2x32xbf16>
    %cst_40 = arith.constant dense<0.000000e+00> : vector<2x96xf32>
    %138 = tpu.matmul %137, %28, %cst_40 {dimension_numbers = #tpu.dot_dimension_numbers<[1], [0], [0], [1], [0, 0, 1, 1], [], []>} : vector<2x32xbf16>, vector<32x96xbf16>, vector<2x96xf32> -> vector<2x96xf32>
    %139 = vector.broadcast %32 : vector<1x96xf32> to vector<2x96xf32>
    %140 = arith.addf %138, %139 : vector<2x96xf32>
    %141 = vector.extract_strided_slice %136 {offsets = [0, 0], sizes = [2, 32], strides = [1, 1]} : vector<2x96xf32> to vector<2x32xf32>
    %142 = vector.extract_strided_slice %140 {offsets = [0, 0], sizes = [2, 32], strides = [1, 1]} : vector<2x96xf32> to vector<2x32xf32>
    %143 = arith.addf %141, %142 : vector<2x32xf32>
    %144 = arith.negf %143 : vector<2x32xf32>
    %145 = math.exp %144 : vector<2x32xf32>
    %cst_41 = arith.constant 1.000000e+00 : f32
    %146 = vector.broadcast %cst_41 : f32 to vector<2x32xf32>
    %147 = arith.addf %146, %145 : vector<2x32xf32>
    %148 = arith.divf %146, %147 : vector<2x32xf32>
    %149 = vector.extract_strided_slice %136 {offsets = [0, 32], sizes = [2, 32], strides = [1, 1]} : vector<2x96xf32> to vector<2x32xf32>
    %150 = vector.extract_strided_slice %140 {offsets = [0, 32], sizes = [2, 32], strides = [1, 1]} : vector<2x96xf32> to vector<2x32xf32>
    %151 = arith.addf %149, %150 : vector<2x32xf32>
    %152 = arith.negf %151 : vector<2x32xf32>
    %153 = math.exp %152 : vector<2x32xf32>
    %cst_42 = arith.constant 1.000000e+00 : f32
    %154 = vector.broadcast %cst_42 : f32 to vector<2x32xf32>
    %155 = arith.addf %154, %153 : vector<2x32xf32>
    %156 = arith.divf %154, %155 : vector<2x32xf32>
    %157 = vector.extract_strided_slice %136 {offsets = [0, 64], sizes = [2, 32], strides = [1, 1]} : vector<2x96xf32> to vector<2x32xf32>
    %158 = vector.extract_strided_slice %140 {offsets = [0, 64], sizes = [2, 32], strides = [1, 1]} : vector<2x96xf32> to vector<2x32xf32>
    %159 = arith.mulf %148, %158 : vector<2x32xf32>
    %160 = arith.addf %157, %159 : vector<2x32xf32>
    %161 = math.tanh %160 : vector<2x32xf32>
    %cst_43 = arith.constant 1.000000e+00 : f32
    %162 = vector.broadcast %cst_43 : f32 to vector<2x32xf32>
    %163 = arith.subf %162, %156 : vector<2x32xf32>
    %164 = arith.mulf %163, %161 : vector<2x32xf32>
    %165 = arith.mulf %156, %96 : vector<2x32xf32>
    %166 = arith.addf %164, %165 : vector<2x32xf32>
    %167 = arith.truncf %135 : vector<2x32xf32> to vector<2x32xbf16>
    %c1 = arith.constant 1 : index
    %c0_44 = arith.constant 0 : index
    %c0_45 = arith.constant 0 : index
    %168 = vector.load %arg7[%c1, %c0_44, %c0_45] : memref<8x2x32xbf16, #tpu.memory_space<vmem>>, vector<1x2x32xbf16>
    %169 = vector.shape_cast %168 : vector<1x2x32xbf16> to vector<2x32xbf16>
    %170 = vector.shape_cast %167 : vector<2x32xbf16> to vector<1x2x32xbf16>
    tpu.vector_store %arg7[%c1, %c0_44, %c0_45], %170 {strides = array<i32>} : memref<8x2x32xbf16, #tpu.memory_space<vmem>>, vector<1x2x32xbf16>,
    %171 = arith.truncf %166 : vector<2x32xf32> to vector<2x32xbf16>
    %c6 = arith.constant 6 : index
    %c0_46 = arith.constant 0 : index
    %c0_47 = arith.constant 0 : index
    %172 = vector.load %arg8[%c6, %c0_46, %c0_47] : memref<8x2x32xbf16, #tpu.memory_space<vmem>>, vector<1x2x32xbf16>
    %173 = vector.shape_cast %172 : vector<1x2x32xbf16> to vector<2x32xbf16>
    %174 = vector.shape_cast %171 : vector<2x32xbf16> to vector<1x2x32xbf16>
    tpu.vector_store %arg8[%c6, %c0_46, %c0_47], %174 {strides = array<i32>} : memref<8x2x32xbf16, #tpu.memory_space<vmem>>, vector<1x2x32xbf16>,
    %175 = vector.extract_strided_slice %15 {offsets = [4, 0], sizes = [2, 96], strides = [1, 1]} : vector<16x96xf32> to vector<2x96xf32>
    %176 = arith.truncf %135 : vector<2x32xf32> to vector<2x32xbf16>
    %cst_48 = arith.constant dense<0.000000e+00> : vector<2x96xf32>
    %177 = tpu.matmul %176, %26, %cst_48 {dimension_numbers = #tpu.dot_dimension_numbers<[1], [0], [0], [1], [0, 0, 1, 1], [], []>} : vector<2x32xbf16>, vector<32x96xbf16>, vector<2x96xf32> -> vector<2x96xf32>
    %178 = vector.broadcast %30 : vector<1x96xf32> to vector<2x96xf32>
    %179 = arith.addf %177, %178 : vector<2x96xf32>
    %180 = vector.extract_strided_slice %175 {offsets = [0, 0], sizes = [2, 32], strides = [1, 1]} : vector<2x96xf32> to vector<2x32xf32>
    %181 = vector.extract_strided_slice %179 {offsets = [0, 0], sizes = [2, 32], strides = [1, 1]} : vector<2x96xf32> to vector<2x32xf32>
    %182 = arith.addf %180, %181 : vector<2x32xf32>
    %183 = arith.negf %182 : vector<2x32xf32>
    %184 = math.exp %183 : vector<2x32xf32>
    %cst_49 = arith.constant 1.000000e+00 : f32
    %185 = vector.broadcast %cst_49 : f32 to vector<2x32xf32>
    %186 = arith.addf %185, %184 : vector<2x32xf32>
    %187 = arith.divf %185, %186 : vector<2x32xf32>
    %188 = vector.extract_strided_slice %175 {offsets = [0, 32], sizes = [2, 32], strides = [1, 1]} : vector<2x96xf32> to vector<2x32xf32>
    %189 = vector.extract_strided_slice %179 {offsets = [0, 32], sizes = [2, 32], strides = [1, 1]} : vector<2x96xf32> to vector<2x32xf32>
    %190 = arith.addf %188, %189 : vector<2x32xf32>
    %191 = arith.negf %190 : vector<2x32xf32>
    %192 = math.exp %191 : vector<2x32xf32>
    %cst_50 = arith.constant 1.000000e+00 : f32
    %193 = vector.broadcast %cst_50 : f32 to vector<2x32xf32>
    %194 = arith.addf %193, %192 : vector<2x32xf32>
    %195 = arith.divf %193, %194 : vector<2x32xf32>
    %196 = vector.extract_strided_slice %175 {offsets = [0, 64], sizes = [2, 32], strides = [1, 1]} : vector<2x96xf32> to vector<2x32xf32>
    %197 = vector.extract_strided_slice %179 {offsets = [0, 64], sizes = [2, 32], strides = [1, 1]} : vector<2x96xf32> to vector<2x32xf32>
    %198 = arith.mulf %187, %197 : vector<2x32xf32>
    %199 = arith.addf %196, %198 : vector<2x32xf32>
    %200 = math.tanh %199 : vector<2x32xf32>
    %cst_51 = arith.constant 1.000000e+00 : f32
    %201 = vector.broadcast %cst_51 : f32 to vector<2x32xf32>
    %202 = arith.subf %201, %195 : vector<2x32xf32>
    %203 = arith.mulf %202, %200 : vector<2x32xf32>
    %204 = arith.mulf %195, %135 : vector<2x32xf32>
    %205 = arith.addf %203, %204 : vector<2x32xf32>
    %206 = vector.extract_strided_slice %24 {offsets = [10, 0], sizes = [2, 96], strides = [1, 1]} : vector<16x96xf32> to vector<2x96xf32>
    %207 = arith.truncf %166 : vector<2x32xf32> to vector<2x32xbf16>
    %cst_52 = arith.constant dense<0.000000e+00> : vector<2x96xf32>
    %208 = tpu.matmul %207, %28, %cst_52 {dimension_numbers = #tpu.dot_dimension_numbers<[1], [0], [0], [1], [0, 0, 1, 1], [], []>} : vector<2x32xbf16>, vector<32x96xbf16>, vector<2x96xf32> -> vector<2x96xf32>
    %209 = vector.broadcast %32 : vector<1x96xf32> to vector<2x96xf32>
    %210 = arith.addf %208, %209 : vector<2x96xf32>
    %211 = vector.extract_strided_slice %206 {offsets = [0, 0], sizes = [2, 32], strides = [1, 1]} : vector<2x96xf32> to vector<2x32xf32>
    %212 = vector.extract_strided_slice %210 {offsets = [0, 0], sizes = [2, 32], strides = [1, 1]} : vector<2x96xf32> to vector<2x32xf32>
    %213 = arith.addf %211, %212 : vector<2x32xf32>
    %214 = arith.negf %213 : vector<2x32xf32>
    %215 = math.exp %214 : vector<2x32xf32>
    %cst_53 = arith.constant 1.000000e+00 : f32
    %216 = vector.broadcast %cst_53 : f32 to vector<2x32xf32>
    %217 = arith.addf %216, %215 : vector<2x32xf32>
    %218 = arith.divf %216, %217 : vector<2x32xf32>
    %219 = vector.extract_strided_slice %206 {offsets = [0, 32], sizes = [2, 32], strides = [1, 1]} : vector<2x96xf32> to vector<2x32xf32>
    %220 = vector.extract_strided_slice %210 {offsets = [0, 32], sizes = [2, 32], strides = [1, 1]} : vector<2x96xf32> to vector<2x32xf32>
    %221 = arith.addf %219, %220 : vector<2x32xf32>
    %222 = arith.negf %221 : vector<2x32xf32>
    %223 = math.exp %222 : vector<2x32xf32>
    %cst_54 = arith.constant 1.000000e+00 : f32
    %224 = vector.broadcast %cst_54 : f32 to vector<2x32xf32>
    %225 = arith.addf %224, %223 : vector<2x32xf32>
    %226 = arith.divf %224, %225 : vector<2x32xf32>
    %227 = vector.extract_strided_slice %206 {offsets = [0, 64], sizes = [2, 32], strides = [1, 1]} : vector<2x96xf32> to vector<2x32xf32>
    %228 = vector.extract_strided_slice %210 {offsets = [0, 64], sizes = [2, 32], strides = [1, 1]} : vector<2x96xf32> to vector<2x32xf32>
    %229 = arith.mulf %218, %228 : vector<2x32xf32>
    %230 = arith.addf %227, %229 : vector<2x32xf32>
    %231 = math.tanh %230 : vector<2x32xf32>
    %cst_55 = arith.constant 1.000000e+00 : f32
    %232 = vector.broadcast %cst_55 : f32 to vector<2x32xf32>
    %233 = arith.subf %232, %226 : vector<2x32xf32>
    %234 = arith.mulf %233, %231 : vector<2x32xf32>
    %235 = arith.mulf %226, %166 : vector<2x32xf32>
    %236 = arith.addf %234, %235 : vector<2x32xf32>
    %237 = arith.truncf %205 : vector<2x32xf32> to vector<2x32xbf16>
    %c2 = arith.constant 2 : index
    %c0_56 = arith.constant 0 : index
    %c0_57 = arith.constant 0 : index
    %238 = vector.load %arg7[%c2, %c0_56, %c0_57] : memref<8x2x32xbf16, #tpu.memory_space<vmem>>, vector<1x2x32xbf16>
    %239 = vector.shape_cast %238 : vector<1x2x32xbf16> to vector<2x32xbf16>
    %240 = vector.shape_cast %237 : vector<2x32xbf16> to vector<1x2x32xbf16>
    tpu.vector_store %arg7[%c2, %c0_56, %c0_57], %240 {strides = array<i32>} : memref<8x2x32xbf16, #tpu.memory_space<vmem>>, vector<1x2x32xbf16>,
    %241 = arith.truncf %236 : vector<2x32xf32> to vector<2x32xbf16>
    %c5 = arith.constant 5 : index
    %c0_58 = arith.constant 0 : index
    %c0_59 = arith.constant 0 : index
    %242 = vector.load %arg8[%c5, %c0_58, %c0_59] : memref<8x2x32xbf16, #tpu.memory_space<vmem>>, vector<1x2x32xbf16>
    %243 = vector.shape_cast %242 : vector<1x2x32xbf16> to vector<2x32xbf16>
    %244 = vector.shape_cast %241 : vector<2x32xbf16> to vector<1x2x32xbf16>
    tpu.vector_store %arg8[%c5, %c0_58, %c0_59], %244 {strides = array<i32>} : memref<8x2x32xbf16, #tpu.memory_space<vmem>>, vector<1x2x32xbf16>,
    %245 = vector.extract_strided_slice %15 {offsets = [6, 0], sizes = [2, 96], strides = [1, 1]} : vector<16x96xf32> to vector<2x96xf32>
    %246 = arith.truncf %205 : vector<2x32xf32> to vector<2x32xbf16>
    %cst_60 = arith.constant dense<0.000000e+00> : vector<2x96xf32>
    %247 = tpu.matmul %246, %26, %cst_60 {dimension_numbers = #tpu.dot_dimension_numbers<[1], [0], [0], [1], [0, 0, 1, 1], [], []>} : vector<2x32xbf16>, vector<32x96xbf16>, vector<2x96xf32> -> vector<2x96xf32>
    %248 = vector.broadcast %30 : vector<1x96xf32> to vector<2x96xf32>
    %249 = arith.addf %247, %248 : vector<2x96xf32>
    %250 = vector.extract_strided_slice %245 {offsets = [0, 0], sizes = [2, 32], strides = [1, 1]} : vector<2x96xf32> to vector<2x32xf32>
    %251 = vector.extract_strided_slice %249 {offsets = [0, 0], sizes = [2, 32], strides = [1, 1]} : vector<2x96xf32> to vector<2x32xf32>
    %252 = arith.addf %250, %251 : vector<2x32xf32>
    %253 = arith.negf %252 : vector<2x32xf32>
    %254 = math.exp %253 : vector<2x32xf32>
    %cst_61 = arith.constant 1.000000e+00 : f32
    %255 = vector.broadcast %cst_61 : f32 to vector<2x32xf32>
    %256 = arith.addf %255, %254 : vector<2x32xf32>
    %257 = arith.divf %255, %256 : vector<2x32xf32>
    %258 = vector.extract_strided_slice %245 {offsets = [0, 32], sizes = [2, 32], strides = [1, 1]} : vector<2x96xf32> to vector<2x32xf32>
    %259 = vector.extract_strided_slice %249 {offsets = [0, 32], sizes = [2, 32], strides = [1, 1]} : vector<2x96xf32> to vector<2x32xf32>
    %260 = arith.addf %258, %259 : vector<2x32xf32>
    %261 = arith.negf %260 : vector<2x32xf32>
    %262 = math.exp %261 : vector<2x32xf32>
    %cst_62 = arith.constant 1.000000e+00 : f32
    %263 = vector.broadcast %cst_62 : f32 to vector<2x32xf32>
    %264 = arith.addf %263, %262 : vector<2x32xf32>
    %265 = arith.divf %263, %264 : vector<2x32xf32>
    %266 = vector.extract_strided_slice %245 {offsets = [0, 64], sizes = [2, 32], strides = [1, 1]} : vector<2x96xf32> to vector<2x32xf32>
    %267 = vector.extract_strided_slice %249 {offsets = [0, 64], sizes = [2, 32], strides = [1, 1]} : vector<2x96xf32> to vector<2x32xf32>
    %268 = arith.mulf %257, %267 : vector<2x32xf32>
    %269 = arith.addf %266, %268 : vector<2x32xf32>
    %270 = math.tanh %269 : vector<2x32xf32>
    %cst_63 = arith.constant 1.000000e+00 : f32
    %271 = vector.broadcast %cst_63 : f32 to vector<2x32xf32>
    %272 = arith.subf %271, %265 : vector<2x32xf32>
    %273 = arith.mulf %272, %270 : vector<2x32xf32>
    %274 = arith.mulf %265, %205 : vector<2x32xf32>
    %275 = arith.addf %273, %274 : vector<2x32xf32>
    %276 = vector.extract_strided_slice %24 {offsets = [8, 0], sizes = [2, 96], strides = [1, 1]} : vector<16x96xf32> to vector<2x96xf32>
    %277 = arith.truncf %236 : vector<2x32xf32> to vector<2x32xbf16>
    %cst_64 = arith.constant dense<0.000000e+00> : vector<2x96xf32>
    %278 = tpu.matmul %277, %28, %cst_64 {dimension_numbers = #tpu.dot_dimension_numbers<[1], [0], [0], [1], [0, 0, 1, 1], [], []>} : vector<2x32xbf16>, vector<32x96xbf16>, vector<2x96xf32> -> vector<2x96xf32>
    %279 = vector.broadcast %32 : vector<1x96xf32> to vector<2x96xf32>
    %280 = arith.addf %278, %279 : vector<2x96xf32>
    %281 = vector.extract_strided_slice %276 {offsets = [0, 0], sizes = [2, 32], strides = [1, 1]} : vector<2x96xf32> to vector<2x32xf32>
    %282 = vector.extract_strided_slice %280 {offsets = [0, 0], sizes = [2, 32], strides = [1, 1]} : vector<2x96xf32> to vector<2x32xf32>
    %283 = arith.addf %281, %282 : vector<2x32xf32>
    %284 = arith.negf %283 : vector<2x32xf32>
    %285 = math.exp %284 : vector<2x32xf32>
    %cst_65 = arith.constant 1.000000e+00 : f32
    %286 = vector.broadcast %cst_65 : f32 to vector<2x32xf32>
    %287 = arith.addf %286, %285 : vector<2x32xf32>
    %288 = arith.divf %286, %287 : vector<2x32xf32>
    %289 = vector.extract_strided_slice %276 {offsets = [0, 32], sizes = [2, 32], strides = [1, 1]} : vector<2x96xf32> to vector<2x32xf32>
    %290 = vector.extract_strided_slice %280 {offsets = [0, 32], sizes = [2, 32], strides = [1, 1]} : vector<2x96xf32> to vector<2x32xf32>
    %291 = arith.addf %289, %290 : vector<2x32xf32>
    %292 = arith.negf %291 : vector<2x32xf32>
    %293 = math.exp %292 : vector<2x32xf32>
    %cst_66 = arith.constant 1.000000e+00 : f32
    %294 = vector.broadcast %cst_66 : f32 to vector<2x32xf32>
    %295 = arith.addf %294, %293 : vector<2x32xf32>
    %296 = arith.divf %294, %295 : vector<2x32xf32>
    %297 = vector.extract_strided_slice %276 {offsets = [0, 64], sizes = [2, 32], strides = [1, 1]} : vector<2x96xf32> to vector<2x32xf32>
    %298 = vector.extract_strided_slice %280 {offsets = [0, 64], sizes = [2, 32], strides = [1, 1]} : vector<2x96xf32> to vector<2x32xf32>
    %299 = arith.mulf %288, %298 : vector<2x32xf32>
    %300 = arith.addf %297, %299 : vector<2x32xf32>
    %301 = math.tanh %300 : vector<2x32xf32>
    %cst_67 = arith.constant 1.000000e+00 : f32
    %302 = vector.broadcast %cst_67 : f32 to vector<2x32xf32>
    %303 = arith.subf %302, %296 : vector<2x32xf32>
    %304 = arith.mulf %303, %301 : vector<2x32xf32>
    %305 = arith.mulf %296, %236 : vector<2x32xf32>
    %306 = arith.addf %304, %305 : vector<2x32xf32>
    %307 = arith.truncf %275 : vector<2x32xf32> to vector<2x32xbf16>
    %c3 = arith.constant 3 : index
    %c0_68 = arith.constant 0 : index
    %c0_69 = arith.constant 0 : index
    %308 = vector.load %arg7[%c3, %c0_68, %c0_69] : memref<8x2x32xbf16, #tpu.memory_space<vmem>>, vector<1x2x32xbf16>
    %309 = vector.shape_cast %308 : vector<1x2x32xbf16> to vector<2x32xbf16>
    %310 = vector.shape_cast %307 : vector<2x32xbf16> to vector<1x2x32xbf16>
    tpu.vector_store %arg7[%c3, %c0_68, %c0_69], %310 {strides = array<i32>} : memref<8x2x32xbf16, #tpu.memory_space<vmem>>, vector<1x2x32xbf16>,
    %311 = arith.truncf %306 : vector<2x32xf32> to vector<2x32xbf16>
    %c4 = arith.constant 4 : index
    %c0_70 = arith.constant 0 : index
    %c0_71 = arith.constant 0 : index
    %312 = vector.load %arg8[%c4, %c0_70, %c0_71] : memref<8x2x32xbf16, #tpu.memory_space<vmem>>, vector<1x2x32xbf16>
    %313 = vector.shape_cast %312 : vector<1x2x32xbf16> to vector<2x32xbf16>
    %314 = vector.shape_cast %311 : vector<2x32xbf16> to vector<1x2x32xbf16>
    tpu.vector_store %arg8[%c4, %c0_70, %c0_71], %314 {strides = array<i32>} : memref<8x2x32xbf16, #tpu.memory_space<vmem>>, vector<1x2x32xbf16>,
    %315 = vector.extract_strided_slice %15 {offsets = [8, 0], sizes = [2, 96], strides = [1, 1]} : vector<16x96xf32> to vector<2x96xf32>
    %316 = arith.truncf %275 : vector<2x32xf32> to vector<2x32xbf16>
    %cst_72 = arith.constant dense<0.000000e+00> : vector<2x96xf32>
    %317 = tpu.matmul %316, %26, %cst_72 {dimension_numbers = #tpu.dot_dimension_numbers<[1], [0], [0], [1], [0, 0, 1, 1], [], []>} : vector<2x32xbf16>, vector<32x96xbf16>, vector<2x96xf32> -> vector<2x96xf32>
    %318 = vector.broadcast %30 : vector<1x96xf32> to vector<2x96xf32>
    %319 = arith.addf %317, %318 : vector<2x96xf32>
    %320 = vector.extract_strided_slice %315 {offsets = [0, 0], sizes = [2, 32], strides = [1, 1]} : vector<2x96xf32> to vector<2x32xf32>
    %321 = vector.extract_strided_slice %319 {offsets = [0, 0], sizes = [2, 32], strides = [1, 1]} : vector<2x96xf32> to vector<2x32xf32>
    %322 = arith.addf %320, %321 : vector<2x32xf32>
    %323 = arith.negf %322 : vector<2x32xf32>
    %324 = math.exp %323 : vector<2x32xf32>
    %cst_73 = arith.constant 1.000000e+00 : f32
    %325 = vector.broadcast %cst_73 : f32 to vector<2x32xf32>
    %326 = arith.addf %325, %324 : vector<2x32xf32>
    %327 = arith.divf %325, %326 : vector<2x32xf32>
    %328 = vector.extract_strided_slice %315 {offsets = [0, 32], sizes = [2, 32], strides = [1, 1]} : vector<2x96xf32> to vector<2x32xf32>
    %329 = vector.extract_strided_slice %319 {offsets = [0, 32], sizes = [2, 32], strides = [1, 1]} : vector<2x96xf32> to vector<2x32xf32>
    %330 = arith.addf %328, %329 : vector<2x32xf32>
    %331 = arith.negf %330 : vector<2x32xf32>
    %332 = math.exp %331 : vector<2x32xf32>
    %cst_74 = arith.constant 1.000000e+00 : f32
    %333 = vector.broadcast %cst_74 : f32 to vector<2x32xf32>
    %334 = arith.addf %333, %332 : vector<2x32xf32>
    %335 = arith.divf %333, %334 : vector<2x32xf32>
    %336 = vector.extract_strided_slice %315 {offsets = [0, 64], sizes = [2, 32], strides = [1, 1]} : vector<2x96xf32> to vector<2x32xf32>
    %337 = vector.extract_strided_slice %319 {offsets = [0, 64], sizes = [2, 32], strides = [1, 1]} : vector<2x96xf32> to vector<2x32xf32>
    %338 = arith.mulf %327, %337 : vector<2x32xf32>
    %339 = arith.addf %336, %338 : vector<2x32xf32>
    %340 = math.tanh %339 : vector<2x32xf32>
    %cst_75 = arith.constant 1.000000e+00 : f32
    %341 = vector.broadcast %cst_75 : f32 to vector<2x32xf32>
    %342 = arith.subf %341, %335 : vector<2x32xf32>
    %343 = arith.mulf %342, %340 : vector<2x32xf32>
    %344 = arith.mulf %335, %275 : vector<2x32xf32>
    %345 = arith.addf %343, %344 : vector<2x32xf32>
    %346 = vector.extract_strided_slice %24 {offsets = [6, 0], sizes = [2, 96], strides = [1, 1]} : vector<16x96xf32> to vector<2x96xf32>
    %347 = arith.truncf %306 : vector<2x32xf32> to vector<2x32xbf16>
    %cst_76 = arith.constant dense<0.000000e+00> : vector<2x96xf32>
    %348 = tpu.matmul %347, %28, %cst_76 {dimension_numbers = #tpu.dot_dimension_numbers<[1], [0], [0], [1], [0, 0, 1, 1], [], []>} : vector<2x32xbf16>, vector<32x96xbf16>, vector<2x96xf32> -> vector<2x96xf32>
    %349 = vector.broadcast %32 : vector<1x96xf32> to vector<2x96xf32>
    %350 = arith.addf %348, %349 : vector<2x96xf32>
    %351 = vector.extract_strided_slice %346 {offsets = [0, 0], sizes = [2, 32], strides = [1, 1]} : vector<2x96xf32> to vector<2x32xf32>
    %352 = vector.extract_strided_slice %350 {offsets = [0, 0], sizes = [2, 32], strides = [1, 1]} : vector<2x96xf32> to vector<2x32xf32>
    %353 = arith.addf %351, %352 : vector<2x32xf32>
    %354 = arith.negf %353 : vector<2x32xf32>
    %355 = math.exp %354 : vector<2x32xf32>
    %cst_77 = arith.constant 1.000000e+00 : f32
    %356 = vector.broadcast %cst_77 : f32 to vector<2x32xf32>
    %357 = arith.addf %356, %355 : vector<2x32xf32>
    %358 = arith.divf %356, %357 : vector<2x32xf32>
    %359 = vector.extract_strided_slice %346 {offsets = [0, 32], sizes = [2, 32], strides = [1, 1]} : vector<2x96xf32> to vector<2x32xf32>
    %360 = vector.extract_strided_slice %350 {offsets = [0, 32], sizes = [2, 32], strides = [1, 1]} : vector<2x96xf32> to vector<2x32xf32>
    %361 = arith.addf %359, %360 : vector<2x32xf32>
    %362 = arith.negf %361 : vector<2x32xf32>
    %363 = math.exp %362 : vector<2x32xf32>
    %cst_78 = arith.constant 1.000000e+00 : f32
    %364 = vector.broadcast %cst_78 : f32 to vector<2x32xf32>
    %365 = arith.addf %364, %363 : vector<2x32xf32>
    %366 = arith.divf %364, %365 : vector<2x32xf32>
    %367 = vector.extract_strided_slice %346 {offsets = [0, 64], sizes = [2, 32], strides = [1, 1]} : vector<2x96xf32> to vector<2x32xf32>
    %368 = vector.extract_strided_slice %350 {offsets = [0, 64], sizes = [2, 32], strides = [1, 1]} : vector<2x96xf32> to vector<2x32xf32>
    %369 = arith.mulf %358, %368 : vector<2x32xf32>
    %370 = arith.addf %367, %369 : vector<2x32xf32>
    %371 = math.tanh %370 : vector<2x32xf32>
    %cst_79 = arith.constant 1.000000e+00 : f32
    %372 = vector.broadcast %cst_79 : f32 to vector<2x32xf32>
    %373 = arith.subf %372, %366 : vector<2x32xf32>
    %374 = arith.mulf %373, %371 : vector<2x32xf32>
    %375 = arith.mulf %366, %306 : vector<2x32xf32>
    %376 = arith.addf %374, %375 : vector<2x32xf32>
    %377 = arith.truncf %345 : vector<2x32xf32> to vector<2x32xbf16>
    %c4_80 = arith.constant 4 : index
    %c0_81 = arith.constant 0 : index
    %c0_82 = arith.constant 0 : index
    %378 = vector.load %arg7[%c4_80, %c0_81, %c0_82] : memref<8x2x32xbf16, #tpu.memory_space<vmem>>, vector<1x2x32xbf16>
    %379 = vector.shape_cast %378 : vector<1x2x32xbf16> to vector<2x32xbf16>
    %380 = vector.shape_cast %377 : vector<2x32xbf16> to vector<1x2x32xbf16>
    tpu.vector_store %arg7[%c4_80, %c0_81, %c0_82], %380 {strides = array<i32>} : memref<8x2x32xbf16, #tpu.memory_space<vmem>>, vector<1x2x32xbf16>,
    %381 = arith.truncf %376 : vector<2x32xf32> to vector<2x32xbf16>
    %c3_83 = arith.constant 3 : index
    %c0_84 = arith.constant 0 : index
    %c0_85 = arith.constant 0 : index
    %382 = vector.load %arg8[%c3_83, %c0_84, %c0_85] : memref<8x2x32xbf16, #tpu.memory_space<vmem>>, vector<1x2x32xbf16>
    %383 = vector.shape_cast %382 : vector<1x2x32xbf16> to vector<2x32xbf16>
    %384 = vector.shape_cast %381 : vector<2x32xbf16> to vector<1x2x32xbf16>
    tpu.vector_store %arg8[%c3_83, %c0_84, %c0_85], %384 {strides = array<i32>} : memref<8x2x32xbf16, #tpu.memory_space<vmem>>, vector<1x2x32xbf16>,
    %385 = vector.extract_strided_slice %15 {offsets = [10, 0], sizes = [2, 96], strides = [1, 1]} : vector<16x96xf32> to vector<2x96xf32>
    %386 = arith.truncf %345 : vector<2x32xf32> to vector<2x32xbf16>
    %cst_86 = arith.constant dense<0.000000e+00> : vector<2x96xf32>
    %387 = tpu.matmul %386, %26, %cst_86 {dimension_numbers = #tpu.dot_dimension_numbers<[1], [0], [0], [1], [0, 0, 1, 1], [], []>} : vector<2x32xbf16>, vector<32x96xbf16>, vector<2x96xf32> -> vector<2x96xf32>
    %388 = vector.broadcast %30 : vector<1x96xf32> to vector<2x96xf32>
    %389 = arith.addf %387, %388 : vector<2x96xf32>
    %390 = vector.extract_strided_slice %385 {offsets = [0, 0], sizes = [2, 32], strides = [1, 1]} : vector<2x96xf32> to vector<2x32xf32>
    %391 = vector.extract_strided_slice %389 {offsets = [0, 0], sizes = [2, 32], strides = [1, 1]} : vector<2x96xf32> to vector<2x32xf32>
    %392 = arith.addf %390, %391 : vector<2x32xf32>
    %393 = arith.negf %392 : vector<2x32xf32>
    %394 = math.exp %393 : vector<2x32xf32>
    %cst_87 = arith.constant 1.000000e+00 : f32
    %395 = vector.broadcast %cst_87 : f32 to vector<2x32xf32>
    %396 = arith.addf %395, %394 : vector<2x32xf32>
    %397 = arith.divf %395, %396 : vector<2x32xf32>
    %398 = vector.extract_strided_slice %385 {offsets = [0, 32], sizes = [2, 32], strides = [1, 1]} : vector<2x96xf32> to vector<2x32xf32>
    %399 = vector.extract_strided_slice %389 {offsets = [0, 32], sizes = [2, 32], strides = [1, 1]} : vector<2x96xf32> to vector<2x32xf32>
    %400 = arith.addf %398, %399 : vector<2x32xf32>
    %401 = arith.negf %400 : vector<2x32xf32>
    %402 = math.exp %401 : vector<2x32xf32>
    %cst_88 = arith.constant 1.000000e+00 : f32
    %403 = vector.broadcast %cst_88 : f32 to vector<2x32xf32>
    %404 = arith.addf %403, %402 : vector<2x32xf32>
    %405 = arith.divf %403, %404 : vector<2x32xf32>
    %406 = vector.extract_strided_slice %385 {offsets = [0, 64], sizes = [2, 32], strides = [1, 1]} : vector<2x96xf32> to vector<2x32xf32>
    %407 = vector.extract_strided_slice %389 {offsets = [0, 64], sizes = [2, 32], strides = [1, 1]} : vector<2x96xf32> to vector<2x32xf32>
    %408 = arith.mulf %397, %407 : vector<2x32xf32>
    %409 = arith.addf %406, %408 : vector<2x32xf32>
    %410 = math.tanh %409 : vector<2x32xf32>
    %cst_89 = arith.constant 1.000000e+00 : f32
    %411 = vector.broadcast %cst_89 : f32 to vector<2x32xf32>
    %412 = arith.subf %411, %405 : vector<2x32xf32>
    %413 = arith.mulf %412, %410 : vector<2x32xf32>
    %414 = arith.mulf %405, %345 : vector<2x32xf32>
    %415 = arith.addf %413, %414 : vector<2x32xf32>
    %416 = vector.extract_strided_slice %24 {offsets = [4, 0], sizes = [2, 96], strides = [1, 1]} : vector<16x96xf32> to vector<2x96xf32>
    %417 = arith.truncf %376 : vector<2x32xf32> to vector<2x32xbf16>
    %cst_90 = arith.constant dense<0.000000e+00> : vector<2x96xf32>
    %418 = tpu.matmul %417, %28, %cst_90 {dimension_numbers = #tpu.dot_dimension_numbers<[1], [0], [0], [1], [0, 0, 1, 1], [], []>} : vector<2x32xbf16>, vector<32x96xbf16>, vector<2x96xf32> -> vector<2x96xf32>
    %419 = vector.broadcast %32 : vector<1x96xf32> to vector<2x96xf32>
    %420 = arith.addf %418, %419 : vector<2x96xf32>
    %421 = vector.extract_strided_slice %416 {offsets = [0, 0], sizes = [2, 32], strides = [1, 1]} : vector<2x96xf32> to vector<2x32xf32>
    %422 = vector.extract_strided_slice %420 {offsets = [0, 0], sizes = [2, 32], strides = [1, 1]} : vector<2x96xf32> to vector<2x32xf32>
    %423 = arith.addf %421, %422 : vector<2x32xf32>
    %424 = arith.negf %423 : vector<2x32xf32>
    %425 = math.exp %424 : vector<2x32xf32>
    %cst_91 = arith.constant 1.000000e+00 : f32
    %426 = vector.broadcast %cst_91 : f32 to vector<2x32xf32>
    %427 = arith.addf %426, %425 : vector<2x32xf32>
    %428 = arith.divf %426, %427 : vector<2x32xf32>
    %429 = vector.extract_strided_slice %416 {offsets = [0, 32], sizes = [2, 32], strides = [1, 1]} : vector<2x96xf32> to vector<2x32xf32>
    %430 = vector.extract_strided_slice %420 {offsets = [0, 32], sizes = [2, 32], strides = [1, 1]} : vector<2x96xf32> to vector<2x32xf32>
    %431 = arith.addf %429, %430 : vector<2x32xf32>
    %432 = arith.negf %431 : vector<2x32xf32>
    %433 = math.exp %432 : vector<2x32xf32>
    %cst_92 = arith.constant 1.000000e+00 : f32
    %434 = vector.broadcast %cst_92 : f32 to vector<2x32xf32>
    %435 = arith.addf %434, %433 : vector<2x32xf32>
    %436 = arith.divf %434, %435 : vector<2x32xf32>
    %437 = vector.extract_strided_slice %416 {offsets = [0, 64], sizes = [2, 32], strides = [1, 1]} : vector<2x96xf32> to vector<2x32xf32>
    %438 = vector.extract_strided_slice %420 {offsets = [0, 64], sizes = [2, 32], strides = [1, 1]} : vector<2x96xf32> to vector<2x32xf32>
    %439 = arith.mulf %428, %438 : vector<2x32xf32>
    %440 = arith.addf %437, %439 : vector<2x32xf32>
    %441 = math.tanh %440 : vector<2x32xf32>
    %cst_93 = arith.constant 1.000000e+00 : f32
    %442 = vector.broadcast %cst_93 : f32 to vector<2x32xf32>
    %443 = arith.subf %442, %436 : vector<2x32xf32>
    %444 = arith.mulf %443, %441 : vector<2x32xf32>
    %445 = arith.mulf %436, %376 : vector<2x32xf32>
    %446 = arith.addf %444, %445 : vector<2x32xf32>
    %447 = arith.truncf %415 : vector<2x32xf32> to vector<2x32xbf16>
    %c5_94 = arith.constant 5 : index
    %c0_95 = arith.constant 0 : index
    %c0_96 = arith.constant 0 : index
    %448 = vector.load %arg7[%c5_94, %c0_95, %c0_96] : memref<8x2x32xbf16, #tpu.memory_space<vmem>>, vector<1x2x32xbf16>
    %449 = vector.shape_cast %448 : vector<1x2x32xbf16> to vector<2x32xbf16>
    %450 = vector.shape_cast %447 : vector<2x32xbf16> to vector<1x2x32xbf16>
    tpu.vector_store %arg7[%c5_94, %c0_95, %c0_96], %450 {strides = array<i32>} : memref<8x2x32xbf16, #tpu.memory_space<vmem>>, vector<1x2x32xbf16>,
    %451 = arith.truncf %446 : vector<2x32xf32> to vector<2x32xbf16>
    %c2_97 = arith.constant 2 : index
    %c0_98 = arith.constant 0 : index
    %c0_99 = arith.constant 0 : index
    %452 = vector.load %arg8[%c2_97, %c0_98, %c0_99] : memref<8x2x32xbf16, #tpu.memory_space<vmem>>, vector<1x2x32xbf16>
    %453 = vector.shape_cast %452 : vector<1x2x32xbf16> to vector<2x32xbf16>
    %454 = vector.shape_cast %451 : vector<2x32xbf16> to vector<1x2x32xbf16>
    tpu.vector_store %arg8[%c2_97, %c0_98, %c0_99], %454 {strides = array<i32>} : memref<8x2x32xbf16, #tpu.memory_space<vmem>>, vector<1x2x32xbf16>,
    %455 = vector.extract_strided_slice %15 {offsets = [12, 0], sizes = [2, 96], strides = [1, 1]} : vector<16x96xf32> to vector<2x96xf32>
    %456 = arith.truncf %415 : vector<2x32xf32> to vector<2x32xbf16>
    %cst_100 = arith.constant dense<0.000000e+00> : vector<2x96xf32>
    %457 = tpu.matmul %456, %26, %cst_100 {dimension_numbers = #tpu.dot_dimension_numbers<[1], [0], [0], [1], [0, 0, 1, 1], [], []>} : vector<2x32xbf16>, vector<32x96xbf16>, vector<2x96xf32> -> vector<2x96xf32>
    %458 = vector.broadcast %30 : vector<1x96xf32> to vector<2x96xf32>
    %459 = arith.addf %457, %458 : vector<2x96xf32>
    %460 = vector.extract_strided_slice %455 {offsets = [0, 0], sizes = [2, 32], strides = [1, 1]} : vector<2x96xf32> to vector<2x32xf32>
    %461 = vector.extract_strided_slice %459 {offsets = [0, 0], sizes = [2, 32], strides = [1, 1]} : vector<2x96xf32> to vector<2x32xf32>
    %462 = arith.addf %460, %461 : vector<2x32xf32>
    %463 = arith.negf %462 : vector<2x32xf32>
    %464 = math.exp %463 : vector<2x32xf32>
    %cst_101 = arith.constant 1.000000e+00 : f32
    %465 = vector.broadcast %cst_101 : f32 to vector<2x32xf32>
    %466 = arith.addf %465, %464 : vector<2x32xf32>
    %467 = arith.divf %465, %466 : vector<2x32xf32>
    %468 = vector.extract_strided_slice %455 {offsets = [0, 32], sizes = [2, 32], strides = [1, 1]} : vector<2x96xf32> to vector<2x32xf32>
    %469 = vector.extract_strided_slice %459 {offsets = [0, 32], sizes = [2, 32], strides = [1, 1]} : vector<2x96xf32> to vector<2x32xf32>
    %470 = arith.addf %468, %469 : vector<2x32xf32>
    %471 = arith.negf %470 : vector<2x32xf32>
    %472 = math.exp %471 : vector<2x32xf32>
    %cst_102 = arith.constant 1.000000e+00 : f32
    %473 = vector.broadcast %cst_102 : f32 to vector<2x32xf32>
    %474 = arith.addf %473, %472 : vector<2x32xf32>
    %475 = arith.divf %473, %474 : vector<2x32xf32>
    %476 = vector.extract_strided_slice %455 {offsets = [0, 64], sizes = [2, 32], strides = [1, 1]} : vector<2x96xf32> to vector<2x32xf32>
    %477 = vector.extract_strided_slice %459 {offsets = [0, 64], sizes = [2, 32], strides = [1, 1]} : vector<2x96xf32> to vector<2x32xf32>
    %478 = arith.mulf %467, %477 : vector<2x32xf32>
    %479 = arith.addf %476, %478 : vector<2x32xf32>
    %480 = math.tanh %479 : vector<2x32xf32>
    %cst_103 = arith.constant 1.000000e+00 : f32
    %481 = vector.broadcast %cst_103 : f32 to vector<2x32xf32>
    %482 = arith.subf %481, %475 : vector<2x32xf32>
    %483 = arith.mulf %482, %480 : vector<2x32xf32>
    %484 = arith.mulf %475, %415 : vector<2x32xf32>
    %485 = arith.addf %483, %484 : vector<2x32xf32>
    %486 = vector.extract_strided_slice %24 {offsets = [2, 0], sizes = [2, 96], strides = [1, 1]} : vector<16x96xf32> to vector<2x96xf32>
    %487 = arith.truncf %446 : vector<2x32xf32> to vector<2x32xbf16>
    %cst_104 = arith.constant dense<0.000000e+00> : vector<2x96xf32>
    %488 = tpu.matmul %487, %28, %cst_104 {dimension_numbers = #tpu.dot_dimension_numbers<[1], [0], [0], [1], [0, 0, 1, 1], [], []>} : vector<2x32xbf16>, vector<32x96xbf16>, vector<2x96xf32> -> vector<2x96xf32>
    %489 = vector.broadcast %32 : vector<1x96xf32> to vector<2x96xf32>
    %490 = arith.addf %488, %489 : vector<2x96xf32>
    %491 = vector.extract_strided_slice %486 {offsets = [0, 0], sizes = [2, 32], strides = [1, 1]} : vector<2x96xf32> to vector<2x32xf32>
    %492 = vector.extract_strided_slice %490 {offsets = [0, 0], sizes = [2, 32], strides = [1, 1]} : vector<2x96xf32> to vector<2x32xf32>
    %493 = arith.addf %491, %492 : vector<2x32xf32>
    %494 = arith.negf %493 : vector<2x32xf32>
    %495 = math.exp %494 : vector<2x32xf32>
    %cst_105 = arith.constant 1.000000e+00 : f32
    %496 = vector.broadcast %cst_105 : f32 to vector<2x32xf32>
    %497 = arith.addf %496, %495 : vector<2x32xf32>
    %498 = arith.divf %496, %497 : vector<2x32xf32>
    %499 = vector.extract_strided_slice %486 {offsets = [0, 32], sizes = [2, 32], strides = [1, 1]} : vector<2x96xf32> to vector<2x32xf32>
    %500 = vector.extract_strided_slice %490 {offsets = [0, 32], sizes = [2, 32], strides = [1, 1]} : vector<2x96xf32> to vector<2x32xf32>
    %501 = arith.addf %499, %500 : vector<2x32xf32>
    %502 = arith.negf %501 : vector<2x32xf32>
    %503 = math.exp %502 : vector<2x32xf32>
    %cst_106 = arith.constant 1.000000e+00 : f32
    %504 = vector.broadcast %cst_106 : f32 to vector<2x32xf32>
    %505 = arith.addf %504, %503 : vector<2x32xf32>
    %506 = arith.divf %504, %505 : vector<2x32xf32>
    %507 = vector.extract_strided_slice %486 {offsets = [0, 64], sizes = [2, 32], strides = [1, 1]} : vector<2x96xf32> to vector<2x32xf32>
    %508 = vector.extract_strided_slice %490 {offsets = [0, 64], sizes = [2, 32], strides = [1, 1]} : vector<2x96xf32> to vector<2x32xf32>
    %509 = arith.mulf %498, %508 : vector<2x32xf32>
    %510 = arith.addf %507, %509 : vector<2x32xf32>
    %511 = math.tanh %510 : vector<2x32xf32>
    %cst_107 = arith.constant 1.000000e+00 : f32
    %512 = vector.broadcast %cst_107 : f32 to vector<2x32xf32>
    %513 = arith.subf %512, %506 : vector<2x32xf32>
    %514 = arith.mulf %513, %511 : vector<2x32xf32>
    %515 = arith.mulf %506, %446 : vector<2x32xf32>
    %516 = arith.addf %514, %515 : vector<2x32xf32>
    %517 = arith.truncf %485 : vector<2x32xf32> to vector<2x32xbf16>
    %c6_108 = arith.constant 6 : index
    %c0_109 = arith.constant 0 : index
    %c0_110 = arith.constant 0 : index
    %518 = vector.load %arg7[%c6_108, %c0_109, %c0_110] : memref<8x2x32xbf16, #tpu.memory_space<vmem>>, vector<1x2x32xbf16>
    %519 = vector.shape_cast %518 : vector<1x2x32xbf16> to vector<2x32xbf16>
    %520 = vector.shape_cast %517 : vector<2x32xbf16> to vector<1x2x32xbf16>
    tpu.vector_store %arg7[%c6_108, %c0_109, %c0_110], %520 {strides = array<i32>} : memref<8x2x32xbf16, #tpu.memory_space<vmem>>, vector<1x2x32xbf16>,
    %521 = arith.truncf %516 : vector<2x32xf32> to vector<2x32xbf16>
    %c1_111 = arith.constant 1 : index
    %c0_112 = arith.constant 0 : index
    %c0_113 = arith.constant 0 : index
    %522 = vector.load %arg8[%c1_111, %c0_112, %c0_113] : memref<8x2x32xbf16, #tpu.memory_space<vmem>>, vector<1x2x32xbf16>
    %523 = vector.shape_cast %522 : vector<1x2x32xbf16> to vector<2x32xbf16>
    %524 = vector.shape_cast %521 : vector<2x32xbf16> to vector<1x2x32xbf16>
    tpu.vector_store %arg8[%c1_111, %c0_112, %c0_113], %524 {strides = array<i32>} : memref<8x2x32xbf16, #tpu.memory_space<vmem>>, vector<1x2x32xbf16>,
    %525 = vector.extract_strided_slice %15 {offsets = [14, 0], sizes = [2, 96], strides = [1, 1]} : vector<16x96xf32> to vector<2x96xf32>
    %526 = arith.truncf %485 : vector<2x32xf32> to vector<2x32xbf16>
    %cst_114 = arith.constant dense<0.000000e+00> : vector<2x96xf32>
    %527 = tpu.matmul %526, %26, %cst_114 {dimension_numbers = #tpu.dot_dimension_numbers<[1], [0], [0], [1], [0, 0, 1, 1], [], []>} : vector<2x32xbf16>, vector<32x96xbf16>, vector<2x96xf32> -> vector<2x96xf32>
    %528 = vector.broadcast %30 : vector<1x96xf32> to vector<2x96xf32>
    %529 = arith.addf %527, %528 : vector<2x96xf32>
    %530 = vector.extract_strided_slice %525 {offsets = [0, 0], sizes = [2, 32], strides = [1, 1]} : vector<2x96xf32> to vector<2x32xf32>
    %531 = vector.extract_strided_slice %529 {offsets = [0, 0], sizes = [2, 32], strides = [1, 1]} : vector<2x96xf32> to vector<2x32xf32>
    %532 = arith.addf %530, %531 : vector<2x32xf32>
    %533 = arith.negf %532 : vector<2x32xf32>
    %534 = math.exp %533 : vector<2x32xf32>
    %cst_115 = arith.constant 1.000000e+00 : f32
    %535 = vector.broadcast %cst_115 : f32 to vector<2x32xf32>
    %536 = arith.addf %535, %534 : vector<2x32xf32>
    %537 = arith.divf %535, %536 : vector<2x32xf32>
    %538 = vector.extract_strided_slice %525 {offsets = [0, 32], sizes = [2, 32], strides = [1, 1]} : vector<2x96xf32> to vector<2x32xf32>
    %539 = vector.extract_strided_slice %529 {offsets = [0, 32], sizes = [2, 32], strides = [1, 1]} : vector<2x96xf32> to vector<2x32xf32>
    %540 = arith.addf %538, %539 : vector<2x32xf32>
    %541 = arith.negf %540 : vector<2x32xf32>
    %542 = math.exp %541 : vector<2x32xf32>
    %cst_116 = arith.constant 1.000000e+00 : f32
    %543 = vector.broadcast %cst_116 : f32 to vector<2x32xf32>
    %544 = arith.addf %543, %542 : vector<2x32xf32>
    %545 = arith.divf %543, %544 : vector<2x32xf32>
    %546 = vector.extract_strided_slice %525 {offsets = [0, 64], sizes = [2, 32], strides = [1, 1]} : vector<2x96xf32> to vector<2x32xf32>
    %547 = vector.extract_strided_slice %529 {offsets = [0, 64], sizes = [2, 32], strides = [1, 1]} : vector<2x96xf32> to vector<2x32xf32>
    %548 = arith.mulf %537, %547 : vector<2x32xf32>
    %549 = arith.addf %546, %548 : vector<2x32xf32>
    %550 = math.tanh %549 : vector<2x32xf32>
    %cst_117 = arith.constant 1.000000e+00 : f32
    %551 = vector.broadcast %cst_117 : f32 to vector<2x32xf32>
    %552 = arith.subf %551, %545 : vector<2x32xf32>
    %553 = arith.mulf %552, %550 : vector<2x32xf32>
    %554 = arith.mulf %545, %485 : vector<2x32xf32>
    %555 = arith.addf %553, %554 : vector<2x32xf32>
    %556 = vector.extract_strided_slice %24 {offsets = [0, 0], sizes = [2, 96], strides = [1, 1]} : vector<16x96xf32> to vector<2x96xf32>
    %557 = arith.truncf %516 : vector<2x32xf32> to vector<2x32xbf16>
    %cst_118 = arith.constant dense<0.000000e+00> : vector<2x96xf32>
    %558 = tpu.matmul %557, %28, %cst_118 {dimension_numbers = #tpu.dot_dimension_numbers<[1], [0], [0], [1], [0, 0, 1, 1], [], []>} : vector<2x32xbf16>, vector<32x96xbf16>, vector<2x96xf32> -> vector<2x96xf32>
    %559 = vector.broadcast %32 : vector<1x96xf32> to vector<2x96xf32>
    %560 = arith.addf %558, %559 : vector<2x96xf32>
    %561 = vector.extract_strided_slice %556 {offsets = [0, 0], sizes = [2, 32], strides = [1, 1]} : vector<2x96xf32> to vector<2x32xf32>
    %562 = vector.extract_strided_slice %560 {offsets = [0, 0], sizes = [2, 32], strides = [1, 1]} : vector<2x96xf32> to vector<2x32xf32>
    %563 = arith.addf %561, %562 : vector<2x32xf32>
    %564 = arith.negf %563 : vector<2x32xf32>
    %565 = math.exp %564 : vector<2x32xf32>
    %cst_119 = arith.constant 1.000000e+00 : f32
    %566 = vector.broadcast %cst_119 : f32 to vector<2x32xf32>
    %567 = arith.addf %566, %565 : vector<2x32xf32>
    %568 = arith.divf %566, %567 : vector<2x32xf32>
    %569 = vector.extract_strided_slice %556 {offsets = [0, 32], sizes = [2, 32], strides = [1, 1]} : vector<2x96xf32> to vector<2x32xf32>
    %570 = vector.extract_strided_slice %560 {offsets = [0, 32], sizes = [2, 32], strides = [1, 1]} : vector<2x96xf32> to vector<2x32xf32>
    %571 = arith.addf %569, %570 : vector<2x32xf32>
    %572 = arith.negf %571 : vector<2x32xf32>
    %573 = math.exp %572 : vector<2x32xf32>
    %cst_120 = arith.constant 1.000000e+00 : f32
    %574 = vector.broadcast %cst_120 : f32 to vector<2x32xf32>
    %575 = arith.addf %574, %573 : vector<2x32xf32>
    %576 = arith.divf %574, %575 : vector<2x32xf32>
    %577 = vector.extract_strided_slice %556 {offsets = [0, 64], sizes = [2, 32], strides = [1, 1]} : vector<2x96xf32> to vector<2x32xf32>
    %578 = vector.extract_strided_slice %560 {offsets = [0, 64], sizes = [2, 32], strides = [1, 1]} : vector<2x96xf32> to vector<2x32xf32>
    %579 = arith.mulf %568, %578 : vector<2x32xf32>
    %580 = arith.addf %577, %579 : vector<2x32xf32>
    %581 = math.tanh %580 : vector<2x32xf32>
    %cst_121 = arith.constant 1.000000e+00 : f32
    %582 = vector.broadcast %cst_121 : f32 to vector<2x32xf32>
    %583 = arith.subf %582, %576 : vector<2x32xf32>
    %584 = arith.mulf %583, %581 : vector<2x32xf32>
    %585 = arith.mulf %576, %516 : vector<2x32xf32>
    %586 = arith.addf %584, %585 : vector<2x32xf32>
    %587 = arith.truncf %555 : vector<2x32xf32> to vector<2x32xbf16>
    %c7_122 = arith.constant 7 : index
    %c0_123 = arith.constant 0 : index
    %c0_124 = arith.constant 0 : index
    %588 = vector.load %arg7[%c7_122, %c0_123, %c0_124] : memref<8x2x32xbf16, #tpu.memory_space<vmem>>, vector<1x2x32xbf16>
    %589 = vector.shape_cast %588 : vector<1x2x32xbf16> to vector<2x32xbf16>
    %590 = vector.shape_cast %587 : vector<2x32xbf16> to vector<1x2x32xbf16>
    tpu.vector_store %arg7[%c7_122, %c0_123, %c0_124], %590 {strides = array<i32>} : memref<8x2x32xbf16, #tpu.memory_space<vmem>>, vector<1x2x32xbf16>,
    %591 = arith.truncf %586 : vector<2x32xf32> to vector<2x32xbf16>
    %c0_125 = arith.constant 0 : index
    %c0_126 = arith.constant 0 : index
    %c0_127 = arith.constant 0 : index
    %592 = vector.load %arg8[%c0_125, %c0_126, %c0_127] : memref<8x2x32xbf16, #tpu.memory_space<vmem>>, vector<1x2x32xbf16>
    %593 = vector.shape_cast %592 : vector<1x2x32xbf16> to vector<2x32xbf16>
    %594 = vector.shape_cast %591 : vector<2x32xbf16> to vector<1x2x32xbf16>
    tpu.vector_store %arg8[%c0_125, %c0_126, %c0_127], %594 {strides = array<i32>} : memref<8x2x32xbf16, #tpu.memory_space<vmem>>, vector<1x2x32xbf16>,
    %c0_128 = arith.constant 0 : index
    %c0_129 = arith.constant 0 : index
    %595 = vector.load %arg9[%c0_128, %c0_129] : memref<2x32xf32, #tpu.memory_space<vmem>>, vector<2x32xf32>
    tpu.vector_store %arg9[%c0_128, %c0_129], %555 {strides = array<i32>} : memref<2x32xf32, #tpu.memory_space<vmem>>, vector<2x32xf32>,
    %c0_130 = arith.constant 0 : index
    %c0_131 = arith.constant 0 : index
    %596 = vector.load %arg10[%c0_130, %c0_131] : memref<2x32xf32, #tpu.memory_space<vmem>>, vector<2x32xf32>
    tpu.vector_store %arg10[%c0_130, %c0_131], %586 {strides = array<i32>} : memref<2x32xf32, #tpu.memory_space<vmem>>, vector<2x32xf32>,
    return
  }
  func.func @transform_0(%arg0: i32) -> (i32, i32, i32) {
    %c0_i32 = arith.constant 0 : i32
    %c0_i32_0 = arith.constant 0 : i32
    %c0_i32_1 = arith.constant 0 : i32
    return %arg0, %c0_i32, %c0_i32_0 : i32, i32, i32
  }
  func.func @transform_1(%arg0: i32) -> (i32, i32, i32) {
    %c0_i32 = arith.constant 0 : i32
    %0 = arith.subi %c0_i32, %arg0 : i32
    %c0_i32_0 = arith.constant 0 : i32
    %c0_i32_1 = arith.constant 0 : i32
    %c0_i32_2 = arith.constant 0 : i32
    return %0, %c0_i32_0, %c0_i32_1 : i32, i32, i32
  }
  func.func @transform_2(%arg0: i32) -> (i32, i32, i32) {
    %c0_i32 = arith.constant 0 : i32
    %c0_i32_0 = arith.constant 0 : i32
    %c0_i32_1 = arith.constant 0 : i32
    %c0_i32_2 = arith.constant 0 : i32
    return %c0_i32, %c0_i32_0, %c0_i32_1 : i32, i32, i32
  }
  func.func @transform_3(%arg0: i32) -> (i32, i32, i32) {
    %c0_i32 = arith.constant 0 : i32
    %c0_i32_0 = arith.constant 0 : i32
    %c0_i32_1 = arith.constant 0 : i32
    %c0_i32_2 = arith.constant 0 : i32
    return %c0_i32, %c0_i32_0, %c0_i32_1 : i32, i32, i32
  }
  func.func @transform_4(%arg0: i32) -> (i32, i32, i32) {
    %c0_i32 = arith.constant 0 : i32
    %c0_i32_0 = arith.constant 0 : i32
    %c0_i32_1 = arith.constant 0 : i32
    %c0_i32_2 = arith.constant 0 : i32
    return %c0_i32, %c0_i32_0, %c0_i32_1 : i32, i32, i32
  }
  func.func @transform_5(%arg0: i32) -> (i32, i32, i32) {
    %c0_i32 = arith.constant 0 : i32
    %c0_i32_0 = arith.constant 0 : i32
    %c0_i32_1 = arith.constant 0 : i32
    %c0_i32_2 = arith.constant 0 : i32
    return %c0_i32, %c0_i32_0, %c0_i32_1 : i32, i32, i32
  }
  func.func @transform_6(%arg0: i32) -> (i32, i32, i32) {
    %c0_i32 = arith.constant 0 : i32
    %c0_i32_0 = arith.constant 0 : i32
    %c0_i32_1 = arith.constant 0 : i32
    return %arg0, %c0_i32, %c0_i32_0 : i32, i32, i32
  }
  func.func @transform_7(%arg0: i32) -> (i32, i32, i32) {
    %c0_i32 = arith.constant 0 : i32
    %0 = arith.subi %c0_i32, %arg0 : i32
    %c0_i32_0 = arith.constant 0 : i32
    %c0_i32_1 = arith.constant 0 : i32
    %c0_i32_2 = arith.constant 0 : i32
    return %0, %c0_i32_0, %c0_i32_1 : i32, i32, i32
  }
}

module attributes {stable_mosaic.version = 11 : i64} {
  func.func @bigru_kernel(%arg0: i32, %arg1: memref<8x2x32xbf16, #tpu.memory_space<vmem>>, %arg2: memref<8x2x32xbf16, #tpu.memory_space<vmem>>, %arg3: memref<8x2x32xbf16, #tpu.memory_space<vmem>>, %arg4: memref<8x2x32xbf16, #tpu.memory_space<vmem>>, %arg5: memref<2x64x96xbf16, #tpu.memory_space<vmem>>, %arg6: memref<2x1x96xf32, #tpu.memory_space<vmem>>, %arg7: memref<2x32x96xbf16, #tpu.memory_space<vmem>>, %arg8: memref<2x1x96xf32, #tpu.memory_space<vmem>>, %arg9: memref<8x2x32xf32, #tpu.memory_space<vmem>>, %arg10: memref<8x2x32xf32, #tpu.memory_space<vmem>>, %arg11: memref<2x32xf32, #tpu.memory_space<vmem>>, %arg12: memref<2x32xf32, #tpu.memory_space<vmem>>) attributes {dimension_semantics = [#tpu.dimension_semantics<arbitrary>], iteration_bounds = array<i64: 1>, scalar_prefetch = 0 : i64, scratch_operands = 2 : i64, tpu.core_type = #tpu.core_type<tc>, window_params = [{transform_indices = @transform_0, window_bounds = array<i64: 8, 2, 32>}, {transform_indices = @transform_1, window_bounds = array<i64: 8, 2, 32>}, {transform_indices = @transform_2, window_bounds = array<i64: 8, 2, 32>}, {transform_indices = @transform_3, window_bounds = array<i64: 8, 2, 32>}, {pipeline_mode = #tpu.pipeline_mode<synchronous>, transform_indices = @transform_4, window_bounds = array<i64: 2, 64, 96>}, {pipeline_mode = #tpu.pipeline_mode<synchronous>, transform_indices = @transform_5, window_bounds = array<i64: 2, 1, 96>}, {pipeline_mode = #tpu.pipeline_mode<synchronous>, transform_indices = @transform_6, window_bounds = array<i64: 2, 32, 96>}, {pipeline_mode = #tpu.pipeline_mode<synchronous>, transform_indices = @transform_7, window_bounds = array<i64: 2, 1, 96>}, {transform_indices = @transform_8, window_bounds = array<i64: 8, 2, 32>}, {transform_indices = @transform_9, window_bounds = array<i64: 8, 2, 32>}]} {
    %c0_i32 = arith.constant 0 : i32
    %0 = arith.cmpi eq, %arg0, %c0_i32 : i32
    %1 = arith.extui %0 : i1 to i32
    %c0_i32_0 = arith.constant 0 : i32
    %2 = arith.cmpi ne, %1, %c0_i32_0 : i32
    scf.if %2 {
      %cst_140 = arith.constant 0.000000e+00 : f32
      %593 = vector.broadcast %cst_140 : f32 to vector<2x32xf32>
      %c0_141 = arith.constant 0 : index
      %c0_142 = arith.constant 0 : index
      %594 = vector.load %arg11[%c0_141, %c0_142] : memref<2x32xf32, #tpu.memory_space<vmem>>, vector<2x32xf32>
      tpu.vector_store %arg11[%c0_141, %c0_142], %593 {strides = array<i32>} : memref<2x32xf32, #tpu.memory_space<vmem>>, vector<2x32xf32>,
      %cst_143 = arith.constant 0.000000e+00 : f32
      %595 = vector.broadcast %cst_143 : f32 to vector<2x32xf32>
      %c0_144 = arith.constant 0 : index
      %c0_145 = arith.constant 0 : index
      %596 = vector.load %arg12[%c0_144, %c0_145] : memref<2x32xf32, #tpu.memory_space<vmem>>, vector<2x32xf32>
      tpu.vector_store %arg12[%c0_144, %c0_145], %595 {strides = array<i32>} : memref<2x32xf32, #tpu.memory_space<vmem>>, vector<2x32xf32>,
    } else {
    }
    %c0 = arith.constant 0 : index
    %c0_1 = arith.constant 0 : index
    %c0_2 = arith.constant 0 : index
    %3 = vector.load %arg5[%c0, %c0_1, %c0_2] : memref<2x64x96xbf16, #tpu.memory_space<vmem>>, vector<2x64x96xbf16>
    %c0_3 = arith.constant 0 : index
    %c0_4 = arith.constant 0 : index
    %c0_5 = arith.constant 0 : index
    %4 = vector.load %arg6[%c0_3, %c0_4, %c0_5] : memref<2x1x96xf32, #tpu.memory_space<vmem>>, vector<2x1x96xf32>
    %c0_6 = arith.constant 0 : index
    %c0_7 = arith.constant 0 : index
    %c0_8 = arith.constant 0 : index
    %5 = vector.load %arg7[%c0_6, %c0_7, %c0_8] : memref<2x32x96xbf16, #tpu.memory_space<vmem>>, vector<2x32x96xbf16>
    %c0_9 = arith.constant 0 : index
    %c0_10 = arith.constant 0 : index
    %c0_11 = arith.constant 0 : index
    %6 = vector.load %arg8[%c0_9, %c0_10, %c0_11] : memref<2x1x96xf32, #tpu.memory_space<vmem>>, vector<2x1x96xf32>
    %c0_12 = arith.constant 0 : index
    %c0_13 = arith.constant 0 : index
    %c0_14 = arith.constant 0 : index
    %7 = vector.load %arg1[%c0_12, %c0_13, %c0_14] : memref<8x2x32xbf16, #tpu.memory_space<vmem>>, vector<8x2x32xbf16>
    %8 = vector.shape_cast %7 : vector<8x2x32xbf16> to vector<16x32xbf16>
    %9 = vector.extract_strided_slice %3 {offsets = [0, 0, 0], sizes = [1, 32, 96], strides = [1, 1, 1]} : vector<2x64x96xbf16> to vector<1x32x96xbf16>
    %10 = vector.shape_cast %9 : vector<1x32x96xbf16> to vector<32x96xbf16>
    %cst = arith.constant dense<0.000000e+00> : vector<16x96xf32>
    %11 = tpu.matmul %8, %10, %cst {dimension_numbers = #tpu.dot_dimension_numbers<[1], [0], [0], [1], [0, 0, 1, 1], [], []>} : vector<16x32xbf16>, vector<32x96xbf16>, vector<16x96xf32> -> vector<16x96xf32>
    %c0_15 = arith.constant 0 : index
    %c0_16 = arith.constant 0 : index
    %c0_17 = arith.constant 0 : index
    %12 = vector.load %arg2[%c0_15, %c0_16, %c0_17] : memref<8x2x32xbf16, #tpu.memory_space<vmem>>, vector<8x2x32xbf16>
    %13 = vector.shape_cast %12 : vector<8x2x32xbf16> to vector<16x32xbf16>
    %14 = vector.extract_strided_slice %3 {offsets = [0, 32, 0], sizes = [1, 32, 96], strides = [1, 1, 1]} : vector<2x64x96xbf16> to vector<1x32x96xbf16>
    %15 = vector.shape_cast %14 : vector<1x32x96xbf16> to vector<32x96xbf16>
    %cst_18 = arith.constant dense<0.000000e+00> : vector<16x96xf32>
    %16 = tpu.matmul %13, %15, %cst_18 {dimension_numbers = #tpu.dot_dimension_numbers<[1], [0], [0], [1], [0, 0, 1, 1], [], []>} : vector<16x32xbf16>, vector<32x96xbf16>, vector<16x96xf32> -> vector<16x96xf32>
    %17 = arith.addf %11, %16 : vector<16x96xf32>
    %18 = vector.extract_strided_slice %4 {offsets = [0, 0, 0], sizes = [1, 1, 96], strides = [1, 1, 1]} : vector<2x1x96xf32> to vector<1x1x96xf32>
    %19 = vector.shape_cast %18 : vector<1x1x96xf32> to vector<1x96xf32>
    %20 = vector.broadcast %19 : vector<1x96xf32> to vector<16x96xf32>
    %21 = arith.addf %17, %20 : vector<16x96xf32>
    %c0_19 = arith.constant 0 : index
    %c0_20 = arith.constant 0 : index
    %c0_21 = arith.constant 0 : index
    %22 = vector.load %arg3[%c0_19, %c0_20, %c0_21] : memref<8x2x32xbf16, #tpu.memory_space<vmem>>, vector<8x2x32xbf16>
    %23 = vector.shape_cast %22 : vector<8x2x32xbf16> to vector<16x32xbf16>
    %24 = vector.extract_strided_slice %3 {offsets = [1, 0, 0], sizes = [1, 32, 96], strides = [1, 1, 1]} : vector<2x64x96xbf16> to vector<1x32x96xbf16>
    %25 = vector.shape_cast %24 : vector<1x32x96xbf16> to vector<32x96xbf16>
    %cst_22 = arith.constant dense<0.000000e+00> : vector<16x96xf32>
    %26 = tpu.matmul %23, %25, %cst_22 {dimension_numbers = #tpu.dot_dimension_numbers<[1], [0], [0], [1], [0, 0, 1, 1], [], []>} : vector<16x32xbf16>, vector<32x96xbf16>, vector<16x96xf32> -> vector<16x96xf32>
    %c0_23 = arith.constant 0 : index
    %c0_24 = arith.constant 0 : index
    %c0_25 = arith.constant 0 : index
    %27 = vector.load %arg4[%c0_23, %c0_24, %c0_25] : memref<8x2x32xbf16, #tpu.memory_space<vmem>>, vector<8x2x32xbf16>
    %28 = vector.shape_cast %27 : vector<8x2x32xbf16> to vector<16x32xbf16>
    %29 = vector.extract_strided_slice %3 {offsets = [1, 32, 0], sizes = [1, 32, 96], strides = [1, 1, 1]} : vector<2x64x96xbf16> to vector<1x32x96xbf16>
    %30 = vector.shape_cast %29 : vector<1x32x96xbf16> to vector<32x96xbf16>
    %cst_26 = arith.constant dense<0.000000e+00> : vector<16x96xf32>
    %31 = tpu.matmul %28, %30, %cst_26 {dimension_numbers = #tpu.dot_dimension_numbers<[1], [0], [0], [1], [0, 0, 1, 1], [], []>} : vector<16x32xbf16>, vector<32x96xbf16>, vector<16x96xf32> -> vector<16x96xf32>
    %32 = arith.addf %26, %31 : vector<16x96xf32>
    %33 = vector.extract_strided_slice %4 {offsets = [1, 0, 0], sizes = [1, 1, 96], strides = [1, 1, 1]} : vector<2x1x96xf32> to vector<1x1x96xf32>
    %34 = vector.shape_cast %33 : vector<1x1x96xf32> to vector<1x96xf32>
    %35 = vector.broadcast %34 : vector<1x96xf32> to vector<16x96xf32>
    %36 = arith.addf %32, %35 : vector<16x96xf32>
    %37 = vector.extract_strided_slice %5 {offsets = [0, 0, 0], sizes = [1, 32, 96], strides = [1, 1, 1]} : vector<2x32x96xbf16> to vector<1x32x96xbf16>
    %38 = vector.shape_cast %37 : vector<1x32x96xbf16> to vector<32x96xbf16>
    %39 = vector.extract_strided_slice %5 {offsets = [1, 0, 0], sizes = [1, 32, 96], strides = [1, 1, 1]} : vector<2x32x96xbf16> to vector<1x32x96xbf16>
    %40 = vector.shape_cast %39 : vector<1x32x96xbf16> to vector<32x96xbf16>
    %41 = vector.extract_strided_slice %6 {offsets = [0, 0, 0], sizes = [1, 1, 96], strides = [1, 1, 1]} : vector<2x1x96xf32> to vector<1x1x96xf32>
    %42 = vector.shape_cast %41 : vector<1x1x96xf32> to vector<1x96xf32>
    %43 = vector.extract_strided_slice %6 {offsets = [1, 0, 0], sizes = [1, 1, 96], strides = [1, 1, 1]} : vector<2x1x96xf32> to vector<1x1x96xf32>
    %44 = vector.shape_cast %43 : vector<1x1x96xf32> to vector<1x96xf32>
    %c0_27 = arith.constant 0 : index
    %c0_28 = arith.constant 0 : index
    %45 = vector.load %arg11[%c0_27, %c0_28] : memref<2x32xf32, #tpu.memory_space<vmem>>, vector<2x32xf32>
    %c0_29 = arith.constant 0 : index
    %c0_30 = arith.constant 0 : index
    %46 = vector.load %arg12[%c0_29, %c0_30] : memref<2x32xf32, #tpu.memory_space<vmem>>, vector<2x32xf32>
    %47 = vector.extract_strided_slice %21 {offsets = [0, 0], sizes = [2, 96], strides = [1, 1]} : vector<16x96xf32> to vector<2x96xf32>
    %48 = arith.truncf %45 : vector<2x32xf32> to vector<2x32xbf16>
    %cst_31 = arith.constant dense<0.000000e+00> : vector<2x96xf32>
    %49 = tpu.matmul %48, %38, %cst_31 {dimension_numbers = #tpu.dot_dimension_numbers<[1], [0], [0], [1], [0, 0, 1, 1], [], []>} : vector<2x32xbf16>, vector<32x96xbf16>, vector<2x96xf32> -> vector<2x96xf32>
    %50 = vector.broadcast %42 : vector<1x96xf32> to vector<2x96xf32>
    %51 = arith.addf %49, %50 : vector<2x96xf32>
    %52 = vector.extract_strided_slice %47 {offsets = [0, 0], sizes = [2, 32], strides = [1, 1]} : vector<2x96xf32> to vector<2x32xf32>
    %53 = vector.extract_strided_slice %51 {offsets = [0, 0], sizes = [2, 32], strides = [1, 1]} : vector<2x96xf32> to vector<2x32xf32>
    %54 = arith.addf %52, %53 : vector<2x32xf32>
    %55 = arith.negf %54 : vector<2x32xf32>
    %56 = math.exp %55 : vector<2x32xf32>
    %cst_32 = arith.constant 1.000000e+00 : f32
    %57 = vector.broadcast %cst_32 : f32 to vector<2x32xf32>
    %58 = arith.addf %57, %56 : vector<2x32xf32>
    %59 = arith.divf %57, %58 : vector<2x32xf32>
    %60 = vector.extract_strided_slice %47 {offsets = [0, 32], sizes = [2, 32], strides = [1, 1]} : vector<2x96xf32> to vector<2x32xf32>
    %61 = vector.extract_strided_slice %51 {offsets = [0, 32], sizes = [2, 32], strides = [1, 1]} : vector<2x96xf32> to vector<2x32xf32>
    %62 = arith.addf %60, %61 : vector<2x32xf32>
    %63 = arith.negf %62 : vector<2x32xf32>
    %64 = math.exp %63 : vector<2x32xf32>
    %cst_33 = arith.constant 1.000000e+00 : f32
    %65 = vector.broadcast %cst_33 : f32 to vector<2x32xf32>
    %66 = arith.addf %65, %64 : vector<2x32xf32>
    %67 = arith.divf %65, %66 : vector<2x32xf32>
    %68 = vector.extract_strided_slice %47 {offsets = [0, 64], sizes = [2, 32], strides = [1, 1]} : vector<2x96xf32> to vector<2x32xf32>
    %69 = vector.extract_strided_slice %51 {offsets = [0, 64], sizes = [2, 32], strides = [1, 1]} : vector<2x96xf32> to vector<2x32xf32>
    %70 = arith.mulf %59, %69 : vector<2x32xf32>
    %71 = arith.addf %68, %70 : vector<2x32xf32>
    %72 = math.tanh %71 : vector<2x32xf32>
    %cst_34 = arith.constant 1.000000e+00 : f32
    %73 = vector.broadcast %cst_34 : f32 to vector<2x32xf32>
    %74 = arith.subf %73, %67 : vector<2x32xf32>
    %75 = arith.mulf %74, %72 : vector<2x32xf32>
    %76 = arith.mulf %67, %45 : vector<2x32xf32>
    %77 = arith.addf %75, %76 : vector<2x32xf32>
    %78 = vector.extract_strided_slice %36 {offsets = [14, 0], sizes = [2, 96], strides = [1, 1]} : vector<16x96xf32> to vector<2x96xf32>
    %79 = arith.truncf %46 : vector<2x32xf32> to vector<2x32xbf16>
    %cst_35 = arith.constant dense<0.000000e+00> : vector<2x96xf32>
    %80 = tpu.matmul %79, %40, %cst_35 {dimension_numbers = #tpu.dot_dimension_numbers<[1], [0], [0], [1], [0, 0, 1, 1], [], []>} : vector<2x32xbf16>, vector<32x96xbf16>, vector<2x96xf32> -> vector<2x96xf32>
    %81 = vector.broadcast %44 : vector<1x96xf32> to vector<2x96xf32>
    %82 = arith.addf %80, %81 : vector<2x96xf32>
    %83 = vector.extract_strided_slice %78 {offsets = [0, 0], sizes = [2, 32], strides = [1, 1]} : vector<2x96xf32> to vector<2x32xf32>
    %84 = vector.extract_strided_slice %82 {offsets = [0, 0], sizes = [2, 32], strides = [1, 1]} : vector<2x96xf32> to vector<2x32xf32>
    %85 = arith.addf %83, %84 : vector<2x32xf32>
    %86 = arith.negf %85 : vector<2x32xf32>
    %87 = math.exp %86 : vector<2x32xf32>
    %cst_36 = arith.constant 1.000000e+00 : f32
    %88 = vector.broadcast %cst_36 : f32 to vector<2x32xf32>
    %89 = arith.addf %88, %87 : vector<2x32xf32>
    %90 = arith.divf %88, %89 : vector<2x32xf32>
    %91 = vector.extract_strided_slice %78 {offsets = [0, 32], sizes = [2, 32], strides = [1, 1]} : vector<2x96xf32> to vector<2x32xf32>
    %92 = vector.extract_strided_slice %82 {offsets = [0, 32], sizes = [2, 32], strides = [1, 1]} : vector<2x96xf32> to vector<2x32xf32>
    %93 = arith.addf %91, %92 : vector<2x32xf32>
    %94 = arith.negf %93 : vector<2x32xf32>
    %95 = math.exp %94 : vector<2x32xf32>
    %cst_37 = arith.constant 1.000000e+00 : f32
    %96 = vector.broadcast %cst_37 : f32 to vector<2x32xf32>
    %97 = arith.addf %96, %95 : vector<2x32xf32>
    %98 = arith.divf %96, %97 : vector<2x32xf32>
    %99 = vector.extract_strided_slice %78 {offsets = [0, 64], sizes = [2, 32], strides = [1, 1]} : vector<2x96xf32> to vector<2x32xf32>
    %100 = vector.extract_strided_slice %82 {offsets = [0, 64], sizes = [2, 32], strides = [1, 1]} : vector<2x96xf32> to vector<2x32xf32>
    %101 = arith.mulf %90, %100 : vector<2x32xf32>
    %102 = arith.addf %99, %101 : vector<2x32xf32>
    %103 = math.tanh %102 : vector<2x32xf32>
    %cst_38 = arith.constant 1.000000e+00 : f32
    %104 = vector.broadcast %cst_38 : f32 to vector<2x32xf32>
    %105 = arith.subf %104, %98 : vector<2x32xf32>
    %106 = arith.mulf %105, %103 : vector<2x32xf32>
    %107 = arith.mulf %98, %46 : vector<2x32xf32>
    %108 = arith.addf %106, %107 : vector<2x32xf32>
    %c0_39 = arith.constant 0 : index
    %c0_40 = arith.constant 0 : index
    %c0_41 = arith.constant 0 : index
    %109 = vector.load %arg9[%c0_39, %c0_40, %c0_41] : memref<8x2x32xf32, #tpu.memory_space<vmem>>, vector<1x2x32xf32>
    %110 = vector.shape_cast %109 : vector<1x2x32xf32> to vector<2x32xf32>
    %111 = vector.shape_cast %77 : vector<2x32xf32> to vector<1x2x32xf32>
    tpu.vector_store %arg9[%c0_39, %c0_40, %c0_41], %111 {strides = array<i32>} : memref<8x2x32xf32, #tpu.memory_space<vmem>>, vector<1x2x32xf32>,
    %c7 = arith.constant 7 : index
    %c0_42 = arith.constant 0 : index
    %c0_43 = arith.constant 0 : index
    %112 = vector.load %arg10[%c7, %c0_42, %c0_43] : memref<8x2x32xf32, #tpu.memory_space<vmem>>, vector<1x2x32xf32>
    %113 = vector.shape_cast %112 : vector<1x2x32xf32> to vector<2x32xf32>
    %114 = vector.shape_cast %108 : vector<2x32xf32> to vector<1x2x32xf32>
    tpu.vector_store %arg10[%c7, %c0_42, %c0_43], %114 {strides = array<i32>} : memref<8x2x32xf32, #tpu.memory_space<vmem>>, vector<1x2x32xf32>,
    %115 = vector.extract_strided_slice %21 {offsets = [2, 0], sizes = [2, 96], strides = [1, 1]} : vector<16x96xf32> to vector<2x96xf32>
    %116 = arith.truncf %77 : vector<2x32xf32> to vector<2x32xbf16>
    %cst_44 = arith.constant dense<0.000000e+00> : vector<2x96xf32>
    %117 = tpu.matmul %116, %38, %cst_44 {dimension_numbers = #tpu.dot_dimension_numbers<[1], [0], [0], [1], [0, 0, 1, 1], [], []>} : vector<2x32xbf16>, vector<32x96xbf16>, vector<2x96xf32> -> vector<2x96xf32>
    %118 = vector.broadcast %42 : vector<1x96xf32> to vector<2x96xf32>
    %119 = arith.addf %117, %118 : vector<2x96xf32>
    %120 = vector.extract_strided_slice %115 {offsets = [0, 0], sizes = [2, 32], strides = [1, 1]} : vector<2x96xf32> to vector<2x32xf32>
    %121 = vector.extract_strided_slice %119 {offsets = [0, 0], sizes = [2, 32], strides = [1, 1]} : vector<2x96xf32> to vector<2x32xf32>
    %122 = arith.addf %120, %121 : vector<2x32xf32>
    %123 = arith.negf %122 : vector<2x32xf32>
    %124 = math.exp %123 : vector<2x32xf32>
    %cst_45 = arith.constant 1.000000e+00 : f32
    %125 = vector.broadcast %cst_45 : f32 to vector<2x32xf32>
    %126 = arith.addf %125, %124 : vector<2x32xf32>
    %127 = arith.divf %125, %126 : vector<2x32xf32>
    %128 = vector.extract_strided_slice %115 {offsets = [0, 32], sizes = [2, 32], strides = [1, 1]} : vector<2x96xf32> to vector<2x32xf32>
    %129 = vector.extract_strided_slice %119 {offsets = [0, 32], sizes = [2, 32], strides = [1, 1]} : vector<2x96xf32> to vector<2x32xf32>
    %130 = arith.addf %128, %129 : vector<2x32xf32>
    %131 = arith.negf %130 : vector<2x32xf32>
    %132 = math.exp %131 : vector<2x32xf32>
    %cst_46 = arith.constant 1.000000e+00 : f32
    %133 = vector.broadcast %cst_46 : f32 to vector<2x32xf32>
    %134 = arith.addf %133, %132 : vector<2x32xf32>
    %135 = arith.divf %133, %134 : vector<2x32xf32>
    %136 = vector.extract_strided_slice %115 {offsets = [0, 64], sizes = [2, 32], strides = [1, 1]} : vector<2x96xf32> to vector<2x32xf32>
    %137 = vector.extract_strided_slice %119 {offsets = [0, 64], sizes = [2, 32], strides = [1, 1]} : vector<2x96xf32> to vector<2x32xf32>
    %138 = arith.mulf %127, %137 : vector<2x32xf32>
    %139 = arith.addf %136, %138 : vector<2x32xf32>
    %140 = math.tanh %139 : vector<2x32xf32>
    %cst_47 = arith.constant 1.000000e+00 : f32
    %141 = vector.broadcast %cst_47 : f32 to vector<2x32xf32>
    %142 = arith.subf %141, %135 : vector<2x32xf32>
    %143 = arith.mulf %142, %140 : vector<2x32xf32>
    %144 = arith.mulf %135, %77 : vector<2x32xf32>
    %145 = arith.addf %143, %144 : vector<2x32xf32>
    %146 = vector.extract_strided_slice %36 {offsets = [12, 0], sizes = [2, 96], strides = [1, 1]} : vector<16x96xf32> to vector<2x96xf32>
    %147 = arith.truncf %108 : vector<2x32xf32> to vector<2x32xbf16>
    %cst_48 = arith.constant dense<0.000000e+00> : vector<2x96xf32>
    %148 = tpu.matmul %147, %40, %cst_48 {dimension_numbers = #tpu.dot_dimension_numbers<[1], [0], [0], [1], [0, 0, 1, 1], [], []>} : vector<2x32xbf16>, vector<32x96xbf16>, vector<2x96xf32> -> vector<2x96xf32>
    %149 = vector.broadcast %44 : vector<1x96xf32> to vector<2x96xf32>
    %150 = arith.addf %148, %149 : vector<2x96xf32>
    %151 = vector.extract_strided_slice %146 {offsets = [0, 0], sizes = [2, 32], strides = [1, 1]} : vector<2x96xf32> to vector<2x32xf32>
    %152 = vector.extract_strided_slice %150 {offsets = [0, 0], sizes = [2, 32], strides = [1, 1]} : vector<2x96xf32> to vector<2x32xf32>
    %153 = arith.addf %151, %152 : vector<2x32xf32>
    %154 = arith.negf %153 : vector<2x32xf32>
    %155 = math.exp %154 : vector<2x32xf32>
    %cst_49 = arith.constant 1.000000e+00 : f32
    %156 = vector.broadcast %cst_49 : f32 to vector<2x32xf32>
    %157 = arith.addf %156, %155 : vector<2x32xf32>
    %158 = arith.divf %156, %157 : vector<2x32xf32>
    %159 = vector.extract_strided_slice %146 {offsets = [0, 32], sizes = [2, 32], strides = [1, 1]} : vector<2x96xf32> to vector<2x32xf32>
    %160 = vector.extract_strided_slice %150 {offsets = [0, 32], sizes = [2, 32], strides = [1, 1]} : vector<2x96xf32> to vector<2x32xf32>
    %161 = arith.addf %159, %160 : vector<2x32xf32>
    %162 = arith.negf %161 : vector<2x32xf32>
    %163 = math.exp %162 : vector<2x32xf32>
    %cst_50 = arith.constant 1.000000e+00 : f32
    %164 = vector.broadcast %cst_50 : f32 to vector<2x32xf32>
    %165 = arith.addf %164, %163 : vector<2x32xf32>
    %166 = arith.divf %164, %165 : vector<2x32xf32>
    %167 = vector.extract_strided_slice %146 {offsets = [0, 64], sizes = [2, 32], strides = [1, 1]} : vector<2x96xf32> to vector<2x32xf32>
    %168 = vector.extract_strided_slice %150 {offsets = [0, 64], sizes = [2, 32], strides = [1, 1]} : vector<2x96xf32> to vector<2x32xf32>
    %169 = arith.mulf %158, %168 : vector<2x32xf32>
    %170 = arith.addf %167, %169 : vector<2x32xf32>
    %171 = math.tanh %170 : vector<2x32xf32>
    %cst_51 = arith.constant 1.000000e+00 : f32
    %172 = vector.broadcast %cst_51 : f32 to vector<2x32xf32>
    %173 = arith.subf %172, %166 : vector<2x32xf32>
    %174 = arith.mulf %173, %171 : vector<2x32xf32>
    %175 = arith.mulf %166, %108 : vector<2x32xf32>
    %176 = arith.addf %174, %175 : vector<2x32xf32>
    %c1 = arith.constant 1 : index
    %c0_52 = arith.constant 0 : index
    %c0_53 = arith.constant 0 : index
    %177 = vector.load %arg9[%c1, %c0_52, %c0_53] : memref<8x2x32xf32, #tpu.memory_space<vmem>>, vector<1x2x32xf32>
    %178 = vector.shape_cast %177 : vector<1x2x32xf32> to vector<2x32xf32>
    %179 = vector.shape_cast %145 : vector<2x32xf32> to vector<1x2x32xf32>
    tpu.vector_store %arg9[%c1, %c0_52, %c0_53], %179 {strides = array<i32>} : memref<8x2x32xf32, #tpu.memory_space<vmem>>, vector<1x2x32xf32>,
    %c6 = arith.constant 6 : index
    %c0_54 = arith.constant 0 : index
    %c0_55 = arith.constant 0 : index
    %180 = vector.load %arg10[%c6, %c0_54, %c0_55] : memref<8x2x32xf32, #tpu.memory_space<vmem>>, vector<1x2x32xf32>
    %181 = vector.shape_cast %180 : vector<1x2x32xf32> to vector<2x32xf32>
    %182 = vector.shape_cast %176 : vector<2x32xf32> to vector<1x2x32xf32>
    tpu.vector_store %arg10[%c6, %c0_54, %c0_55], %182 {strides = array<i32>} : memref<8x2x32xf32, #tpu.memory_space<vmem>>, vector<1x2x32xf32>,
    %183 = vector.extract_strided_slice %21 {offsets = [4, 0], sizes = [2, 96], strides = [1, 1]} : vector<16x96xf32> to vector<2x96xf32>
    %184 = arith.truncf %145 : vector<2x32xf32> to vector<2x32xbf16>
    %cst_56 = arith.constant dense<0.000000e+00> : vector<2x96xf32>
    %185 = tpu.matmul %184, %38, %cst_56 {dimension_numbers = #tpu.dot_dimension_numbers<[1], [0], [0], [1], [0, 0, 1, 1], [], []>} : vector<2x32xbf16>, vector<32x96xbf16>, vector<2x96xf32> -> vector<2x96xf32>
    %186 = vector.broadcast %42 : vector<1x96xf32> to vector<2x96xf32>
    %187 = arith.addf %185, %186 : vector<2x96xf32>
    %188 = vector.extract_strided_slice %183 {offsets = [0, 0], sizes = [2, 32], strides = [1, 1]} : vector<2x96xf32> to vector<2x32xf32>
    %189 = vector.extract_strided_slice %187 {offsets = [0, 0], sizes = [2, 32], strides = [1, 1]} : vector<2x96xf32> to vector<2x32xf32>
    %190 = arith.addf %188, %189 : vector<2x32xf32>
    %191 = arith.negf %190 : vector<2x32xf32>
    %192 = math.exp %191 : vector<2x32xf32>
    %cst_57 = arith.constant 1.000000e+00 : f32
    %193 = vector.broadcast %cst_57 : f32 to vector<2x32xf32>
    %194 = arith.addf %193, %192 : vector<2x32xf32>
    %195 = arith.divf %193, %194 : vector<2x32xf32>
    %196 = vector.extract_strided_slice %183 {offsets = [0, 32], sizes = [2, 32], strides = [1, 1]} : vector<2x96xf32> to vector<2x32xf32>
    %197 = vector.extract_strided_slice %187 {offsets = [0, 32], sizes = [2, 32], strides = [1, 1]} : vector<2x96xf32> to vector<2x32xf32>
    %198 = arith.addf %196, %197 : vector<2x32xf32>
    %199 = arith.negf %198 : vector<2x32xf32>
    %200 = math.exp %199 : vector<2x32xf32>
    %cst_58 = arith.constant 1.000000e+00 : f32
    %201 = vector.broadcast %cst_58 : f32 to vector<2x32xf32>
    %202 = arith.addf %201, %200 : vector<2x32xf32>
    %203 = arith.divf %201, %202 : vector<2x32xf32>
    %204 = vector.extract_strided_slice %183 {offsets = [0, 64], sizes = [2, 32], strides = [1, 1]} : vector<2x96xf32> to vector<2x32xf32>
    %205 = vector.extract_strided_slice %187 {offsets = [0, 64], sizes = [2, 32], strides = [1, 1]} : vector<2x96xf32> to vector<2x32xf32>
    %206 = arith.mulf %195, %205 : vector<2x32xf32>
    %207 = arith.addf %204, %206 : vector<2x32xf32>
    %208 = math.tanh %207 : vector<2x32xf32>
    %cst_59 = arith.constant 1.000000e+00 : f32
    %209 = vector.broadcast %cst_59 : f32 to vector<2x32xf32>
    %210 = arith.subf %209, %203 : vector<2x32xf32>
    %211 = arith.mulf %210, %208 : vector<2x32xf32>
    %212 = arith.mulf %203, %145 : vector<2x32xf32>
    %213 = arith.addf %211, %212 : vector<2x32xf32>
    %214 = vector.extract_strided_slice %36 {offsets = [10, 0], sizes = [2, 96], strides = [1, 1]} : vector<16x96xf32> to vector<2x96xf32>
    %215 = arith.truncf %176 : vector<2x32xf32> to vector<2x32xbf16>
    %cst_60 = arith.constant dense<0.000000e+00> : vector<2x96xf32>
    %216 = tpu.matmul %215, %40, %cst_60 {dimension_numbers = #tpu.dot_dimension_numbers<[1], [0], [0], [1], [0, 0, 1, 1], [], []>} : vector<2x32xbf16>, vector<32x96xbf16>, vector<2x96xf32> -> vector<2x96xf32>
    %217 = vector.broadcast %44 : vector<1x96xf32> to vector<2x96xf32>
    %218 = arith.addf %216, %217 : vector<2x96xf32>
    %219 = vector.extract_strided_slice %214 {offsets = [0, 0], sizes = [2, 32], strides = [1, 1]} : vector<2x96xf32> to vector<2x32xf32>
    %220 = vector.extract_strided_slice %218 {offsets = [0, 0], sizes = [2, 32], strides = [1, 1]} : vector<2x96xf32> to vector<2x32xf32>
    %221 = arith.addf %219, %220 : vector<2x32xf32>
    %222 = arith.negf %221 : vector<2x32xf32>
    %223 = math.exp %222 : vector<2x32xf32>
    %cst_61 = arith.constant 1.000000e+00 : f32
    %224 = vector.broadcast %cst_61 : f32 to vector<2x32xf32>
    %225 = arith.addf %224, %223 : vector<2x32xf32>
    %226 = arith.divf %224, %225 : vector<2x32xf32>
    %227 = vector.extract_strided_slice %214 {offsets = [0, 32], sizes = [2, 32], strides = [1, 1]} : vector<2x96xf32> to vector<2x32xf32>
    %228 = vector.extract_strided_slice %218 {offsets = [0, 32], sizes = [2, 32], strides = [1, 1]} : vector<2x96xf32> to vector<2x32xf32>
    %229 = arith.addf %227, %228 : vector<2x32xf32>
    %230 = arith.negf %229 : vector<2x32xf32>
    %231 = math.exp %230 : vector<2x32xf32>
    %cst_62 = arith.constant 1.000000e+00 : f32
    %232 = vector.broadcast %cst_62 : f32 to vector<2x32xf32>
    %233 = arith.addf %232, %231 : vector<2x32xf32>
    %234 = arith.divf %232, %233 : vector<2x32xf32>
    %235 = vector.extract_strided_slice %214 {offsets = [0, 64], sizes = [2, 32], strides = [1, 1]} : vector<2x96xf32> to vector<2x32xf32>
    %236 = vector.extract_strided_slice %218 {offsets = [0, 64], sizes = [2, 32], strides = [1, 1]} : vector<2x96xf32> to vector<2x32xf32>
    %237 = arith.mulf %226, %236 : vector<2x32xf32>
    %238 = arith.addf %235, %237 : vector<2x32xf32>
    %239 = math.tanh %238 : vector<2x32xf32>
    %cst_63 = arith.constant 1.000000e+00 : f32
    %240 = vector.broadcast %cst_63 : f32 to vector<2x32xf32>
    %241 = arith.subf %240, %234 : vector<2x32xf32>
    %242 = arith.mulf %241, %239 : vector<2x32xf32>
    %243 = arith.mulf %234, %176 : vector<2x32xf32>
    %244 = arith.addf %242, %243 : vector<2x32xf32>
    %c2 = arith.constant 2 : index
    %c0_64 = arith.constant 0 : index
    %c0_65 = arith.constant 0 : index
    %245 = vector.load %arg9[%c2, %c0_64, %c0_65] : memref<8x2x32xf32, #tpu.memory_space<vmem>>, vector<1x2x32xf32>
    %246 = vector.shape_cast %245 : vector<1x2x32xf32> to vector<2x32xf32>
    %247 = vector.shape_cast %213 : vector<2x32xf32> to vector<1x2x32xf32>
    tpu.vector_store %arg9[%c2, %c0_64, %c0_65], %247 {strides = array<i32>} : memref<8x2x32xf32, #tpu.memory_space<vmem>>, vector<1x2x32xf32>,
    %c5 = arith.constant 5 : index
    %c0_66 = arith.constant 0 : index
    %c0_67 = arith.constant 0 : index
    %248 = vector.load %arg10[%c5, %c0_66, %c0_67] : memref<8x2x32xf32, #tpu.memory_space<vmem>>, vector<1x2x32xf32>
    %249 = vector.shape_cast %248 : vector<1x2x32xf32> to vector<2x32xf32>
    %250 = vector.shape_cast %244 : vector<2x32xf32> to vector<1x2x32xf32>
    tpu.vector_store %arg10[%c5, %c0_66, %c0_67], %250 {strides = array<i32>} : memref<8x2x32xf32, #tpu.memory_space<vmem>>, vector<1x2x32xf32>,
    %251 = vector.extract_strided_slice %21 {offsets = [6, 0], sizes = [2, 96], strides = [1, 1]} : vector<16x96xf32> to vector<2x96xf32>
    %252 = arith.truncf %213 : vector<2x32xf32> to vector<2x32xbf16>
    %cst_68 = arith.constant dense<0.000000e+00> : vector<2x96xf32>
    %253 = tpu.matmul %252, %38, %cst_68 {dimension_numbers = #tpu.dot_dimension_numbers<[1], [0], [0], [1], [0, 0, 1, 1], [], []>} : vector<2x32xbf16>, vector<32x96xbf16>, vector<2x96xf32> -> vector<2x96xf32>
    %254 = vector.broadcast %42 : vector<1x96xf32> to vector<2x96xf32>
    %255 = arith.addf %253, %254 : vector<2x96xf32>
    %256 = vector.extract_strided_slice %251 {offsets = [0, 0], sizes = [2, 32], strides = [1, 1]} : vector<2x96xf32> to vector<2x32xf32>
    %257 = vector.extract_strided_slice %255 {offsets = [0, 0], sizes = [2, 32], strides = [1, 1]} : vector<2x96xf32> to vector<2x32xf32>
    %258 = arith.addf %256, %257 : vector<2x32xf32>
    %259 = arith.negf %258 : vector<2x32xf32>
    %260 = math.exp %259 : vector<2x32xf32>
    %cst_69 = arith.constant 1.000000e+00 : f32
    %261 = vector.broadcast %cst_69 : f32 to vector<2x32xf32>
    %262 = arith.addf %261, %260 : vector<2x32xf32>
    %263 = arith.divf %261, %262 : vector<2x32xf32>
    %264 = vector.extract_strided_slice %251 {offsets = [0, 32], sizes = [2, 32], strides = [1, 1]} : vector<2x96xf32> to vector<2x32xf32>
    %265 = vector.extract_strided_slice %255 {offsets = [0, 32], sizes = [2, 32], strides = [1, 1]} : vector<2x96xf32> to vector<2x32xf32>
    %266 = arith.addf %264, %265 : vector<2x32xf32>
    %267 = arith.negf %266 : vector<2x32xf32>
    %268 = math.exp %267 : vector<2x32xf32>
    %cst_70 = arith.constant 1.000000e+00 : f32
    %269 = vector.broadcast %cst_70 : f32 to vector<2x32xf32>
    %270 = arith.addf %269, %268 : vector<2x32xf32>
    %271 = arith.divf %269, %270 : vector<2x32xf32>
    %272 = vector.extract_strided_slice %251 {offsets = [0, 64], sizes = [2, 32], strides = [1, 1]} : vector<2x96xf32> to vector<2x32xf32>
    %273 = vector.extract_strided_slice %255 {offsets = [0, 64], sizes = [2, 32], strides = [1, 1]} : vector<2x96xf32> to vector<2x32xf32>
    %274 = arith.mulf %263, %273 : vector<2x32xf32>
    %275 = arith.addf %272, %274 : vector<2x32xf32>
    %276 = math.tanh %275 : vector<2x32xf32>
    %cst_71 = arith.constant 1.000000e+00 : f32
    %277 = vector.broadcast %cst_71 : f32 to vector<2x32xf32>
    %278 = arith.subf %277, %271 : vector<2x32xf32>
    %279 = arith.mulf %278, %276 : vector<2x32xf32>
    %280 = arith.mulf %271, %213 : vector<2x32xf32>
    %281 = arith.addf %279, %280 : vector<2x32xf32>
    %282 = vector.extract_strided_slice %36 {offsets = [8, 0], sizes = [2, 96], strides = [1, 1]} : vector<16x96xf32> to vector<2x96xf32>
    %283 = arith.truncf %244 : vector<2x32xf32> to vector<2x32xbf16>
    %cst_72 = arith.constant dense<0.000000e+00> : vector<2x96xf32>
    %284 = tpu.matmul %283, %40, %cst_72 {dimension_numbers = #tpu.dot_dimension_numbers<[1], [0], [0], [1], [0, 0, 1, 1], [], []>} : vector<2x32xbf16>, vector<32x96xbf16>, vector<2x96xf32> -> vector<2x96xf32>
    %285 = vector.broadcast %44 : vector<1x96xf32> to vector<2x96xf32>
    %286 = arith.addf %284, %285 : vector<2x96xf32>
    %287 = vector.extract_strided_slice %282 {offsets = [0, 0], sizes = [2, 32], strides = [1, 1]} : vector<2x96xf32> to vector<2x32xf32>
    %288 = vector.extract_strided_slice %286 {offsets = [0, 0], sizes = [2, 32], strides = [1, 1]} : vector<2x96xf32> to vector<2x32xf32>
    %289 = arith.addf %287, %288 : vector<2x32xf32>
    %290 = arith.negf %289 : vector<2x32xf32>
    %291 = math.exp %290 : vector<2x32xf32>
    %cst_73 = arith.constant 1.000000e+00 : f32
    %292 = vector.broadcast %cst_73 : f32 to vector<2x32xf32>
    %293 = arith.addf %292, %291 : vector<2x32xf32>
    %294 = arith.divf %292, %293 : vector<2x32xf32>
    %295 = vector.extract_strided_slice %282 {offsets = [0, 32], sizes = [2, 32], strides = [1, 1]} : vector<2x96xf32> to vector<2x32xf32>
    %296 = vector.extract_strided_slice %286 {offsets = [0, 32], sizes = [2, 32], strides = [1, 1]} : vector<2x96xf32> to vector<2x32xf32>
    %297 = arith.addf %295, %296 : vector<2x32xf32>
    %298 = arith.negf %297 : vector<2x32xf32>
    %299 = math.exp %298 : vector<2x32xf32>
    %cst_74 = arith.constant 1.000000e+00 : f32
    %300 = vector.broadcast %cst_74 : f32 to vector<2x32xf32>
    %301 = arith.addf %300, %299 : vector<2x32xf32>
    %302 = arith.divf %300, %301 : vector<2x32xf32>
    %303 = vector.extract_strided_slice %282 {offsets = [0, 64], sizes = [2, 32], strides = [1, 1]} : vector<2x96xf32> to vector<2x32xf32>
    %304 = vector.extract_strided_slice %286 {offsets = [0, 64], sizes = [2, 32], strides = [1, 1]} : vector<2x96xf32> to vector<2x32xf32>
    %305 = arith.mulf %294, %304 : vector<2x32xf32>
    %306 = arith.addf %303, %305 : vector<2x32xf32>
    %307 = math.tanh %306 : vector<2x32xf32>
    %cst_75 = arith.constant 1.000000e+00 : f32
    %308 = vector.broadcast %cst_75 : f32 to vector<2x32xf32>
    %309 = arith.subf %308, %302 : vector<2x32xf32>
    %310 = arith.mulf %309, %307 : vector<2x32xf32>
    %311 = arith.mulf %302, %244 : vector<2x32xf32>
    %312 = arith.addf %310, %311 : vector<2x32xf32>
    %c3 = arith.constant 3 : index
    %c0_76 = arith.constant 0 : index
    %c0_77 = arith.constant 0 : index
    %313 = vector.load %arg9[%c3, %c0_76, %c0_77] : memref<8x2x32xf32, #tpu.memory_space<vmem>>, vector<1x2x32xf32>
    %314 = vector.shape_cast %313 : vector<1x2x32xf32> to vector<2x32xf32>
    %315 = vector.shape_cast %281 : vector<2x32xf32> to vector<1x2x32xf32>
    tpu.vector_store %arg9[%c3, %c0_76, %c0_77], %315 {strides = array<i32>} : memref<8x2x32xf32, #tpu.memory_space<vmem>>, vector<1x2x32xf32>,
    %c4 = arith.constant 4 : index
    %c0_78 = arith.constant 0 : index
    %c0_79 = arith.constant 0 : index
    %316 = vector.load %arg10[%c4, %c0_78, %c0_79] : memref<8x2x32xf32, #tpu.memory_space<vmem>>, vector<1x2x32xf32>
    %317 = vector.shape_cast %316 : vector<1x2x32xf32> to vector<2x32xf32>
    %318 = vector.shape_cast %312 : vector<2x32xf32> to vector<1x2x32xf32>
    tpu.vector_store %arg10[%c4, %c0_78, %c0_79], %318 {strides = array<i32>} : memref<8x2x32xf32, #tpu.memory_space<vmem>>, vector<1x2x32xf32>,
    %319 = vector.extract_strided_slice %21 {offsets = [8, 0], sizes = [2, 96], strides = [1, 1]} : vector<16x96xf32> to vector<2x96xf32>
    %320 = arith.truncf %281 : vector<2x32xf32> to vector<2x32xbf16>
    %cst_80 = arith.constant dense<0.000000e+00> : vector<2x96xf32>
    %321 = tpu.matmul %320, %38, %cst_80 {dimension_numbers = #tpu.dot_dimension_numbers<[1], [0], [0], [1], [0, 0, 1, 1], [], []>} : vector<2x32xbf16>, vector<32x96xbf16>, vector<2x96xf32> -> vector<2x96xf32>
    %322 = vector.broadcast %42 : vector<1x96xf32> to vector<2x96xf32>
    %323 = arith.addf %321, %322 : vector<2x96xf32>
    %324 = vector.extract_strided_slice %319 {offsets = [0, 0], sizes = [2, 32], strides = [1, 1]} : vector<2x96xf32> to vector<2x32xf32>
    %325 = vector.extract_strided_slice %323 {offsets = [0, 0], sizes = [2, 32], strides = [1, 1]} : vector<2x96xf32> to vector<2x32xf32>
    %326 = arith.addf %324, %325 : vector<2x32xf32>
    %327 = arith.negf %326 : vector<2x32xf32>
    %328 = math.exp %327 : vector<2x32xf32>
    %cst_81 = arith.constant 1.000000e+00 : f32
    %329 = vector.broadcast %cst_81 : f32 to vector<2x32xf32>
    %330 = arith.addf %329, %328 : vector<2x32xf32>
    %331 = arith.divf %329, %330 : vector<2x32xf32>
    %332 = vector.extract_strided_slice %319 {offsets = [0, 32], sizes = [2, 32], strides = [1, 1]} : vector<2x96xf32> to vector<2x32xf32>
    %333 = vector.extract_strided_slice %323 {offsets = [0, 32], sizes = [2, 32], strides = [1, 1]} : vector<2x96xf32> to vector<2x32xf32>
    %334 = arith.addf %332, %333 : vector<2x32xf32>
    %335 = arith.negf %334 : vector<2x32xf32>
    %336 = math.exp %335 : vector<2x32xf32>
    %cst_82 = arith.constant 1.000000e+00 : f32
    %337 = vector.broadcast %cst_82 : f32 to vector<2x32xf32>
    %338 = arith.addf %337, %336 : vector<2x32xf32>
    %339 = arith.divf %337, %338 : vector<2x32xf32>
    %340 = vector.extract_strided_slice %319 {offsets = [0, 64], sizes = [2, 32], strides = [1, 1]} : vector<2x96xf32> to vector<2x32xf32>
    %341 = vector.extract_strided_slice %323 {offsets = [0, 64], sizes = [2, 32], strides = [1, 1]} : vector<2x96xf32> to vector<2x32xf32>
    %342 = arith.mulf %331, %341 : vector<2x32xf32>
    %343 = arith.addf %340, %342 : vector<2x32xf32>
    %344 = math.tanh %343 : vector<2x32xf32>
    %cst_83 = arith.constant 1.000000e+00 : f32
    %345 = vector.broadcast %cst_83 : f32 to vector<2x32xf32>
    %346 = arith.subf %345, %339 : vector<2x32xf32>
    %347 = arith.mulf %346, %344 : vector<2x32xf32>
    %348 = arith.mulf %339, %281 : vector<2x32xf32>
    %349 = arith.addf %347, %348 : vector<2x32xf32>
    %350 = vector.extract_strided_slice %36 {offsets = [6, 0], sizes = [2, 96], strides = [1, 1]} : vector<16x96xf32> to vector<2x96xf32>
    %351 = arith.truncf %312 : vector<2x32xf32> to vector<2x32xbf16>
    %cst_84 = arith.constant dense<0.000000e+00> : vector<2x96xf32>
    %352 = tpu.matmul %351, %40, %cst_84 {dimension_numbers = #tpu.dot_dimension_numbers<[1], [0], [0], [1], [0, 0, 1, 1], [], []>} : vector<2x32xbf16>, vector<32x96xbf16>, vector<2x96xf32> -> vector<2x96xf32>
    %353 = vector.broadcast %44 : vector<1x96xf32> to vector<2x96xf32>
    %354 = arith.addf %352, %353 : vector<2x96xf32>
    %355 = vector.extract_strided_slice %350 {offsets = [0, 0], sizes = [2, 32], strides = [1, 1]} : vector<2x96xf32> to vector<2x32xf32>
    %356 = vector.extract_strided_slice %354 {offsets = [0, 0], sizes = [2, 32], strides = [1, 1]} : vector<2x96xf32> to vector<2x32xf32>
    %357 = arith.addf %355, %356 : vector<2x32xf32>
    %358 = arith.negf %357 : vector<2x32xf32>
    %359 = math.exp %358 : vector<2x32xf32>
    %cst_85 = arith.constant 1.000000e+00 : f32
    %360 = vector.broadcast %cst_85 : f32 to vector<2x32xf32>
    %361 = arith.addf %360, %359 : vector<2x32xf32>
    %362 = arith.divf %360, %361 : vector<2x32xf32>
    %363 = vector.extract_strided_slice %350 {offsets = [0, 32], sizes = [2, 32], strides = [1, 1]} : vector<2x96xf32> to vector<2x32xf32>
    %364 = vector.extract_strided_slice %354 {offsets = [0, 32], sizes = [2, 32], strides = [1, 1]} : vector<2x96xf32> to vector<2x32xf32>
    %365 = arith.addf %363, %364 : vector<2x32xf32>
    %366 = arith.negf %365 : vector<2x32xf32>
    %367 = math.exp %366 : vector<2x32xf32>
    %cst_86 = arith.constant 1.000000e+00 : f32
    %368 = vector.broadcast %cst_86 : f32 to vector<2x32xf32>
    %369 = arith.addf %368, %367 : vector<2x32xf32>
    %370 = arith.divf %368, %369 : vector<2x32xf32>
    %371 = vector.extract_strided_slice %350 {offsets = [0, 64], sizes = [2, 32], strides = [1, 1]} : vector<2x96xf32> to vector<2x32xf32>
    %372 = vector.extract_strided_slice %354 {offsets = [0, 64], sizes = [2, 32], strides = [1, 1]} : vector<2x96xf32> to vector<2x32xf32>
    %373 = arith.mulf %362, %372 : vector<2x32xf32>
    %374 = arith.addf %371, %373 : vector<2x32xf32>
    %375 = math.tanh %374 : vector<2x32xf32>
    %cst_87 = arith.constant 1.000000e+00 : f32
    %376 = vector.broadcast %cst_87 : f32 to vector<2x32xf32>
    %377 = arith.subf %376, %370 : vector<2x32xf32>
    %378 = arith.mulf %377, %375 : vector<2x32xf32>
    %379 = arith.mulf %370, %312 : vector<2x32xf32>
    %380 = arith.addf %378, %379 : vector<2x32xf32>
    %c4_88 = arith.constant 4 : index
    %c0_89 = arith.constant 0 : index
    %c0_90 = arith.constant 0 : index
    %381 = vector.load %arg9[%c4_88, %c0_89, %c0_90] : memref<8x2x32xf32, #tpu.memory_space<vmem>>, vector<1x2x32xf32>
    %382 = vector.shape_cast %381 : vector<1x2x32xf32> to vector<2x32xf32>
    %383 = vector.shape_cast %349 : vector<2x32xf32> to vector<1x2x32xf32>
    tpu.vector_store %arg9[%c4_88, %c0_89, %c0_90], %383 {strides = array<i32>} : memref<8x2x32xf32, #tpu.memory_space<vmem>>, vector<1x2x32xf32>,
    %c3_91 = arith.constant 3 : index
    %c0_92 = arith.constant 0 : index
    %c0_93 = arith.constant 0 : index
    %384 = vector.load %arg10[%c3_91, %c0_92, %c0_93] : memref<8x2x32xf32, #tpu.memory_space<vmem>>, vector<1x2x32xf32>
    %385 = vector.shape_cast %384 : vector<1x2x32xf32> to vector<2x32xf32>
    %386 = vector.shape_cast %380 : vector<2x32xf32> to vector<1x2x32xf32>
    tpu.vector_store %arg10[%c3_91, %c0_92, %c0_93], %386 {strides = array<i32>} : memref<8x2x32xf32, #tpu.memory_space<vmem>>, vector<1x2x32xf32>,
    %387 = vector.extract_strided_slice %21 {offsets = [10, 0], sizes = [2, 96], strides = [1, 1]} : vector<16x96xf32> to vector<2x96xf32>
    %388 = arith.truncf %349 : vector<2x32xf32> to vector<2x32xbf16>
    %cst_94 = arith.constant dense<0.000000e+00> : vector<2x96xf32>
    %389 = tpu.matmul %388, %38, %cst_94 {dimension_numbers = #tpu.dot_dimension_numbers<[1], [0], [0], [1], [0, 0, 1, 1], [], []>} : vector<2x32xbf16>, vector<32x96xbf16>, vector<2x96xf32> -> vector<2x96xf32>
    %390 = vector.broadcast %42 : vector<1x96xf32> to vector<2x96xf32>
    %391 = arith.addf %389, %390 : vector<2x96xf32>
    %392 = vector.extract_strided_slice %387 {offsets = [0, 0], sizes = [2, 32], strides = [1, 1]} : vector<2x96xf32> to vector<2x32xf32>
    %393 = vector.extract_strided_slice %391 {offsets = [0, 0], sizes = [2, 32], strides = [1, 1]} : vector<2x96xf32> to vector<2x32xf32>
    %394 = arith.addf %392, %393 : vector<2x32xf32>
    %395 = arith.negf %394 : vector<2x32xf32>
    %396 = math.exp %395 : vector<2x32xf32>
    %cst_95 = arith.constant 1.000000e+00 : f32
    %397 = vector.broadcast %cst_95 : f32 to vector<2x32xf32>
    %398 = arith.addf %397, %396 : vector<2x32xf32>
    %399 = arith.divf %397, %398 : vector<2x32xf32>
    %400 = vector.extract_strided_slice %387 {offsets = [0, 32], sizes = [2, 32], strides = [1, 1]} : vector<2x96xf32> to vector<2x32xf32>
    %401 = vector.extract_strided_slice %391 {offsets = [0, 32], sizes = [2, 32], strides = [1, 1]} : vector<2x96xf32> to vector<2x32xf32>
    %402 = arith.addf %400, %401 : vector<2x32xf32>
    %403 = arith.negf %402 : vector<2x32xf32>
    %404 = math.exp %403 : vector<2x32xf32>
    %cst_96 = arith.constant 1.000000e+00 : f32
    %405 = vector.broadcast %cst_96 : f32 to vector<2x32xf32>
    %406 = arith.addf %405, %404 : vector<2x32xf32>
    %407 = arith.divf %405, %406 : vector<2x32xf32>
    %408 = vector.extract_strided_slice %387 {offsets = [0, 64], sizes = [2, 32], strides = [1, 1]} : vector<2x96xf32> to vector<2x32xf32>
    %409 = vector.extract_strided_slice %391 {offsets = [0, 64], sizes = [2, 32], strides = [1, 1]} : vector<2x96xf32> to vector<2x32xf32>
    %410 = arith.mulf %399, %409 : vector<2x32xf32>
    %411 = arith.addf %408, %410 : vector<2x32xf32>
    %412 = math.tanh %411 : vector<2x32xf32>
    %cst_97 = arith.constant 1.000000e+00 : f32
    %413 = vector.broadcast %cst_97 : f32 to vector<2x32xf32>
    %414 = arith.subf %413, %407 : vector<2x32xf32>
    %415 = arith.mulf %414, %412 : vector<2x32xf32>
    %416 = arith.mulf %407, %349 : vector<2x32xf32>
    %417 = arith.addf %415, %416 : vector<2x32xf32>
    %418 = vector.extract_strided_slice %36 {offsets = [4, 0], sizes = [2, 96], strides = [1, 1]} : vector<16x96xf32> to vector<2x96xf32>
    %419 = arith.truncf %380 : vector<2x32xf32> to vector<2x32xbf16>
    %cst_98 = arith.constant dense<0.000000e+00> : vector<2x96xf32>
    %420 = tpu.matmul %419, %40, %cst_98 {dimension_numbers = #tpu.dot_dimension_numbers<[1], [0], [0], [1], [0, 0, 1, 1], [], []>} : vector<2x32xbf16>, vector<32x96xbf16>, vector<2x96xf32> -> vector<2x96xf32>
    %421 = vector.broadcast %44 : vector<1x96xf32> to vector<2x96xf32>
    %422 = arith.addf %420, %421 : vector<2x96xf32>
    %423 = vector.extract_strided_slice %418 {offsets = [0, 0], sizes = [2, 32], strides = [1, 1]} : vector<2x96xf32> to vector<2x32xf32>
    %424 = vector.extract_strided_slice %422 {offsets = [0, 0], sizes = [2, 32], strides = [1, 1]} : vector<2x96xf32> to vector<2x32xf32>
    %425 = arith.addf %423, %424 : vector<2x32xf32>
    %426 = arith.negf %425 : vector<2x32xf32>
    %427 = math.exp %426 : vector<2x32xf32>
    %cst_99 = arith.constant 1.000000e+00 : f32
    %428 = vector.broadcast %cst_99 : f32 to vector<2x32xf32>
    %429 = arith.addf %428, %427 : vector<2x32xf32>
    %430 = arith.divf %428, %429 : vector<2x32xf32>
    %431 = vector.extract_strided_slice %418 {offsets = [0, 32], sizes = [2, 32], strides = [1, 1]} : vector<2x96xf32> to vector<2x32xf32>
    %432 = vector.extract_strided_slice %422 {offsets = [0, 32], sizes = [2, 32], strides = [1, 1]} : vector<2x96xf32> to vector<2x32xf32>
    %433 = arith.addf %431, %432 : vector<2x32xf32>
    %434 = arith.negf %433 : vector<2x32xf32>
    %435 = math.exp %434 : vector<2x32xf32>
    %cst_100 = arith.constant 1.000000e+00 : f32
    %436 = vector.broadcast %cst_100 : f32 to vector<2x32xf32>
    %437 = arith.addf %436, %435 : vector<2x32xf32>
    %438 = arith.divf %436, %437 : vector<2x32xf32>
    %439 = vector.extract_strided_slice %418 {offsets = [0, 64], sizes = [2, 32], strides = [1, 1]} : vector<2x96xf32> to vector<2x32xf32>
    %440 = vector.extract_strided_slice %422 {offsets = [0, 64], sizes = [2, 32], strides = [1, 1]} : vector<2x96xf32> to vector<2x32xf32>
    %441 = arith.mulf %430, %440 : vector<2x32xf32>
    %442 = arith.addf %439, %441 : vector<2x32xf32>
    %443 = math.tanh %442 : vector<2x32xf32>
    %cst_101 = arith.constant 1.000000e+00 : f32
    %444 = vector.broadcast %cst_101 : f32 to vector<2x32xf32>
    %445 = arith.subf %444, %438 : vector<2x32xf32>
    %446 = arith.mulf %445, %443 : vector<2x32xf32>
    %447 = arith.mulf %438, %380 : vector<2x32xf32>
    %448 = arith.addf %446, %447 : vector<2x32xf32>
    %c5_102 = arith.constant 5 : index
    %c0_103 = arith.constant 0 : index
    %c0_104 = arith.constant 0 : index
    %449 = vector.load %arg9[%c5_102, %c0_103, %c0_104] : memref<8x2x32xf32, #tpu.memory_space<vmem>>, vector<1x2x32xf32>
    %450 = vector.shape_cast %449 : vector<1x2x32xf32> to vector<2x32xf32>
    %451 = vector.shape_cast %417 : vector<2x32xf32> to vector<1x2x32xf32>
    tpu.vector_store %arg9[%c5_102, %c0_103, %c0_104], %451 {strides = array<i32>} : memref<8x2x32xf32, #tpu.memory_space<vmem>>, vector<1x2x32xf32>,
    %c2_105 = arith.constant 2 : index
    %c0_106 = arith.constant 0 : index
    %c0_107 = arith.constant 0 : index
    %452 = vector.load %arg10[%c2_105, %c0_106, %c0_107] : memref<8x2x32xf32, #tpu.memory_space<vmem>>, vector<1x2x32xf32>
    %453 = vector.shape_cast %452 : vector<1x2x32xf32> to vector<2x32xf32>
    %454 = vector.shape_cast %448 : vector<2x32xf32> to vector<1x2x32xf32>
    tpu.vector_store %arg10[%c2_105, %c0_106, %c0_107], %454 {strides = array<i32>} : memref<8x2x32xf32, #tpu.memory_space<vmem>>, vector<1x2x32xf32>,
    %455 = vector.extract_strided_slice %21 {offsets = [12, 0], sizes = [2, 96], strides = [1, 1]} : vector<16x96xf32> to vector<2x96xf32>
    %456 = arith.truncf %417 : vector<2x32xf32> to vector<2x32xbf16>
    %cst_108 = arith.constant dense<0.000000e+00> : vector<2x96xf32>
    %457 = tpu.matmul %456, %38, %cst_108 {dimension_numbers = #tpu.dot_dimension_numbers<[1], [0], [0], [1], [0, 0, 1, 1], [], []>} : vector<2x32xbf16>, vector<32x96xbf16>, vector<2x96xf32> -> vector<2x96xf32>
    %458 = vector.broadcast %42 : vector<1x96xf32> to vector<2x96xf32>
    %459 = arith.addf %457, %458 : vector<2x96xf32>
    %460 = vector.extract_strided_slice %455 {offsets = [0, 0], sizes = [2, 32], strides = [1, 1]} : vector<2x96xf32> to vector<2x32xf32>
    %461 = vector.extract_strided_slice %459 {offsets = [0, 0], sizes = [2, 32], strides = [1, 1]} : vector<2x96xf32> to vector<2x32xf32>
    %462 = arith.addf %460, %461 : vector<2x32xf32>
    %463 = arith.negf %462 : vector<2x32xf32>
    %464 = math.exp %463 : vector<2x32xf32>
    %cst_109 = arith.constant 1.000000e+00 : f32
    %465 = vector.broadcast %cst_109 : f32 to vector<2x32xf32>
    %466 = arith.addf %465, %464 : vector<2x32xf32>
    %467 = arith.divf %465, %466 : vector<2x32xf32>
    %468 = vector.extract_strided_slice %455 {offsets = [0, 32], sizes = [2, 32], strides = [1, 1]} : vector<2x96xf32> to vector<2x32xf32>
    %469 = vector.extract_strided_slice %459 {offsets = [0, 32], sizes = [2, 32], strides = [1, 1]} : vector<2x96xf32> to vector<2x32xf32>
    %470 = arith.addf %468, %469 : vector<2x32xf32>
    %471 = arith.negf %470 : vector<2x32xf32>
    %472 = math.exp %471 : vector<2x32xf32>
    %cst_110 = arith.constant 1.000000e+00 : f32
    %473 = vector.broadcast %cst_110 : f32 to vector<2x32xf32>
    %474 = arith.addf %473, %472 : vector<2x32xf32>
    %475 = arith.divf %473, %474 : vector<2x32xf32>
    %476 = vector.extract_strided_slice %455 {offsets = [0, 64], sizes = [2, 32], strides = [1, 1]} : vector<2x96xf32> to vector<2x32xf32>
    %477 = vector.extract_strided_slice %459 {offsets = [0, 64], sizes = [2, 32], strides = [1, 1]} : vector<2x96xf32> to vector<2x32xf32>
    %478 = arith.mulf %467, %477 : vector<2x32xf32>
    %479 = arith.addf %476, %478 : vector<2x32xf32>
    %480 = math.tanh %479 : vector<2x32xf32>
    %cst_111 = arith.constant 1.000000e+00 : f32
    %481 = vector.broadcast %cst_111 : f32 to vector<2x32xf32>
    %482 = arith.subf %481, %475 : vector<2x32xf32>
    %483 = arith.mulf %482, %480 : vector<2x32xf32>
    %484 = arith.mulf %475, %417 : vector<2x32xf32>
    %485 = arith.addf %483, %484 : vector<2x32xf32>
    %486 = vector.extract_strided_slice %36 {offsets = [2, 0], sizes = [2, 96], strides = [1, 1]} : vector<16x96xf32> to vector<2x96xf32>
    %487 = arith.truncf %448 : vector<2x32xf32> to vector<2x32xbf16>
    %cst_112 = arith.constant dense<0.000000e+00> : vector<2x96xf32>
    %488 = tpu.matmul %487, %40, %cst_112 {dimension_numbers = #tpu.dot_dimension_numbers<[1], [0], [0], [1], [0, 0, 1, 1], [], []>} : vector<2x32xbf16>, vector<32x96xbf16>, vector<2x96xf32> -> vector<2x96xf32>
    %489 = vector.broadcast %44 : vector<1x96xf32> to vector<2x96xf32>
    %490 = arith.addf %488, %489 : vector<2x96xf32>
    %491 = vector.extract_strided_slice %486 {offsets = [0, 0], sizes = [2, 32], strides = [1, 1]} : vector<2x96xf32> to vector<2x32xf32>
    %492 = vector.extract_strided_slice %490 {offsets = [0, 0], sizes = [2, 32], strides = [1, 1]} : vector<2x96xf32> to vector<2x32xf32>
    %493 = arith.addf %491, %492 : vector<2x32xf32>
    %494 = arith.negf %493 : vector<2x32xf32>
    %495 = math.exp %494 : vector<2x32xf32>
    %cst_113 = arith.constant 1.000000e+00 : f32
    %496 = vector.broadcast %cst_113 : f32 to vector<2x32xf32>
    %497 = arith.addf %496, %495 : vector<2x32xf32>
    %498 = arith.divf %496, %497 : vector<2x32xf32>
    %499 = vector.extract_strided_slice %486 {offsets = [0, 32], sizes = [2, 32], strides = [1, 1]} : vector<2x96xf32> to vector<2x32xf32>
    %500 = vector.extract_strided_slice %490 {offsets = [0, 32], sizes = [2, 32], strides = [1, 1]} : vector<2x96xf32> to vector<2x32xf32>
    %501 = arith.addf %499, %500 : vector<2x32xf32>
    %502 = arith.negf %501 : vector<2x32xf32>
    %503 = math.exp %502 : vector<2x32xf32>
    %cst_114 = arith.constant 1.000000e+00 : f32
    %504 = vector.broadcast %cst_114 : f32 to vector<2x32xf32>
    %505 = arith.addf %504, %503 : vector<2x32xf32>
    %506 = arith.divf %504, %505 : vector<2x32xf32>
    %507 = vector.extract_strided_slice %486 {offsets = [0, 64], sizes = [2, 32], strides = [1, 1]} : vector<2x96xf32> to vector<2x32xf32>
    %508 = vector.extract_strided_slice %490 {offsets = [0, 64], sizes = [2, 32], strides = [1, 1]} : vector<2x96xf32> to vector<2x32xf32>
    %509 = arith.mulf %498, %508 : vector<2x32xf32>
    %510 = arith.addf %507, %509 : vector<2x32xf32>
    %511 = math.tanh %510 : vector<2x32xf32>
    %cst_115 = arith.constant 1.000000e+00 : f32
    %512 = vector.broadcast %cst_115 : f32 to vector<2x32xf32>
    %513 = arith.subf %512, %506 : vector<2x32xf32>
    %514 = arith.mulf %513, %511 : vector<2x32xf32>
    %515 = arith.mulf %506, %448 : vector<2x32xf32>
    %516 = arith.addf %514, %515 : vector<2x32xf32>
    %c6_116 = arith.constant 6 : index
    %c0_117 = arith.constant 0 : index
    %c0_118 = arith.constant 0 : index
    %517 = vector.load %arg9[%c6_116, %c0_117, %c0_118] : memref<8x2x32xf32, #tpu.memory_space<vmem>>, vector<1x2x32xf32>
    %518 = vector.shape_cast %517 : vector<1x2x32xf32> to vector<2x32xf32>
    %519 = vector.shape_cast %485 : vector<2x32xf32> to vector<1x2x32xf32>
    tpu.vector_store %arg9[%c6_116, %c0_117, %c0_118], %519 {strides = array<i32>} : memref<8x2x32xf32, #tpu.memory_space<vmem>>, vector<1x2x32xf32>,
    %c1_119 = arith.constant 1 : index
    %c0_120 = arith.constant 0 : index
    %c0_121 = arith.constant 0 : index
    %520 = vector.load %arg10[%c1_119, %c0_120, %c0_121] : memref<8x2x32xf32, #tpu.memory_space<vmem>>, vector<1x2x32xf32>
    %521 = vector.shape_cast %520 : vector<1x2x32xf32> to vector<2x32xf32>
    %522 = vector.shape_cast %516 : vector<2x32xf32> to vector<1x2x32xf32>
    tpu.vector_store %arg10[%c1_119, %c0_120, %c0_121], %522 {strides = array<i32>} : memref<8x2x32xf32, #tpu.memory_space<vmem>>, vector<1x2x32xf32>,
    %523 = vector.extract_strided_slice %21 {offsets = [14, 0], sizes = [2, 96], strides = [1, 1]} : vector<16x96xf32> to vector<2x96xf32>
    %524 = arith.truncf %485 : vector<2x32xf32> to vector<2x32xbf16>
    %cst_122 = arith.constant dense<0.000000e+00> : vector<2x96xf32>
    %525 = tpu.matmul %524, %38, %cst_122 {dimension_numbers = #tpu.dot_dimension_numbers<[1], [0], [0], [1], [0, 0, 1, 1], [], []>} : vector<2x32xbf16>, vector<32x96xbf16>, vector<2x96xf32> -> vector<2x96xf32>
    %526 = vector.broadcast %42 : vector<1x96xf32> to vector<2x96xf32>
    %527 = arith.addf %525, %526 : vector<2x96xf32>
    %528 = vector.extract_strided_slice %523 {offsets = [0, 0], sizes = [2, 32], strides = [1, 1]} : vector<2x96xf32> to vector<2x32xf32>
    %529 = vector.extract_strided_slice %527 {offsets = [0, 0], sizes = [2, 32], strides = [1, 1]} : vector<2x96xf32> to vector<2x32xf32>
    %530 = arith.addf %528, %529 : vector<2x32xf32>
    %531 = arith.negf %530 : vector<2x32xf32>
    %532 = math.exp %531 : vector<2x32xf32>
    %cst_123 = arith.constant 1.000000e+00 : f32
    %533 = vector.broadcast %cst_123 : f32 to vector<2x32xf32>
    %534 = arith.addf %533, %532 : vector<2x32xf32>
    %535 = arith.divf %533, %534 : vector<2x32xf32>
    %536 = vector.extract_strided_slice %523 {offsets = [0, 32], sizes = [2, 32], strides = [1, 1]} : vector<2x96xf32> to vector<2x32xf32>
    %537 = vector.extract_strided_slice %527 {offsets = [0, 32], sizes = [2, 32], strides = [1, 1]} : vector<2x96xf32> to vector<2x32xf32>
    %538 = arith.addf %536, %537 : vector<2x32xf32>
    %539 = arith.negf %538 : vector<2x32xf32>
    %540 = math.exp %539 : vector<2x32xf32>
    %cst_124 = arith.constant 1.000000e+00 : f32
    %541 = vector.broadcast %cst_124 : f32 to vector<2x32xf32>
    %542 = arith.addf %541, %540 : vector<2x32xf32>
    %543 = arith.divf %541, %542 : vector<2x32xf32>
    %544 = vector.extract_strided_slice %523 {offsets = [0, 64], sizes = [2, 32], strides = [1, 1]} : vector<2x96xf32> to vector<2x32xf32>
    %545 = vector.extract_strided_slice %527 {offsets = [0, 64], sizes = [2, 32], strides = [1, 1]} : vector<2x96xf32> to vector<2x32xf32>
    %546 = arith.mulf %535, %545 : vector<2x32xf32>
    %547 = arith.addf %544, %546 : vector<2x32xf32>
    %548 = math.tanh %547 : vector<2x32xf32>
    %cst_125 = arith.constant 1.000000e+00 : f32
    %549 = vector.broadcast %cst_125 : f32 to vector<2x32xf32>
    %550 = arith.subf %549, %543 : vector<2x32xf32>
    %551 = arith.mulf %550, %548 : vector<2x32xf32>
    %552 = arith.mulf %543, %485 : vector<2x32xf32>
    %553 = arith.addf %551, %552 : vector<2x32xf32>
    %554 = vector.extract_strided_slice %36 {offsets = [0, 0], sizes = [2, 96], strides = [1, 1]} : vector<16x96xf32> to vector<2x96xf32>
    %555 = arith.truncf %516 : vector<2x32xf32> to vector<2x32xbf16>
    %cst_126 = arith.constant dense<0.000000e+00> : vector<2x96xf32>
    %556 = tpu.matmul %555, %40, %cst_126 {dimension_numbers = #tpu.dot_dimension_numbers<[1], [0], [0], [1], [0, 0, 1, 1], [], []>} : vector<2x32xbf16>, vector<32x96xbf16>, vector<2x96xf32> -> vector<2x96xf32>
    %557 = vector.broadcast %44 : vector<1x96xf32> to vector<2x96xf32>
    %558 = arith.addf %556, %557 : vector<2x96xf32>
    %559 = vector.extract_strided_slice %554 {offsets = [0, 0], sizes = [2, 32], strides = [1, 1]} : vector<2x96xf32> to vector<2x32xf32>
    %560 = vector.extract_strided_slice %558 {offsets = [0, 0], sizes = [2, 32], strides = [1, 1]} : vector<2x96xf32> to vector<2x32xf32>
    %561 = arith.addf %559, %560 : vector<2x32xf32>
    %562 = arith.negf %561 : vector<2x32xf32>
    %563 = math.exp %562 : vector<2x32xf32>
    %cst_127 = arith.constant 1.000000e+00 : f32
    %564 = vector.broadcast %cst_127 : f32 to vector<2x32xf32>
    %565 = arith.addf %564, %563 : vector<2x32xf32>
    %566 = arith.divf %564, %565 : vector<2x32xf32>
    %567 = vector.extract_strided_slice %554 {offsets = [0, 32], sizes = [2, 32], strides = [1, 1]} : vector<2x96xf32> to vector<2x32xf32>
    %568 = vector.extract_strided_slice %558 {offsets = [0, 32], sizes = [2, 32], strides = [1, 1]} : vector<2x96xf32> to vector<2x32xf32>
    %569 = arith.addf %567, %568 : vector<2x32xf32>
    %570 = arith.negf %569 : vector<2x32xf32>
    %571 = math.exp %570 : vector<2x32xf32>
    %cst_128 = arith.constant 1.000000e+00 : f32
    %572 = vector.broadcast %cst_128 : f32 to vector<2x32xf32>
    %573 = arith.addf %572, %571 : vector<2x32xf32>
    %574 = arith.divf %572, %573 : vector<2x32xf32>
    %575 = vector.extract_strided_slice %554 {offsets = [0, 64], sizes = [2, 32], strides = [1, 1]} : vector<2x96xf32> to vector<2x32xf32>
    %576 = vector.extract_strided_slice %558 {offsets = [0, 64], sizes = [2, 32], strides = [1, 1]} : vector<2x96xf32> to vector<2x32xf32>
    %577 = arith.mulf %566, %576 : vector<2x32xf32>
    %578 = arith.addf %575, %577 : vector<2x32xf32>
    %579 = math.tanh %578 : vector<2x32xf32>
    %cst_129 = arith.constant 1.000000e+00 : f32
    %580 = vector.broadcast %cst_129 : f32 to vector<2x32xf32>
    %581 = arith.subf %580, %574 : vector<2x32xf32>
    %582 = arith.mulf %581, %579 : vector<2x32xf32>
    %583 = arith.mulf %574, %516 : vector<2x32xf32>
    %584 = arith.addf %582, %583 : vector<2x32xf32>
    %c7_130 = arith.constant 7 : index
    %c0_131 = arith.constant 0 : index
    %c0_132 = arith.constant 0 : index
    %585 = vector.load %arg9[%c7_130, %c0_131, %c0_132] : memref<8x2x32xf32, #tpu.memory_space<vmem>>, vector<1x2x32xf32>
    %586 = vector.shape_cast %585 : vector<1x2x32xf32> to vector<2x32xf32>
    %587 = vector.shape_cast %553 : vector<2x32xf32> to vector<1x2x32xf32>
    tpu.vector_store %arg9[%c7_130, %c0_131, %c0_132], %587 {strides = array<i32>} : memref<8x2x32xf32, #tpu.memory_space<vmem>>, vector<1x2x32xf32>,
    %c0_133 = arith.constant 0 : index
    %c0_134 = arith.constant 0 : index
    %c0_135 = arith.constant 0 : index
    %588 = vector.load %arg10[%c0_133, %c0_134, %c0_135] : memref<8x2x32xf32, #tpu.memory_space<vmem>>, vector<1x2x32xf32>
    %589 = vector.shape_cast %588 : vector<1x2x32xf32> to vector<2x32xf32>
    %590 = vector.shape_cast %584 : vector<2x32xf32> to vector<1x2x32xf32>
    tpu.vector_store %arg10[%c0_133, %c0_134, %c0_135], %590 {strides = array<i32>} : memref<8x2x32xf32, #tpu.memory_space<vmem>>, vector<1x2x32xf32>,
    %c0_136 = arith.constant 0 : index
    %c0_137 = arith.constant 0 : index
    %591 = vector.load %arg11[%c0_136, %c0_137] : memref<2x32xf32, #tpu.memory_space<vmem>>, vector<2x32xf32>
    tpu.vector_store %arg11[%c0_136, %c0_137], %553 {strides = array<i32>} : memref<2x32xf32, #tpu.memory_space<vmem>>, vector<2x32xf32>,
    %c0_138 = arith.constant 0 : index
    %c0_139 = arith.constant 0 : index
    %592 = vector.load %arg12[%c0_138, %c0_139] : memref<2x32xf32, #tpu.memory_space<vmem>>, vector<2x32xf32>
    tpu.vector_store %arg12[%c0_138, %c0_139], %584 {strides = array<i32>} : memref<2x32xf32, #tpu.memory_space<vmem>>, vector<2x32xf32>,
    return
  }
  func.func @transform_0(%arg0: i32) -> (i32, i32, i32) {
    %c0_i32 = arith.constant 0 : i32
    %c0_i32_0 = arith.constant 0 : i32
    %c0_i32_1 = arith.constant 0 : i32
    return %arg0, %c0_i32, %c0_i32_0 : i32, i32, i32
  }
  func.func @transform_1(%arg0: i32) -> (i32, i32, i32) {
    %c0_i32 = arith.constant 0 : i32
    %c0_i32_0 = arith.constant 0 : i32
    %c0_i32_1 = arith.constant 0 : i32
    return %arg0, %c0_i32, %c0_i32_0 : i32, i32, i32
  }
  func.func @transform_2(%arg0: i32) -> (i32, i32, i32) {
    %c0_i32 = arith.constant 0 : i32
    %0 = arith.subi %c0_i32, %arg0 : i32
    %c0_i32_0 = arith.constant 0 : i32
    %c0_i32_1 = arith.constant 0 : i32
    %c0_i32_2 = arith.constant 0 : i32
    return %0, %c0_i32_0, %c0_i32_1 : i32, i32, i32
  }
  func.func @transform_3(%arg0: i32) -> (i32, i32, i32) {
    %c0_i32 = arith.constant 0 : i32
    %0 = arith.subi %c0_i32, %arg0 : i32
    %c0_i32_0 = arith.constant 0 : i32
    %c0_i32_1 = arith.constant 0 : i32
    %c0_i32_2 = arith.constant 0 : i32
    return %0, %c0_i32_0, %c0_i32_1 : i32, i32, i32
  }
  func.func @transform_4(%arg0: i32) -> (i32, i32, i32) {
    %c0_i32 = arith.constant 0 : i32
    %c0_i32_0 = arith.constant 0 : i32
    %c0_i32_1 = arith.constant 0 : i32
    %c0_i32_2 = arith.constant 0 : i32
    return %c0_i32, %c0_i32_0, %c0_i32_1 : i32, i32, i32
  }
  func.func @transform_5(%arg0: i32) -> (i32, i32, i32) {
    %c0_i32 = arith.constant 0 : i32
    %c0_i32_0 = arith.constant 0 : i32
    %c0_i32_1 = arith.constant 0 : i32
    %c0_i32_2 = arith.constant 0 : i32
    return %c0_i32, %c0_i32_0, %c0_i32_1 : i32, i32, i32
  }
  func.func @transform_6(%arg0: i32) -> (i32, i32, i32) {
    %c0_i32 = arith.constant 0 : i32
    %c0_i32_0 = arith.constant 0 : i32
    %c0_i32_1 = arith.constant 0 : i32
    %c0_i32_2 = arith.constant 0 : i32
    return %c0_i32, %c0_i32_0, %c0_i32_1 : i32, i32, i32
  }
  func.func @transform_7(%arg0: i32) -> (i32, i32, i32) {
    %c0_i32 = arith.constant 0 : i32
    %c0_i32_0 = arith.constant 0 : i32
    %c0_i32_1 = arith.constant 0 : i32
    %c0_i32_2 = arith.constant 0 : i32
    return %c0_i32, %c0_i32_0, %c0_i32_1 : i32, i32, i32
  }
  func.func @transform_8(%arg0: i32) -> (i32, i32, i32) {
    %c0_i32 = arith.constant 0 : i32
    %c0_i32_0 = arith.constant 0 : i32
    %c0_i32_1 = arith.constant 0 : i32
    return %arg0, %c0_i32, %c0_i32_0 : i32, i32, i32
  }
  func.func @transform_9(%arg0: i32) -> (i32, i32, i32) {
    %c0_i32 = arith.constant 0 : i32
    %0 = arith.subi %c0_i32, %arg0 : i32
    %c0_i32_0 = arith.constant 0 : i32
    %c0_i32_1 = arith.constant 0 : i32
    %c0_i32_2 = arith.constant 0 : i32
    return %0, %c0_i32_0, %c0_i32_1 : i32, i32, i32
  }
}

</mosaic_0001>

<llo_original>
// kernel: _lambda_.3
$region0: #{_lambda_.3}
  #allocation0 [shape = 'u32[]', space=smem, size = 0x4, offset = 0x4, fixed_abs, tag = 'smem constant byte address 0x4 - core index']
  #allocation1 [shape = 'u32[72,128]{1,0:T(1,128)}', space=vmem, size = 0x9000, scoped, tag = 'internal scratch']
  %s0 = inlined_call_operand.hbm [shape: f32[16,16], index: 0, kind: input, shape index: {}]
  %s1 = inlined_call_operand.hbm [shape: bf16[16,32], index: 1, kind: input, shape index: {}]
  %s2 = inlined_call_operand.hbm [shape: f32[1,32], index: 2, kind: input, shape index: {}]
  %s3 = inlined_call_operand.hbm [shape: bf16[32,32], index: 3, kind: input, shape index: {}]
  %s4 = inlined_call_operand.hbm [shape: f32[1,32], index: 4, kind: input, shape index: {}]
  %s5 = inlined_call_operand.vmem [shape: bf16[16,32], index: 5, kind: output, shape index: {}]
  %s6 = sld [smem:[#allocation0]]
  $region50: #{_lambda_.3} parent=0
    _
  %s8 = ssub.s32 1, %s6
  %s9 = scalar_select 0, %s8, %s6
  $region1: #{_lambda_.3} parent=0
    #allocation2 [shape = 'u8[8192]{0}', space=vmem, size = 0x2000, scoped, tag = 'input window, operand 0, single buffered']
    #allocation3 [shape = 's32[1]{0}', space=sflag, size = 0x4, scoped, tag = 'scoped memory for _lambda_.3']
    #allocation4 [shape = 'u8[4096]{0}', space=vmem, size = 0x1000, scoped, tag = 'input window, operand 1, single buffered']
    #allocation5 [shape = 's32[1]{0}', space=sflag, size = 0x4, scoped, tag = 'scoped memory for _lambda_.3']
    #allocation6 [shape = 'u8[512]{0}', space=vmem, size = 0x400, scoped, tag = 'input window, operand 2, single buffered']
    #allocation7 [shape = 'u8[8192]{0}', space=vmem, size = 0x2000, scoped, tag = 'input window, operand 3, single buffered']
    #allocation8 [shape = 's32[1]{0}', space=sflag, size = 0x4, scoped, tag = 'scoped memory for _lambda_.3']
    #allocation9 [shape = 'u8[512]{0}', space=vmem, size = 0x400, scoped, tag = 'input window, operand 4, single buffered']
    %10 = vsyncpa [#allocation3], 0
    %11 = vsyncpa [#allocation5], 0
    %12 = vsyncpa [#allocation8], 0
    // Predicated region
    $region2: #{_lambda_.3} parent=1 // pred_check
      _
    $region3: #{_lambda_.3} parent=1 // pred_check_branch
      %14 = sbr.rel (0) target = $region5
    $region4: #{_lambda_.3} parent=1 // pred_region
      %16 = vsyncadd [#allocation3], 0
      %s17 = sshll.u32 %s0, 4
      %s18 = int_to_ptr.hbm [resolvable:$true] %s17
      %s19 = sshll.u32 [#allocation2], 4
      %s20 = int_to_ptr.vmem [resolvable:$true] %s19
      %25 = dma.hbm_to_vmem [thread:$0]  %s18, 256, %s20, [#allocation3], 128, 128, 8
    $region5: #{_lambda_.3} parent=1 // pred_fallthru
      _
    // Predicated region
    $region6: #{_lambda_.3} parent=1 // pred_check
      _
    $region7: #{_lambda_.3} parent=1 // pred_check_branch
      %27 = sbr.rel (0) target = $region9
    $region8: #{_lambda_.3} parent=1 // pred_region
      %29 = vsyncadd [#allocation5], 0
      %s30 = sshll.u32 %s1, 4
      %s31 = int_to_ptr.hbm [resolvable:$true] %s30
      %s32 = sshll.u32 [#allocation4], 4
      %s33 = int_to_ptr.vmem [resolvable:$true] %s32
      %38 = dma.hbm_to_vmem [thread:$0]  %s31, 128, %s33, [#allocation5], 64, 64, 4
    $region9: #{_lambda_.3} parent=1 // pred_fallthru
      _
    // Predicated region
    $region10: #{_lambda_.3} parent=1 // pred_check
      _
    $region11: #{_lambda_.3} parent=1 // pred_check_branch
      %40 = sbr.rel (0) target = $region13
    $region12: #{_lambda_.3} parent=1 // pred_region
      %42 = vsyncadd [#allocation5], 0
      %s44 = sshll.u32 %s2, 4
      %s45 = int_to_ptr.hbm [resolvable:$true] %s44
      %s46 = sshll.u32 [#allocation6], 4
      %s47 = int_to_ptr.vmem [resolvable:$true] %s46
      %49 = dma.hbm_to_vmem [thread:$0]  %s45, 16, %s47, [#allocation5]
    $region13: #{_lambda_.3} parent=1 // pred_fallthru
      _
    // Predicated region
    $region14: #{_lambda_.3} parent=1 // pred_check
      _
    $region15: #{_lambda_.3} parent=1 // pred_check_branch
      %51 = sbr.rel (0) target = $region17
    $region16: #{_lambda_.3} parent=1 // pred_region
      %53 = vsyncadd [#allocation8], 0
      %s54 = sshll.u32 %s3, 4
      %s55 = int_to_ptr.hbm [resolvable:$true] %s54
      %s56 = sshll.u32 [#allocation7], 4
      %s57 = int_to_ptr.vmem [resolvable:$true] %s56
      %62 = dma.hbm_to_vmem [thread:$0]  %s55, 256, %s57, [#allocation8], 64, 64, 4
    $region17: #{_lambda_.3} parent=1 // pred_fallthru
      _
    // Predicated region
    $region18: #{_lambda_.3} parent=1 // pred_check
      _
    $region19: #{_lambda_.3} parent=1 // pred_check_branch
      %64 = sbr.rel (0) target = $region21
    $region20: #{_lambda_.3} parent=1 // pred_region
      %66 = vsyncadd [#allocation8], 0
      %s68 = sshll.u32 %s4, 4
      %s69 = int_to_ptr.hbm [resolvable:$true] %s68
      %s70 = sshll.u32 [#allocation9], 4
      %s71 = int_to_ptr.vmem [resolvable:$true] %s70
      %73 = dma.hbm_to_vmem [thread:$0]  %s69, 16, %s71, [#allocation8]
    $region21: #{_lambda_.3} parent=1 // pred_fallthru
      _
    // Predicated region
    $region22: #{_lambda_.3} parent=1 // pred_check
      _
    $region23: #{_lambda_.3} parent=1 // pred_check_branch
      %75 = sbr.rel (0) target = $region25
    $region24: #{_lambda_.3} parent=1 // pred_region
      %77 = dma.done [#allocation3], 256
    $region25: #{_lambda_.3} parent=1 // pred_fallthru
      _
    // Predicated region
    $region26: #{_lambda_.3} parent=1 // pred_check
      _
    $region27: #{_lambda_.3} parent=1 // pred_check_branch
      %79 = sbr.rel (0) target = $region29
    $region28: #{_lambda_.3} parent=1 // pred_region
      %81 = dma.done [#allocation5], 128
    $region29: #{_lambda_.3} parent=1 // pred_fallthru
      _
    // Predicated region
    $region30: #{_lambda_.3} parent=1 // pred_check
      _
    $region31: #{_lambda_.3} parent=1 // pred_check_branch
      %83 = sbr.rel (0) target = $region33
    $region32: #{_lambda_.3} parent=1 // pred_region
      %85 = dma.done [#allocation5], 16
    $region33: #{_lambda_.3} parent=1 // pred_fallthru
      _
    // Predicated region
    $region34: #{_lambda_.3} parent=1 // pred_check
      _
    $region35: #{_lambda_.3} parent=1 // pred_check_branch
      %87 = sbr.rel (0) target = $region37
    $region36: #{_lambda_.3} parent=1 // pred_region
      %89 = dma.done [#allocation8], 256
    $region37: #{_lambda_.3} parent=1 // pred_fallthru
      _
    // Predicated region
    $region38: #{_lambda_.3} parent=1 // pred_check
      _
    $region39: #{_lambda_.3} parent=1 // pred_check_branch
      %91 = sbr.rel (0) target = $region41
    $region40: #{_lambda_.3} parent=1 // pred_region
      %93 = dma.done [#allocation8], 16
    $region41: #{_lambda_.3} parent=1 // pred_fallthru
      _
    %v95 = vld [vmem:[#allocation2] sm:$0xff]
    %v96 = vld [vmem:[#allocation2 + $0x8] sm:$0xff]
    %v97 = vpack.c.bf16 %v96, %v95
    %v98 = vld [vmem:[#allocation4] sm:$0xf]
    %v99 = vld [vmem:[#allocation4 + $0x4] sm:$0xf]
    %v100 = vld [vmem:[#allocation6] sm:$0x1]
    %v102 = vperm.slane %v100, 0
    %v106 = vunpack.c.l.b16 %v98
    %v107 = vunpack.c.l.b16 %v99
    %v108 = vpack.c.b16 %v107, %v106
    %vm110 = vcmask 130048
    %v112 = vsel %vm110, %v97, 0
    %114 = vmatpush.bf16.msra.mxu0 0
    %115 = vmatpush.bf16.msra.mxu0 0
    %116 = vmatpush.bf16.msra.mxu0 0
    %117 = vmatpush.bf16.msra.mxu0 0
    %118 = vmatpush.bf16.msra.mxu0 0
    %119 = vmatpush.bf16.msra.mxu0 0
    %120 = vmatpush.bf16.msra.mxu0 0
    %121 = vmatpush.bf16.msra.mxu0 %v108
    %122 = vmatmul.bf16.gmra.mxu0 %v112
    %v123 = vpop.f32.mrf.mxu0
    %v124 = vadd.f32 %v102, %v123
    %v125 = vpop.f32.mrf.mxu0
    %v126 = vadd.f32 %v102, %v125
    %127 = vdwg.mxu0
    %v128 = vmax.f32 %v124, 0.0
    %v129 = vmax.f32 %v126, 0.0
    %v130 = vpack.c.bf16 %v129, %v128
    %v131 = vld [vmem:[#allocation7] sm:$0xf]
    %v132 = vld [vmem:[#allocation7 + $0x4] sm:$0xf]
    %v133 = vld [vmem:[#allocation7 + $0x8] sm:$0xf]
    %v134 = vld [vmem:[#allocation7 + $0xc] sm:$0xf]
    %v135 = vld [vmem:[#allocation9] sm:$0x1]
    %v137 = vperm.slane %v135, 0
    %v143 = vunpack.c.l.b16 %v131
    %v144 = vunpack.c.l.b16 %v132
    %v145 = vunpack.c.l.b16 %v133
    %v146 = vunpack.c.l.b16 %v134
    %v147 = vpack.c.b16 %v144, %v143
    %v148 = vpack.c.b16 %v146, %v145
    %vm151 = vcmask 261120
    %v153 = vsel %vm151, %v130, 0
    %155 = vmatpush.bf16.msra.mxu0 0
    %156 = vmatpush.bf16.msra.mxu0 0
    %157 = vmatpush.bf16.msra.mxu0 0
    %158 = vmatpush.bf16.msra.mxu0 0
    %159 = vmatpush.bf16.msra.mxu0 0
    %160 = vmatpush.bf16.msra.mxu0 0
    %161 = vmatpush.bf16.msra.mxu0 %v148
    %162 = vmatpush.bf16.msra.mxu0 %v147
    %163 = vmatmul.bf16.gmra.mxu0 %v153
    %v164 = vpop.f32.mrf.mxu0
    %v165 = vadd.f32 %v137, %v164
    %v166 = vpop.f32.mrf.mxu0
    %v167 = vadd.f32 %v137, %v166
    %168 = vdwg.mxu0
    %v169 = vmax.f32 %v165, 0.0
    %v170 = vmax.f32 %v167, 0.0
    %v171 = vpack.c.bf16 %v169, %v169
    %v172 = vpack.c.bf16 %v170, %v170
    %vm173 = vcmask 257024
    %174 = vst.msk [vmem:[%s5] sm:$0xf] %vm173, %v171
    %175 = vst.msk [vmem:[%s5 + $0x4] sm:$0xf] %vm173, %v172
    // Predicated region
    $region42: #{_lambda_.3} parent=1 // pred_check
      _
    $region43: #{_lambda_.3} parent=1 // pred_check_branch
      %177 = sbr.rel (0) target = $region45
    $region44: #{_lambda_.3} parent=1 // pred_region
      _
    $region45: #{_lambda_.3} parent=1 // pred_fallthru
      _
    // Predicated region
    $region46: #{_lambda_.3} parent=1 // pred_check
      _
    $region47: #{_lambda_.3} parent=1 // pred_check_branch
      %179 = sbr.rel (0) target = $region49
    $region48: #{_lambda_.3} parent=1 // pred_region
      _
    $region49: #{_lambda_.3} parent=1 // pred_fallthru
      _
    %180 = vsyncpa [#allocation3], 1
    %181 = vsyncpa [#allocation5], 1
    %182 = vsyncpa [#allocation8], 1

// kernel: _lambda_.4
$region0: #{_lambda_.4}
  #allocation0 [shape = 'u32[]', space=smem, size = 0x4, offset = 0x4, fixed_abs, tag = 'smem constant byte address 0x4 - core index']
  #allocation1 [shape = 'u32[72,128]{1,0:T(1,128)}', space=vmem, size = 0x9000, scoped, tag = 'internal scratch']
  #allocation2 [shape = 'f32[2,32]{1,0:T(2,128)}', space=vmem, size = 0x400, scoped, tag = 'scratch operand']
  #allocation3 [shape = 'f32[2,32]{1,0:T(2,128)}', space=vmem, size = 0x400, scoped, tag = 'scratch operand']
  %s0 = inlined_call_operand.vmem [shape: bf16[8,2,32], index: 0, kind: input, shape index: {}, may-alias: {0,1}]
  %s1 = inlined_call_operand.vmem [shape: bf16[8,2,32], index: 1, kind: input, shape index: {}, may-alias: {0,1}]
  %s2 = inlined_call_operand.hbm [shape: bf16[2,32,96], index: 2, kind: input, shape index: {}]
  %s3 = inlined_call_operand.vmem [shape: f32[2,1,96], index: 3, kind: input, shape index: {}]
  %s4 = inlined_call_operand.hbm [shape: bf16[2,32,96], index: 4, kind: input, shape index: {}]
  %s5 = inlined_call_operand.vmem [shape: f32[2,1,96], index: 5, kind: input, shape index: {}]
  %s6 = inlined_call_operand.vmem [shape: bf16[8,2,32], index: 6, kind: output, shape index: {0}]
  %s7 = inlined_call_operand.vmem [shape: bf16[8,2,32], index: 7, kind: output, shape index: {1}]
  %8 = xla_tuple %s6, %s7
  %s9 = sld [smem:[#allocation0]]
  $region54: #{_lambda_.4} parent=0
    _
  %s11 = ssub.s32 1, %s9
  %s12 = scalar_select 0, %s11, %s9
  $region1: #{_lambda_.4} parent=0
    #allocation4 [shape = 'u8[16384]{0}', space=vmem, size = 0x4000, scoped, tag = 'input window, operand 2, single buffered']
    #allocation5 [shape = 's32[1]{0}', space=sflag, size = 0x4, scoped, tag = 'scoped memory for _lambda_.4']
    #allocation6 [shape = 'u8[16384]{0}', space=vmem, size = 0x4000, scoped, tag = 'input window, operand 4, single buffered']
    #allocation7 [shape = 's32[1]{0}', space=sflag, size = 0x4, scoped, tag = 'scoped memory for _lambda_.4']
    %13 = vsyncpa [#allocation5], 0
    %14 = vsyncpa [#allocation7], 0
    // Predicated region
    $region2: #{_lambda_.4} parent=1 // pred_check
      _
    $region3: #{_lambda_.4} parent=1 // pred_check_branch
      %16 = sbr.rel (0) target = $region5
    $region4: #{_lambda_.4} parent=1 // pred_region
      _
    $region5: #{_lambda_.4} parent=1 // pred_fallthru
      _
    // Predicated region
    $region6: #{_lambda_.4} parent=1 // pred_check
      _
    $region7: #{_lambda_.4} parent=1 // pred_check_branch
      %18 = sbr.rel (0) target = $region9
    $region8: #{_lambda_.4} parent=1 // pred_region
      %s19 = ssub.s32 0, 0
      %s20 = smul.u32 8, %s19
      %p21 = scmp.lt.s32.totalorder %s20, 7
      %s22 = scalar_select %p21, %s20, 7
      %s23 = scalar_lea.vmem %s1, %s22
      %s24 = ssub.s32 0, 0
      %s25 = smul.u32 8, %s24
    $region9: #{_lambda_.4} parent=1 // pred_fallthru
      _
    // Predicated region
    $region10: #{_lambda_.4} parent=1 // pred_check
      _
    $region11: #{_lambda_.4} parent=1 // pred_check_branch
      %27 = sbr.rel (0) target = $region13
    $region12: #{_lambda_.4} parent=1 // pred_region
      %29 = vsyncadd [#allocation5], 0
      %s30 = sshll.u32 %s2, 4
      %s31 = int_to_ptr.hbm [resolvable:$true] %s30
      %s32 = sshll.u32 [#allocation4], 4
      %s33 = int_to_ptr.vmem [resolvable:$true] %s32
      %38 = dma.hbm_to_vmem [thread:$0]  %s31, 512, %s33, [#allocation5], 64, 64, 4
    $region13: #{_lambda_.4} parent=1 // pred_fallthru
      _
    // Predicated region
    $region14: #{_lambda_.4} parent=1 // pred_check
      _
    $region15: #{_lambda_.4} parent=1 // pred_check_branch
      %40 = sbr.rel (0) target = $region17
    $region16: #{_lambda_.4} parent=1 // pred_region
      _
    $region17: #{_lambda_.4} parent=1 // pred_fallthru
      _
    // Predicated region
    $region18: #{_lambda_.4} parent=1 // pred_check
      _
    $region19: #{_lambda_.4} parent=1 // pred_check_branch
      %42 = sbr.rel (0) target = $region21
    $region20: #{_lambda_.4} parent=1 // pred_region
      %44 = vsyncadd [#allocation7], 0
      %s45 = sshll.u32 %s4, 4
      %s46 = int_to_ptr.hbm [resolvable:$true] %s45
      %s47 = sshll.u32 [#allocation6], 4
      %s48 = int_to_ptr.vmem [resolvable:$true] %s47
      %53 = dma.hbm_to_vmem [thread:$0]  %s46, 512, %s48, [#allocation7], 64, 64, 4
    $region21: #{_lambda_.4} parent=1 // pred_fallthru
      _
    // Predicated region
    $region22: #{_lambda_.4} parent=1 // pred_check
      _
    $region23: #{_lambda_.4} parent=1 // pred_check_branch
      %55 = sbr.rel (0) target = $region25
    $region24: #{_lambda_.4} parent=1 // pred_region
      _
    $region25: #{_lambda_.4} parent=1 // pred_fallthru
      _
    // Predicated region
    $region26: #{_lambda_.4} parent=1 // pred_check
      _
    $region27: #{_lambda_.4} parent=1 // pred_check_branch
      %57 = sbr.rel (0) target = $region29
    $region28: #{_lambda_.4} parent=1 // pred_region
      %59 = dma.done [#allocation5], 512
    $region29: #{_lambda_.4} parent=1 // pred_fallthru
      _
    // Predicated region
    $region30: #{_lambda_.4} parent=1 // pred_check
      _
    $region31: #{_lambda_.4} parent=1 // pred_check_branch
      %61 = sbr.rel (0) target = $region33
    $region32: #{_lambda_.4} parent=1 // pred_region
      %63 = dma.done [#allocation7], 512
    $region33: #{_lambda_.4} parent=1 // pred_fallthru
      _
    %s64 = ssub.s32 0, 0
    %s65 = smul.u32 8, %s64
    %p66 = scmp.lt.s32.totalorder %s65, 7
    %s67 = scalar_select %p66, %s65, 7
    %s68 = scalar_lea.vmem %s1, %s67
    %s69 = ssub.s32 0, 0
    %s70 = smul.u32 8, %s69
    %p71 = scmp.lt.s32.totalorder %s70, 7
    %s72 = scalar_select %p71, %s70, 7
    %s73 = scalar_lea.vmem %s7, %s72
    %s74 = ssub.s32 0, 0
    %s75 = smul.u32 8, %s74
    %p76 = scmp.lt.s32.totalorder %s75, 7
    %s77 = scalar_select %p76, %s75, 7
    %s78 = scalar_lea.vmem %s1, %s77
    %s79 = ssub.s32 0, 0
    %s80 = smul.u32 8, %s79
    %s81 = ssub.s32 0, 0
    %s82 = smul.u32 8, %s81
    %p83 = scmp.lt.s32.totalorder %s82, 7
    %s84 = scalar_select %p83, %s82, 7
    %s85 = scalar_lea.vmem %s7, %s84
    %s86 = ssub.s32 0, 0
    %s87 = smul.u32 8, %s86
    %p89 = scmp.eq.s32.totalorder 0, 0
    // Predicated region
    $region34: #{_lambda_.4} parent=1 // pred_check
      %p90 = pneg %p89
    $region35: #{_lambda_.4} parent=1 // pred_check_branch
      %92 = sbr.rel (%p90) target = $region37
    $region36: #{_lambda_.4} parent=1 // pred_region
      %vm93 = vcmask 254976
      %94 = vst.msk [vmem:[#allocation2] sm:$0x3] %vm93, 0.0
      %95 = vst.msk [vmem:[#allocation3] sm:$0x3] %vm93, 0.0
    $region37: #{_lambda_.4} parent=1 // pred_fallthru
      _
    %v96 = vld [vmem:[#allocation4] sm:$0xf]
    %v97 = vld [vmem:[#allocation4 + $0x4] sm:$0xf]
    %v98 = vld [vmem:[#allocation4 + $0x8] sm:$0xf]
    %v99 = vld [vmem:[#allocation4 + $0xc] sm:$0xf]
    %v100 = vld [vmem:[#allocation4 + $0x10] sm:$0xf]
    %v101 = vld [vmem:[#allocation4 + $0x14] sm:$0xf]
    %v102 = vld [vmem:[#allocation4 + $0x18] sm:$0xf]
    %v103 = vld [vmem:[#allocation4 + $0x1c] sm:$0xf]
    %v104 = vld [vmem:[%s3] sm:$0x1]
    %v105 = vld [vmem:[%s3 + $0x1] sm:$0x1]
    %v106 = vld [vmem:[#allocation6] sm:$0xf]
    %v107 = vld [vmem:[#allocation6 + $0x4] sm:$0xf]
    %v108 = vld [vmem:[#allocation6 + $0x8] sm:$0xf]
    %v109 = vld [vmem:[#allocation6 + $0xc] sm:$0xf]
    %v110 = vld [vmem:[#allocation6 + $0x10] sm:$0xf]
    %v111 = vld [vmem:[#allocation6 + $0x14] sm:$0xf]
    %v112 = vld [vmem:[#allocation6 + $0x18] sm:$0xf]
    %v113 = vld [vmem:[#allocation6 + $0x1c] sm:$0xf]
    %v114 = vld [vmem:[%s5] sm:$0x1]
    %v115 = vld [vmem:[%s5 + $0x1] sm:$0x1]
    %v116 = vld [vmem:[%s0] sm:$0x1]
    %v117 = vld [vmem:[%s0 + $0x1] sm:$0x1]
    %v118 = vld [vmem:[%s0 + $0x2] sm:$0x1]
    %v119 = vld [vmem:[%s0 + $0x3] sm:$0x1]
    %v120 = vld [vmem:[%s0 + $0x4] sm:$0x1]
    %v121 = vld [vmem:[%s0 + $0x5] sm:$0x1]
    %v122 = vld [vmem:[%s0 + $0x6] sm:$0x1]
    %v123 = vld [vmem:[%s0 + $0x7] sm:$0x1]
    %v125 = vperm.slane %v104, 0
    %128 = vst [vmem:[#allocation1] ss:$9 sm:$0xff] %v116
    %s130 = scalar_lea.vmem [#allocation1], 1
    %131 = vst [vmem:[%s130] ss:$9 sm:$0xff] %v117
    %s133 = scalar_lea.vmem [#allocation1], 2
    %134 = vst [vmem:[%s133] ss:$9 sm:$0xff] %v118
    %s136 = scalar_lea.vmem [#allocation1], 3
    %137 = vst [vmem:[%s136] ss:$9 sm:$0xff] %v119
    %s139 = scalar_lea.vmem [#allocation1], 4
    %140 = vst [vmem:[%s139] ss:$9 sm:$0xff] %v120
    %s142 = scalar_lea.vmem [#allocation1], 5
    %143 = vst [vmem:[%s142] ss:$9 sm:$0xff] %v121
    %s145 = scalar_lea.vmem [#allocation1], 6
    %146 = vst [vmem:[%s145] ss:$9 sm:$0xff] %v122
    %s148 = scalar_lea.vmem [#allocation1], 7
    %149 = vst [vmem:[%s148] ss:$9 sm:$0xff] %v123
    %v150 = vld [vmem:[#allocation1] sm:$0xff]
    %v155 = vunpack.c.l.b16 %v96
    %v156 = vunpack.c.l.b16 %v97
    %v157 = vunpack.c.l.b16 %v98
    %v158 = vunpack.c.l.b16 %v99
    %v159 = vpack.c.b16 %v156, %v155
    %v160 = vpack.c.b16 %v158, %v157
    %vm163 = vcmask 261120
    %v164 = vsel %vm163, %v150, 0
    %166 = vmatpush.bf16.msra.mxu0 0
    %167 = vmatpush.bf16.msra.mxu0 0
    %168 = vmatpush.bf16.msra.mxu0 0
    %169 = vmatpush.bf16.msra.mxu0 0
    %170 = vmatpush.bf16.msra.mxu0 0
    %171 = vmatpush.bf16.msra.mxu0 0
    %172 = vmatpush.bf16.msra.mxu0 %v160
    %173 = vmatpush.bf16.msra.mxu0 %v159
    %174 = vmatmul.bf16.gmra.mxu0 %v164
    %v175 = vpop.f32.mrf.mxu0
    %v176 = vadd.f32 %v125, %v175
    %v177 = vpop.f32.mrf.mxu0
    %v178 = vadd.f32 %v125, %v177
    %179 = vdwg.mxu0
    %v180 = vld [vmem:[%s78] sm:$0x1]
    %v181 = vld [vmem:[%s78 + $0x1] sm:$0x1]
    %v182 = vld [vmem:[%s78 + $0x2] sm:$0x1]
    %v183 = vld [vmem:[%s78 + $0x3] sm:$0x1]
    %v184 = vld [vmem:[%s78 + $0x4] sm:$0x1]
    %v185 = vld [vmem:[%s78 + $0x5] sm:$0x1]
    %v186 = vld [vmem:[%s78 + $0x6] sm:$0x1]
    %v187 = vld [vmem:[%s78 + $0x7] sm:$0x1]
    %v189 = vperm.slane %v105, 0
    %192 = vst [vmem:[#allocation1] ss:$9 sm:$0xff] %v180
    %s194 = scalar_lea.vmem [#allocation1], 1
    %195 = vst [vmem:[%s194] ss:$9 sm:$0xff] %v181
    %s197 = scalar_lea.vmem [#allocation1], 2
    %198 = vst [vmem:[%s197] ss:$9 sm:$0xff] %v182
    %s200 = scalar_lea.vmem [#allocation1], 3
    %201 = vst [vmem:[%s200] ss:$9 sm:$0xff] %v183
    %s203 = scalar_lea.vmem [#allocation1], 4
    %204 = vst [vmem:[%s203] ss:$9 sm:$0xff] %v184
    %s206 = scalar_lea.vmem [#allocation1], 5
    %207 = vst [vmem:[%s206] ss:$9 sm:$0xff] %v185
    %s209 = scalar_lea.vmem [#allocation1], 6
    %210 = vst [vmem:[%s209] ss:$9 sm:$0xff] %v186
    %s212 = scalar_lea.vmem [#allocation1], 7
    %213 = vst [vmem:[%s212] ss:$9 sm:$0xff] %v187
    %v214 = vld [vmem:[#allocation1] sm:$0xff]
    %v219 = vunpack.c.l.b16 %v100
    %v220 = vunpack.c.l.b16 %v101
    %v221 = vunpack.c.l.b16 %v102
    %v222 = vunpack.c.l.b16 %v103
    %v223 = vpack.c.b16 %v220, %v219
    %v224 = vpack.c.b16 %v222, %v221
    %v227 = vsel %vm163, %v214, 0
    %229 = vmatpush.bf16.msra.mxu0 0
    %230 = vmatpush.bf16.msra.mxu0 0
    %231 = vmatpush.bf16.msra.mxu0 0
    %232 = vmatpush.bf16.msra.mxu0 0
    %233 = vmatpush.bf16.msra.mxu0 0
    %234 = vmatpush.bf16.msra.mxu0 0
    %235 = vmatpush.bf16.msra.mxu0 %v224
    %236 = vmatpush.bf16.msra.mxu0 %v223
    %237 = vmatmul.bf16.gmra.mxu0 %v227
    %v238 = vpop.f32.mrf.mxu0
    %v239 = vadd.f32 %v189, %v238
    %v240 = vpop.f32.mrf.mxu0
    %v241 = vadd.f32 %v189, %v240
    %242 = vdwg.mxu0
    %v243 = vld [vmem:[#allocation2] sm:$0x3]
    %v244 = vld [vmem:[#allocation3] sm:$0x3]
    %v245 = vpack.c.bf16 %v243, %v243
    %v247 = vperm.slane %v114, 0
    %v253 = vunpack.c.l.b16 %v106
    %v254 = vunpack.c.l.b16 %v107
    %v255 = vunpack.c.l.b16 %v108
    %v256 = vunpack.c.l.b16 %v109
    %v257 = vpack.c.b16 %v254, %v253
    %v258 = vpack.c.b16 %v256, %v255
    %v262 = vsel %vm163, %v245, 0
    %264 = vmatpush.bf16.msra.mxu0 0
    %265 = vmatpush.bf16.msra.mxu0 0
    %266 = vmatpush.bf16.msra.mxu0 0
    %267 = vmatpush.bf16.msra.mxu0 0
    %268 = vmatpush.bf16.msra.mxu0 0
    %269 = vmatpush.bf16.msra.mxu0 0
    %270 = vmatpush.bf16.msra.mxu0 %v258
    %271 = vmatpush.bf16.msra.mxu0 %v257
    %272 = vmatmul.bf16.gmra.mxu0 %v262
    %v273 = vpop.f32.mrf.mxu0
    %v274 = vadd.f32 %v247, %v273
    %v275 = vpop.f32.mrf.mxu0
    %276 = vdwg.mxu0
    %v277 = vadd.f32 %v176, %v274
    %v278 = vxor.u32 %v277, 2147483648
    %v279 = vmul.f32 %v278, 1.442695
    %v280 = vpow.pop %v279
    %v281 = vadd.f32 %v280, 1.0
    %v282 = vrcp.pop %v281
    %v283 = vmul.f32 %v281, %v282
    %v284 = vsub.f32 1.0, %v283
    %v285 = vmul.f32 %v282, %v284
    %v286 = vadd.f32 %v282, %v285
    %vm287 = vweird.f32 %v281
    %vm288 = vweird.f32 %v282
    %vm289 = vmor %vm287, %vm288
    %v290 = vsel %vm289, %v282, %v286
    %v291 = vand.u32 2147483647, %v281
    %vm292 = vcmp.eq.f32.partialorder %v291, 8.507059e+37
    %v293 = vand.u32 %v281, 2147483648
    %v294 = vor.u32 1.1754944e-38, %v293
    %v295 = vsel %vm292, %v294, %v290
    %v296 = vmul.f32 1.0, %v295
    %298 = vrot.lane.b32.xlu0 %v274, 64
    %v299 = vpop.permute.xlu0 %298
    %v301 = vmul.f32 %v296, %v299
    %303 = vrot.lane.b32.xlu0 %v301, 64
    %v304 = vpop.permute.xlu0 %303
    %v306 = vadd.f32 %v176, %v304
    %v307 = vtanh.pop %v306
    %v308 = vsub.f32 1.0, %v296
    %310 = vrot.lane.b32.xlu0 %v307, 96
    %v311 = vpop.permute.xlu0 %310
    %v313 = vmul.f32 %v308, %v311
    %315 = vrot.lane.b32.xlu0 %v243, 32
    %v316 = vpop.permute.xlu0 %315
    %v318 = vmul.f32 %v296, %v316
    %v319 = vadd.f32 %v313, %v318
    %v320 = vpack.c.bf16 %v244, %v244
    %v322 = vperm.slane %v115, 0
    %v328 = vunpack.c.l.b16 %v110
    %v329 = vunpack.c.l.b16 %v111
    %v330 = vunpack.c.l.b16 %v112
    %v331 = vunpack.c.l.b16 %v113
    %v332 = vpack.c.b16 %v329, %v328
    %v333 = vpack.c.b16 %v331, %v330
    %v337 = vsel %vm163, %v320, 0
    %339 = vmatpush.bf16.msra.mxu0 0
    %340 = vmatpush.bf16.msra.mxu0 0
    %341 = vmatpush.bf16.msra.mxu0 0
    %342 = vmatpush.bf16.msra.mxu0 0
    %343 = vmatpush.bf16.msra.mxu0 0
    %344 = vmatpush.bf16.msra.mxu0 0
    %345 = vmatpush.bf16.msra.mxu0 %v333
    %346 = vmatpush.bf16.msra.mxu0 %v332
    %347 = vmatmul.bf16.gmra.mxu0 %v337
    %v348 = vpop.f32.mrf.mxu0
    %v349 = vadd.f32 %v322, %v348
    %v350 = vpop.f32.mrf.mxu0
    %351 = vdwg.mxu0
    %v353 = vrot.slane %v349, 2
    %v355 = vadd.f32 %v241, %v353
    %v356 = vxor.u32 %v355, 2147483648
    %v357 = vmul.f32 %v356, 1.442695
    %v358 = vpow.pop %v357
    %v359 = vadd.f32 %v358, 1.0
    %v360 = vrcp.pop %v359
    %v361 = vmul.f32 %v359, %v360
    %v362 = vsub.f32 1.0, %v361
    %v363 = vmul.f32 %v360, %v362
    %v364 = vadd.f32 %v360, %v363
    %vm365 = vweird.f32 %v359
    %vm366 = vweird.f32 %v360
    %vm367 = vmor %vm365, %vm366
    %v368 = vsel %vm367, %v360, %v364
    %v369 = vand.u32 2147483647, %v359
    %vm370 = vcmp.eq.f32.partialorder %v369, 8.507059e+37
    %v371 = vand.u32 %v359, 2147483648
    %v372 = vor.u32 1.1754944e-38, %v371
    %v373 = vsel %vm370, %v372, %v368
    %v374 = vmul.f32 1.0, %v373
    %375 = vrot.lane.b32.xlu0 %v353, 64
    %v376 = vpop.permute.xlu0 %375
    %v378 = vmul.f32 %v374, %v376
    %380 = vrot.lane.b32.xlu0 %v378, 64
    %v381 = vpop.permute.xlu0 %380
    %v383 = vadd.f32 %v241, %v381
    %v384 = vtanh.pop %v383
    %v385 = vsub.f32 1.0, %v374
    %387 = vrot.lane.b32.xlu0 %v384, 96
    %v388 = vpop.permute.xlu0 %387
    %v390 = vmul.f32 %v385, %v388
    %v392 = vrot.slane %v244, 2
    %393 = vrot.lane.b32.xlu0 %v392, 32
    %v394 = vpop.permute.xlu0 %393
    %v396 = vmul.f32 %v374, %v394
    %v397 = vadd.f32 %v390, %v396
    %v398 = vpack.c.bf16 %v319, %v319
    %v400 = vrot.slane %v398, 3
    %vm401 = vcmask 1040384
    %v404 = vsel %vm401, %v398, %v400
    %406 = vrot.lane.b32.xlu0 %v404, 96
    %v407 = vpop.permute.xlu0 %406
    %vm409 = vcmask 253952
    %410 = vst.msk [vmem:[%s6] sm:$0x1] %vm409, %v407
    %v411 = vpack.c.bf16 %v397, %v397
    %413 = vst [vmem:[#allocation1] sm:$0xff] %v411
    %s414 = scalar_lea.vmem [#allocation1], 3
    %v415 = vld [vmem:[%s414] ss:$4 sm:$0xff]
    %417 = vrot.lane.b32.xlu0 %v415, 96
    %v418 = vpop.permute.xlu0 %417
    %s420 = scalar_lea.vmem %s85, 7
    %421 = vst.msk [vmem:[%s420] sm:$0x1] %vm409, %v418
    %v422 = vunpack.c.l.b16 %v398
    %v423 = vpack.c.b16 %v422, %v422
    %424 = vrot.lane.b32.xlu0 %v423, 96
    %v425 = vpop.permute.xlu0 %424
    %v427 = vsel %vm163, %v425, 0
    %429 = vmatpush.bf16.msra.mxu0 0
    %430 = vmatpush.bf16.msra.mxu0 0
    %431 = vmatpush.bf16.msra.mxu0 0
    %432 = vmatpush.bf16.msra.mxu0 0
    %433 = vmatpush.bf16.msra.mxu0 0
    %434 = vmatpush.bf16.msra.mxu0 0
    %435 = vmatpush.bf16.msra.mxu0 %v258
    %436 = vmatpush.bf16.msra.mxu0 %v257
    %437 = vmatmul.bf16.gmra.mxu0 %v427
    %v438 = vpop.f32.mrf.mxu0
    %v439 = vadd.f32 %v247, %v438
    %v440 = vpop.f32.mrf.mxu0
    %441 = vdwg.mxu0
    %v443 = vrot.slane %v439, 6
    %v445 = vadd.f32 %v176, %v443
    %v446 = vxor.u32 %v445, 2147483648
    %v447 = vmul.f32 %v446, 1.442695
    %v448 = vpow.pop %v447
    %v449 = vadd.f32 %v448, 1.0
    %v450 = vrcp.pop %v449
    %v451 = vmul.f32 %v449, %v450
    %v452 = vsub.f32 1.0, %v451
    %v453 = vmul.f32 %v450, %v452
    %v454 = vadd.f32 %v450, %v453
    %vm455 = vweird.f32 %v449
    %vm456 = vweird.f32 %v450
    %vm457 = vmor %vm455, %vm456
    %v458 = vsel %vm457, %v450, %v454
    %v459 = vand.u32 2147483647, %v449
    %vm460 = vcmp.eq.f32.partialorder %v459, 8.507059e+37
    %v461 = vand.u32 %v449, 2147483648
    %v462 = vor.u32 1.1754944e-38, %v461
    %v463 = vsel %vm460, %v462, %v458
    %v464 = vmul.f32 1.0, %v463
    %465 = vrot.lane.b32.xlu0 %v443, 64
    %v466 = vpop.permute.xlu0 %465
    %v468 = vmul.f32 %v464, %v466
    %470 = vrot.lane.b32.xlu0 %v468, 64
    %v471 = vpop.permute.xlu0 %470
    %v473 = vadd.f32 %v176, %v471
    %v474 = vtanh.pop %v473
    %v475 = vsub.f32 1.0, %v464
    %477 = vrot.lane.b32.xlu0 %v474, 96
    %v478 = vpop.permute.xlu0 %477
    %v480 = vmul.f32 %v475, %v478
    %v482 = vrot.slane %v319, 6
    %v484 = vmul.f32 %v464, %v482
    %v485 = vadd.f32 %v480, %v484
    %v487 = vunpack.c.l.b16 %v411
    %v488 = vpack.c.b16 %v487, %v487
    %v489 = vrot.slane %v488, 3
    %490 = vrot.lane.b32.xlu0 %v489, 96
    %v491 = vpop.permute.xlu0 %490
    %v493 = vsel %vm163, %v491, 0
    %495 = vmatpush.bf16.msra.mxu0 0
    %496 = vmatpush.bf16.msra.mxu0 0
    %497 = vmatpush.bf16.msra.mxu0 0
    %498 = vmatpush.bf16.msra.mxu0 0
    %499 = vmatpush.bf16.msra.mxu0 0
    %500 = vmatpush.bf16.msra.mxu0 0
    %501 = vmatpush.bf16.msra.mxu0 %v333
    %502 = vmatpush.bf16.msra.mxu0 %v332
    %503 = vmatmul.bf16.gmra.mxu0 %v493
    %v504 = vpop.f32.mrf.mxu0
    %v505 = vadd.f32 %v322, %v504
    %v506 = vpop.f32.mrf.mxu0
    %507 = vdwg.mxu0
    %v509 = vrot.slane %v505, 4
    %v511 = vadd.f32 %v241, %v509
    %v512 = vxor.u32 %v511, 2147483648
    %v513 = vmul.f32 %v512, 1.442695
    %v514 = vpow.pop %v513
    %v515 = vadd.f32 %v514, 1.0
    %v516 = vrcp.pop %v515
    %v517 = vmul.f32 %v515, %v516
    %v518 = vsub.f32 1.0, %v517
    %v519 = vmul.f32 %v516, %v518
    %v520 = vadd.f32 %v516, %v519
    %vm521 = vweird.f32 %v515
    %vm522 = vweird.f32 %v516
    %vm523 = vmor %vm521, %vm522
    %v524 = vsel %vm523, %v516, %v520
    %v525 = vand.u32 2147483647, %v515
    %vm526 = vcmp.eq.f32.partialorder %v525, 8.507059e+37
    %v527 = vand.u32 %v515, 2147483648
    %v528 = vor.u32 1.1754944e-38, %v527
    %v529 = vsel %vm526, %v528, %v524
    %v530 = vmul.f32 1.0, %v529
    %531 = vrot.lane.b32.xlu0 %v509, 64
    %v532 = vpop.permute.xlu0 %531
    %v534 = vmul.f32 %v530, %v532
    %536 = vrot.lane.b32.xlu0 %v534, 64
    %v537 = vpop.permute.xlu0 %536
    %v539 = vadd.f32 %v241, %v537
    %v540 = vtanh.pop %v539
    %v541 = vsub.f32 1.0, %v530
    %543 = vrot.lane.b32.xlu0 %v540, 96
    %v544 = vpop.permute.xlu0 %543
    %v546 = vmul.f32 %v541, %v544
    %v548 = vrot.slane %v397, 2
    %v550 = vmul.f32 %v530, %v548
    %v551 = vadd.f32 %v546, %v550
    %v552 = vpack.c.bf16 %v485, %v485
    %554 = vst [vmem:[#allocation1] sm:$0xff] %v552
    %s555 = scalar_lea.vmem [#allocation1], 1
    %v556 = vld [vmem:[%s555] ss:$4 sm:$0xff]
    %558 = vrot.lane.b32.xlu0 %v556, 96
    %v559 = vpop.permute.xlu0 %558
    %s561 = scalar_lea.vmem %s6, 1
    %562 = vst.msk [vmem:[%s561] sm:$0x1] %vm409, %v559
    %v563 = vpack.c.bf16 %v551, %v551
    %565 = vst [vmem:[#allocation1] sm:$0xff] %v563
    %s566 = scalar_lea.vmem [#allocation1], 2
    %v567 = vld [vmem:[%s566] ss:$4 sm:$0xff]
    %569 = vrot.lane.b32.xlu0 %v567, 96
    %v570 = vpop.permute.xlu0 %569
    %s572 = scalar_lea.vmem %s85, 6
    %573 = vst.msk [vmem:[%s572] sm:$0x1] %vm409, %v570
    %v575 = vunpack.c.l.b16 %v552
    %v576 = vpack.c.b16 %v575, %v575
    %v577 = vrot.slane %v576, 1
    %578 = vrot.lane.b32.xlu0 %v577, 96
    %v579 = vpop.permute.xlu0 %578
    %v581 = vsel %vm163, %v579, 0
    %583 = vmatpush.bf16.msra.mxu0 0
    %584 = vmatpush.bf16.msra.mxu0 0
    %585 = vmatpush.bf16.msra.mxu0 0
    %586 = vmatpush.bf16.msra.mxu0 0
    %587 = vmatpush.bf16.msra.mxu0 0
    %588 = vmatpush.bf16.msra.mxu0 0
    %589 = vmatpush.bf16.msra.mxu0 %v258
    %590 = vmatpush.bf16.msra.mxu0 %v257
    %591 = vmatmul.bf16.gmra.mxu0 %v581
    %v592 = vpop.f32.mrf.mxu0
    %v593 = vadd.f32 %v247, %v592
    %v594 = vpop.f32.mrf.mxu0
    %595 = vdwg.mxu0
    %v597 = vrot.slane %v593, 4
    %v599 = vadd.f32 %v176, %v597
    %v600 = vxor.u32 %v599, 2147483648
    %v601 = vmul.f32 %v600, 1.442695
    %v602 = vpow.pop %v601
    %v603 = vadd.f32 %v602, 1.0
    %v604 = vrcp.pop %v603
    %v605 = vmul.f32 %v603, %v604
    %v606 = vsub.f32 1.0, %v605
    %v607 = vmul.f32 %v604, %v606
    %v608 = vadd.f32 %v604, %v607
    %vm609 = vweird.f32 %v603
    %vm610 = vweird.f32 %v604
    %vm611 = vmor %vm609, %vm610
    %v612 = vsel %vm611, %v604, %v608
    %v613 = vand.u32 2147483647, %v603
    %vm614 = vcmp.eq.f32.partialorder %v613, 8.507059e+37
    %v615 = vand.u32 %v603, 2147483648
    %v616 = vor.u32 1.1754944e-38, %v615
    %v617 = vsel %vm614, %v616, %v612
    %v618 = vmul.f32 1.0, %v617
    %619 = vrot.lane.b32.xlu0 %v597, 64
    %v620 = vpop.permute.xlu0 %619
    %v622 = vmul.f32 %v618, %v620
    %624 = vrot.lane.b32.xlu0 %v622, 64
    %v625 = vpop.permute.xlu0 %624
    %v627 = vadd.f32 %v176, %v625
    %v628 = vtanh.pop %v627
    %v629 = vsub.f32 1.0, %v618
    %631 = vrot.lane.b32.xlu0 %v628, 96
    %v632 = vpop.permute.xlu0 %631
    %v634 = vmul.f32 %v629, %v632
    %v636 = vrot.slane %v485, 6
    %v638 = vmul.f32 %v618, %v636
    %v639 = vadd.f32 %v634, %v638
    %v641 = vunpack.c.l.b16 %v563
    %v642 = vpack.c.b16 %v641, %v641
    %v643 = vrot.slane %v642, 2
    %644 = vrot.lane.b32.xlu0 %v643, 96
    %v645 = vpop.permute.xlu0 %644
    %v647 = vsel %vm163, %v645, 0
    %649 = vmatpush.bf16.msra.mxu0 0
    %650 = vmatpush.bf16.msra.mxu0 0
    %651 = vmatpush.bf16.msra.mxu0 0
    %652 = vmatpush.bf16.msra.mxu0 0
    %653 = vmatpush.bf16.msra.mxu0 0
    %654 = vmatpush.bf16.msra.mxu0 0
    %655 = vmatpush.bf16.msra.mxu0 %v333
    %656 = vmatpush.bf16.msra.mxu0 %v332
    %657 = vmatmul.bf16.gmra.mxu0 %v647
    %v658 = vpop.f32.mrf.mxu0
    %v659 = vadd.f32 %v322, %v658
    %v660 = vpop.f32.mrf.mxu0
    %661 = vdwg.mxu0
    %v663 = vrot.slane %v659, 6
    %v665 = vadd.f32 %v241, %v663
    %v666 = vxor.u32 %v665, 2147483648
    %v667 = vmul.f32 %v666, 1.442695
    %v668 = vpow.pop %v667
    %v669 = vadd.f32 %v668, 1.0
    %v670 = vrcp.pop %v669
    %v671 = vmul.f32 %v669, %v670
    %v672 = vsub.f32 1.0, %v671
    %v673 = vmul.f32 %v670, %v672
    %v674 = vadd.f32 %v670, %v673
    %vm675 = vweird.f32 %v669
    %vm676 = vweird.f32 %v670
    %vm677 = vmor %vm675, %vm676
    %v678 = vsel %vm677, %v670, %v674
    %v679 = vand.u32 2147483647, %v669
    %vm680 = vcmp.eq.f32.partialorder %v679, 8.507059e+37
    %v681 = vand.u32 %v669, 2147483648
    %v682 = vor.u32 1.1754944e-38, %v681
    %v683 = vsel %vm680, %v682, %v678
    %v684 = vmul.f32 1.0, %v683
    %685 = vrot.lane.b32.xlu0 %v663, 64
    %v686 = vpop.permute.xlu0 %685
    %v688 = vmul.f32 %v684, %v686
    %690 = vrot.lane.b32.xlu0 %v688, 64
    %v691 = vpop.permute.xlu0 %690
    %v693 = vadd.f32 %v241, %v691
    %v694 = vtanh.pop %v693
    %v695 = vsub.f32 1.0, %v684
    %697 = vrot.lane.b32.xlu0 %v694, 96
    %v698 = vpop.permute.xlu0 %697
    %v700 = vmul.f32 %v695, %v698
    %v702 = vrot.slane %v551, 2
    %v704 = vmul.f32 %v684, %v702
    %v705 = vadd.f32 %v700, %v704
    %v706 = vpack.c.bf16 %v639, %v639
    %708 = vst [vmem:[#allocation1] sm:$0xff] %v706
    %s709 = scalar_lea.vmem [#allocation1], 2
    %v710 = vld [vmem:[%s709] ss:$4 sm:$0xff]
    %712 = vrot.lane.b32.xlu0 %v710, 96
    %v713 = vpop.permute.xlu0 %712
    %s715 = scalar_lea.vmem %s6, 2
    %716 = vst.msk [vmem:[%s715] sm:$0x1] %vm409, %v713
    %v717 = vpack.c.bf16 %v705, %v705
    %719 = vst [vmem:[#allocation1] sm:$0xff] %v717
    %s720 = scalar_lea.vmem [#allocation1], 1
    %v721 = vld [vmem:[%s720] ss:$4 sm:$0xff]
    %723 = vrot.lane.b32.xlu0 %v721, 96
    %v724 = vpop.permute.xlu0 %723
    %s726 = scalar_lea.vmem %s85, 5
    %727 = vst.msk [vmem:[%s726] sm:$0x1] %vm409, %v724
    %v729 = vunpack.c.l.b16 %v706
    %v730 = vpack.c.b16 %v729, %v729
    %v731 = vrot.slane %v730, 2
    %732 = vrot.lane.b32.xlu0 %v731, 96
    %v733 = vpop.permute.xlu0 %732
    %v735 = vsel %vm163, %v733, 0
    %737 = vmatpush.bf16.msra.mxu0 0
    %738 = vmatpush.bf16.msra.mxu0 0
    %739 = vmatpush.bf16.msra.mxu0 0
    %740 = vmatpush.bf16.msra.mxu0 0
    %741 = vmatpush.bf16.msra.mxu0 0
    %742 = vmatpush.bf16.msra.mxu0 0
    %743 = vmatpush.bf16.msra.mxu0 %v258
    %744 = vmatpush.bf16.msra.mxu0 %v257
    %745 = vmatmul.bf16.gmra.mxu0 %v735
    %v746 = vpop.f32.mrf.mxu0
    %v747 = vadd.f32 %v247, %v746
    %v748 = vpop.f32.mrf.mxu0
    %749 = vdwg.mxu0
    %v751 = vrot.slane %v747, 2
    %v753 = vadd.f32 %v176, %v751
    %v754 = vxor.u32 %v753, 2147483648
    %v755 = vmul.f32 %v754, 1.442695
    %v756 = vpow.pop %v755
    %v757 = vadd.f32 %v756, 1.0
    %v758 = vrcp.pop %v757
    %v759 = vmul.f32 %v757, %v758
    %v760 = vsub.f32 1.0, %v759
    %v761 = vmul.f32 %v758, %v760
    %v762 = vadd.f32 %v758, %v761
    %vm763 = vweird.f32 %v757
    %vm764 = vweird.f32 %v758
    %vm765 = vmor %vm763, %vm764
    %v766 = vsel %vm765, %v758, %v762
    %v767 = vand.u32 2147483647, %v757
    %vm768 = vcmp.eq.f32.partialorder %v767, 8.507059e+37
    %v769 = vand.u32 %v757, 2147483648
    %v770 = vor.u32 1.1754944e-38, %v769
    %v771 = vsel %vm768, %v770, %v766
    %v772 = vmul.f32 1.0, %v771
    %773 = vrot.lane.b32.xlu0 %v751, 64
    %v774 = vpop.permute.xlu0 %773
    %v776 = vmul.f32 %v772, %v774
    %778 = vrot.lane.b32.xlu0 %v776, 64
    %v779 = vpop.permute.xlu0 %778
    %v781 = vadd.f32 %v176, %v779
    %v782 = vtanh.pop %v781
    %v783 = vsub.f32 1.0, %v772
    %785 = vrot.lane.b32.xlu0 %v782, 96
    %v786 = vpop.permute.xlu0 %785
    %v788 = vmul.f32 %v783, %v786
    %v790 = vrot.slane %v639, 6
    %v792 = vmul.f32 %v772, %v790
    %v793 = vadd.f32 %v788, %v792
    %v795 = vunpack.c.l.b16 %v717
    %v796 = vpack.c.b16 %v795, %v795
    %v797 = vrot.slane %v796, 1
    %798 = vrot.lane.b32.xlu0 %v797, 96
    %v799 = vpop.permute.xlu0 %798
    %v801 = vsel %vm163, %v799, 0
    %803 = vmatpush.bf16.msra.mxu0 0
    %804 = vmatpush.bf16.msra.mxu0 0
    %805 = vmatpush.bf16.msra.mxu0 0
    %806 = vmatpush.bf16.msra.mxu0 0
    %807 = vmatpush.bf16.msra.mxu0 0
    %808 = vmatpush.bf16.msra.mxu0 0
    %809 = vmatpush.bf16.msra.mxu0 %v333
    %810 = vmatpush.bf16.msra.mxu0 %v332
    %811 = vmatmul.bf16.gmra.mxu0 %v801
    %v812 = vpop.f32.mrf.mxu0
    %v813 = vadd.f32 %v322, %v812
    %v814 = vpop.f32.mrf.mxu0
    %815 = vdwg.mxu0
    %v816 = vadd.f32 %v241, %v813
    %v817 = vxor.u32 %v816, 2147483648
    %v818 = vmul.f32 %v817, 1.442695
    %v819 = vpow.pop %v818
    %v820 = vadd.f32 %v819, 1.0
    %v821 = vrcp.pop %v820
    %v822 = vmul.f32 %v820, %v821
    %v823 = vsub.f32 1.0, %v822
    %v824 = vmul.f32 %v821, %v823
    %v825 = vadd.f32 %v821, %v824
    %vm826 = vweird.f32 %v820
    %vm827 = vweird.f32 %v821
    %vm828 = vmor %vm826, %vm827
    %v829 = vsel %vm828, %v821, %v825
    %v830 = vand.u32 2147483647, %v820
    %vm831 = vcmp.eq.f32.partialorder %v830, 8.507059e+37
    %v832 = vand.u32 %v820, 2147483648
    %v833 = vor.u32 1.1754944e-38, %v832
    %v834 = vsel %vm831, %v833, %v829
    %v835 = vmul.f32 1.0, %v834
    %837 = vrot.lane.b32.xlu0 %v813, 64
    %v838 = vpop.permute.xlu0 %837
    %v840 = vmul.f32 %v835, %v838
    %842 = vrot.lane.b32.xlu0 %v840, 64
    %v843 = vpop.permute.xlu0 %842
    %v845 = vadd.f32 %v241, %v843
    %v846 = vtanh.pop %v845
    %v847 = vsub.f32 1.0, %v835
    %849 = vrot.lane.b32.xlu0 %v846, 96
    %v850 = vpop.permute.xlu0 %849
    %v852 = vmul.f32 %v847, %v850
    %v854 = vrot.slane %v705, 2
    %v856 = vmul.f32 %v835, %v854
    %v857 = vadd.f32 %v852, %v856
    %v858 = vpack.c.bf16 %v793, %v793
    %860 = vst [vmem:[#allocation1] sm:$0xff] %v858
    %s861 = scalar_lea.vmem [#allocation1], 3
    %v862 = vld [vmem:[%s861] ss:$4 sm:$0xff]
    %864 = vrot.lane.b32.xlu0 %v862, 96
    %v865 = vpop.permute.xlu0 %864
    %s867 = scalar_lea.vmem %s6, 3
    %868 = vst.msk [vmem:[%s867] sm:$0x1] %vm409, %v865
    %v869 = vpack.c.bf16 %v857, %v857
    %v871 = vrot.slane %v869, 3
    %v874 = vsel %vm401, %v869, %v871
    %876 = vrot.lane.b32.xlu0 %v874, 96
    %v877 = vpop.permute.xlu0 %876
    %s879 = scalar_lea.vmem %s85, 4
    %880 = vst.msk [vmem:[%s879] sm:$0x1] %vm409, %v877
    %v882 = vunpack.c.l.b16 %v858
    %v883 = vpack.c.b16 %v882, %v882
    %v884 = vrot.slane %v883, 3
    %885 = vrot.lane.b32.xlu0 %v884, 96
    %v886 = vpop.permute.xlu0 %885
    %v888 = vsel %vm163, %v886, 0
    %890 = vmatpush.bf16.msra.mxu0 0
    %891 = vmatpush.bf16.msra.mxu0 0
    %892 = vmatpush.bf16.msra.mxu0 0
    %893 = vmatpush.bf16.msra.mxu0 0
    %894 = vmatpush.bf16.msra.mxu0 0
    %895 = vmatpush.bf16.msra.mxu0 0
    %896 = vmatpush.bf16.msra.mxu0 %v258
    %897 = vmatpush.bf16.msra.mxu0 %v257
    %898 = vmatmul.bf16.gmra.mxu0 %v888
    %v899 = vpop.f32.mrf.mxu0
    %v900 = vadd.f32 %v247, %v899
    %v901 = vpop.f32.mrf.mxu0
    %902 = vdwg.mxu0
    %v903 = vadd.f32 %v178, %v900
    %v904 = vxor.u32 %v903, 2147483648
    %v905 = vmul.f32 %v904, 1.442695
    %v906 = vpow.pop %v905
    %v907 = vadd.f32 %v906, 1.0
    %v908 = vrcp.pop %v907
    %v909 = vmul.f32 %v907, %v908
    %v910 = vsub.f32 1.0, %v909
    %v911 = vmul.f32 %v908, %v910
    %v912 = vadd.f32 %v908, %v911
    %vm913 = vweird.f32 %v907
    %vm914 = vweird.f32 %v908
    %vm915 = vmor %vm913, %vm914
    %v916 = vsel %vm915, %v908, %v912
    %v917 = vand.u32 2147483647, %v907
    %vm918 = vcmp.eq.f32.partialorder %v917, 8.507059e+37
    %v919 = vand.u32 %v907, 2147483648
    %v920 = vor.u32 1.1754944e-38, %v919
    %v921 = vsel %vm918, %v920, %v916
    %v922 = vmul.f32 1.0, %v921
    %924 = vrot.lane.b32.xlu0 %v900, 64
    %v925 = vpop.permute.xlu0 %924
    %v927 = vmul.f32 %v922, %v925
    %929 = vrot.lane.b32.xlu0 %v927, 64
    %v930 = vpop.permute.xlu0 %929
    %v932 = vadd.f32 %v178, %v930
    %v933 = vtanh.pop %v932
    %v934 = vsub.f32 1.0, %v922
    %936 = vrot.lane.b32.xlu0 %v933, 96
    %v937 = vpop.permute.xlu0 %936
    %v939 = vmul.f32 %v934, %v937
    %v941 = vrot.slane %v793, 6
    %v943 = vmul.f32 %v922, %v941
    %v944 = vadd.f32 %v939, %v943
    %v945 = vunpack.c.l.b16 %v869
    %v946 = vpack.c.b16 %v945, %v945
    %947 = vrot.lane.b32.xlu0 %v946, 96
    %v948 = vpop.permute.xlu0 %947
    %v950 = vsel %vm163, %v948, 0
    %952 = vmatpush.bf16.msra.mxu0 0
    %953 = vmatpush.bf16.msra.mxu0 0
    %954 = vmatpush.bf16.msra.mxu0 0
    %955 = vmatpush.bf16.msra.mxu0 0
    %956 = vmatpush.bf16.msra.mxu0 0
    %957 = vmatpush.bf16.msra.mxu0 0
    %958 = vmatpush.bf16.msra.mxu0 %v333
    %959 = vmatpush.bf16.msra.mxu0 %v332
    %960 = vmatmul.bf16.gmra.mxu0 %v950
    %v961 = vpop.f32.mrf.mxu0
    %v962 = vadd.f32 %v322, %v961
    %v963 = vpop.f32.mrf.mxu0
    %964 = vdwg.mxu0
    %v966 = vrot.slane %v962, 2
    %v968 = vadd.f32 %v239, %v966
    %v969 = vxor.u32 %v968, 2147483648
    %v970 = vmul.f32 %v969, 1.442695
    %v971 = vpow.pop %v970
    %v972 = vadd.f32 %v971, 1.0
    %v973 = vrcp.pop %v972
    %v974 = vmul.f32 %v972, %v973
    %v975 = vsub.f32 1.0, %v974
    %v976 = vmul.f32 %v973, %v975
    %v977 = vadd.f32 %v973, %v976
    %vm978 = vweird.f32 %v972
    %vm979 = vweird.f32 %v973
    %vm980 = vmor %vm978, %vm979
    %v981 = vsel %vm980, %v973, %v977
    %v982 = vand.u32 2147483647, %v972
    %vm983 = vcmp.eq.f32.partialorder %v982, 8.507059e+37
    %v984 = vand.u32 %v972, 2147483648
    %v985 = vor.u32 1.1754944e-38, %v984
    %v986 = vsel %vm983, %v985, %v981
    %v987 = vmul.f32 1.0, %v986
    %988 = vrot.lane.b32.xlu0 %v966, 64
    %v989 = vpop.permute.xlu0 %988
    %v991 = vmul.f32 %v987, %v989
    %993 = vrot.lane.b32.xlu0 %v991, 64
    %v994 = vpop.permute.xlu0 %993
    %v996 = vadd.f32 %v239, %v994
    %v997 = vtanh.pop %v996
    %v998 = vsub.f32 1.0, %v987
    %1000 = vrot.lane.b32.xlu0 %v997, 96
    %v1001 = vpop.permute.xlu0 %1000
    %v1003 = vmul.f32 %v998, %v1001
    %v1005 = vrot.slane %v857, 2
    %v1007 = vmul.f32 %v987, %v1005
    %v1008 = vadd.f32 %v1003, %v1007
    %v1009 = vpack.c.bf16 %v944, %v944
    %v1011 = vrot.slane %v1009, 3
    %v1014 = vsel %vm401, %v1009, %v1011
    %1016 = vrot.lane.b32.xlu0 %v1014, 96
    %v1017 = vpop.permute.xlu0 %1016
    %s1019 = scalar_lea.vmem %s6, 4
    %1020 = vst.msk [vmem:[%s1019] sm:$0x1] %vm409, %v1017
    %v1021 = vpack.c.bf16 %v1008, %v1008
    %1023 = vst [vmem:[#allocation1] sm:$0xff] %v1021
    %s1024 = scalar_lea.vmem [#allocation1], 3
    %v1025 = vld [vmem:[%s1024] ss:$4 sm:$0xff]
    %1027 = vrot.lane.b32.xlu0 %v1025, 96
    %v1028 = vpop.permute.xlu0 %1027
    %s1030 = scalar_lea.vmem %s85, 3
    %1031 = vst.msk [vmem:[%s1030] sm:$0x1] %vm409, %v1028
    %v1032 = vunpack.c.l.b16 %v1009
    %v1033 = vpack.c.b16 %v1032, %v1032
    %1034 = vrot.lane.b32.xlu0 %v1033, 96
    %v1035 = vpop.permute.xlu0 %1034
    %v1037 = vsel %vm163, %v1035, 0
    %1039 = vmatpush.bf16.msra.mxu0 0
    %1040 = vmatpush.bf16.msra.mxu0 0
    %1041 = vmatpush.bf16.msra.mxu0 0
    %1042 = vmatpush.bf16.msra.mxu0 0
    %1043 = vmatpush.bf16.msra.mxu0 0
    %1044 = vmatpush.bf16.msra.mxu0 0
    %1045 = vmatpush.bf16.msra.mxu0 %v258
    %1046 = vmatpush.bf16.msra.mxu0 %v257
    %1047 = vmatmul.bf16.gmra.mxu0 %v1037
    %v1048 = vpop.f32.mrf.mxu0
    %v1049 = vadd.f32 %v247, %v1048
    %v1050 = vpop.f32.mrf.mxu0
    %1051 = vdwg.mxu0
    %v1053 = vrot.slane %v1049, 6
    %v1055 = vadd.f32 %v178, %v1053
    %v1056 = vxor.u32 %v1055, 2147483648
    %v1057 = vmul.f32 %v1056, 1.442695
    %v1058 = vpow.pop %v1057
    %v1059 = vadd.f32 %v1058, 1.0
    %v1060 = vrcp.pop %v1059
    %v1061 = vmul.f32 %v1059, %v1060
    %v1062 = vsub.f32 1.0, %v1061
    %v1063 = vmul.f32 %v1060, %v1062
    %v1064 = vadd.f32 %v1060, %v1063
    %vm1065 = vweird.f32 %v1059
    %vm1066 = vweird.f32 %v1060
    %vm1067 = vmor %vm1065, %vm1066
    %v1068 = vsel %vm1067, %v1060, %v1064
    %v1069 = vand.u32 2147483647, %v1059
    %vm1070 = vcmp.eq.f32.partialorder %v1069, 8.507059e+37
    %v1071 = vand.u32 %v1059, 2147483648
    %v1072 = vor.u32 1.1754944e-38, %v1071
    %v1073 = vsel %vm1070, %v1072, %v1068
    %v1074 = vmul.f32 1.0, %v1073
    %1075 = vrot.lane.b32.xlu0 %v1053, 64
    %v1076 = vpop.permute.xlu0 %1075
    %v1078 = vmul.f32 %v1074, %v1076
    %1080 = vrot.lane.b32.xlu0 %v1078, 64
    %v1081 = vpop.permute.xlu0 %1080
    %v1083 = vadd.f32 %v178, %v1081
    %v1084 = vtanh.pop %v1083
    %v1085 = vsub.f32 1.0, %v1074
    %1087 = vrot.lane.b32.xlu0 %v1084, 96
    %v1088 = vpop.permute.xlu0 %1087
    %v1090 = vmul.f32 %v1085, %v1088
    %v1092 = vrot.slane %v944, 6
    %v1094 = vmul.f32 %v1074, %v1092
    %v1095 = vadd.f32 %v1090, %v1094
    %v1097 = vunpack.c.l.b16 %v1021
    %v1098 = vpack.c.b16 %v1097, %v1097
    %v1099 = vrot.slane %v1098, 3
    %1100 = vrot.lane.b32.xlu0 %v1099, 96
    %v1101 = vpop.permute.xlu0 %1100
    %v1103 = vsel %vm163, %v1101, 0
    %1105 = vmatpush.bf16.msra.mxu0 0
    %1106 = vmatpush.bf16.msra.mxu0 0
    %1107 = vmatpush.bf16.msra.mxu0 0
    %1108 = vmatpush.bf16.msra.mxu0 0
    %1109 = vmatpush.bf16.msra.mxu0 0
    %1110 = vmatpush.bf16.msra.mxu0 0
    %1111 = vmatpush.bf16.msra.mxu0 %v333
    %1112 = vmatpush.bf16.msra.mxu0 %v332
    %1113 = vmatmul.bf16.gmra.mxu0 %v1103
    %v1114 = vpop.f32.mrf.mxu0
    %v1115 = vadd.f32 %v322, %v1114
    %v1116 = vpop.f32.mrf.mxu0
    %1117 = vdwg.mxu0
    %v1119 = vrot.slane %v1115, 4
    %v1121 = vadd.f32 %v239, %v1119
    %v1122 = vxor.u32 %v1121, 2147483648
    %v1123 = vmul.f32 %v1122, 1.442695
    %v1124 = vpow.pop %v1123
    %v1125 = vadd.f32 %v1124, 1.0
    %v1126 = vrcp.pop %v1125
    %v1127 = vmul.f32 %v1125, %v1126
    %v1128 = vsub.f32 1.0, %v1127
    %v1129 = vmul.f32 %v1126, %v1128
    %v1130 = vadd.f32 %v1126, %v1129
    %vm1131 = vweird.f32 %v1125
    %vm1132 = vweird.f32 %v1126
    %vm1133 = vmor %vm1131, %vm1132
    %v1134 = vsel %vm1133, %v1126, %v1130
    %v1135 = vand.u32 2147483647, %v1125
    %vm1136 = vcmp.eq.f32.partialorder %v1135, 8.507059e+37
    %v1137 = vand.u32 %v1125, 2147483648
    %v1138 = vor.u32 1.1754944e-38, %v1137
    %v1139 = vsel %vm1136, %v1138, %v1134
    %v1140 = vmul.f32 1.0, %v1139
    %1141 = vrot.lane.b32.xlu0 %v1119, 64
    %v1142 = vpop.permute.xlu0 %1141
    %v1144 = vmul.f32 %v1140, %v1142
    %1146 = vrot.lane.b32.xlu0 %v1144, 64
    %v1147 = vpop.permute.xlu0 %1146
    %v1149 = vadd.f32 %v239, %v1147
    %v1150 = vtanh.pop %v1149
    %v1151 = vsub.f32 1.0, %v1140
    %1153 = vrot.lane.b32.xlu0 %v1150, 96
    %v1154 = vpop.permute.xlu0 %1153
    %v1156 = vmul.f32 %v1151, %v1154
    %v1158 = vrot.slane %v1008, 2
    %v1160 = vmul.f32 %v1140, %v1158
    %v1161 = vadd.f32 %v1156, %v1160
    %v1162 = vpack.c.bf16 %v1095, %v1095
    %1164 = vst [vmem:[#allocation1] sm:$0xff] %v1162
    %s1165 = scalar_lea.vmem [#allocation1], 1
    %v1166 = vld [vmem:[%s1165] ss:$4 sm:$0xff]
    %1168 = vrot.lane.b32.xlu0 %v1166, 96
    %v1169 = vpop.permute.xlu0 %1168
    %s1171 = scalar_lea.vmem %s6, 5
    %1172 = vst.msk [vmem:[%s1171] sm:$0x1] %vm409, %v1169
    %v1173 = vpack.c.bf16 %v1161, %v1161
    %1175 = vst [vmem:[#allocation1] sm:$0xff] %v1173
    %s1176 = scalar_lea.vmem [#allocation1], 2
    %v1177 = vld [vmem:[%s1176] ss:$4 sm:$0xff]
    %1179 = vrot.lane.b32.xlu0 %v1177, 96
    %v1180 = vpop.permute.xlu0 %1179
    %s1182 = scalar_lea.vmem %s85, 2
    %1183 = vst.msk [vmem:[%s1182] sm:$0x1] %vm409, %v1180
    %v1185 = vunpack.c.l.b16 %v1162
    %v1186 = vpack.c.b16 %v1185, %v1185
    %v1187 = vrot.slane %v1186, 1
    %1188 = vrot.lane.b32.xlu0 %v1187, 96
    %v1189 = vpop.permute.xlu0 %1188
    %v1191 = vsel %vm163, %v1189, 0
    %1193 = vmatpush.bf16.msra.mxu0 0
    %1194 = vmatpush.bf16.msra.mxu0 0
    %1195 = vmatpush.bf16.msra.mxu0 0
    %1196 = vmatpush.bf16.msra.mxu0 0
    %1197 = vmatpush.bf16.msra.mxu0 0
    %1198 = vmatpush.bf16.msra.mxu0 0
    %1199 = vmatpush.bf16.msra.mxu0 %v258
    %1200 = vmatpush.bf16.msra.mxu0 %v257
    %1201 = vmatmul.bf16.gmra.mxu0 %v1191
    %v1202 = vpop.f32.mrf.mxu0
    %v1203 = vadd.f32 %v247, %v1202
    %v1204 = vpop.f32.mrf.mxu0
    %1205 = vdwg.mxu0
    %v1207 = vrot.slane %v1203, 4
    %v1209 = vadd.f32 %v178, %v1207
    %v1210 = vxor.u32 %v1209, 2147483648
    %v1211 = vmul.f32 %v1210, 1.442695
    %v1212 = vpow.pop %v1211
    %v1213 = vadd.f32 %v1212, 1.0
    %v1214 = vrcp.pop %v1213
    %v1215 = vmul.f32 %v1213, %v1214
    %v1216 = vsub.f32 1.0, %v1215
    %v1217 = vmul.f32 %v1214, %v1216
    %v1218 = vadd.f32 %v1214, %v1217
    %vm1219 = vweird.f32 %v1213
    %vm1220 = vweird.f32 %v1214
    %vm1221 = vmor %vm1219, %vm1220
    %v1222 = vsel %vm1221, %v1214, %v1218
    %v1223 = vand.u32 2147483647, %v1213
    %vm1224 = vcmp.eq.f32.partialorder %v1223, 8.507059e+37
    %v1225 = vand.u32 %v1213, 2147483648
    %v1226 = vor.u32 1.1754944e-38, %v1225
    %v1227 = vsel %vm1224, %v1226, %v1222
    %v1228 = vmul.f32 1.0, %v1227
    %1229 = vrot.lane.b32.xlu0 %v1207, 64
    %v1230 = vpop.permute.xlu0 %1229
    %v1232 = vmul.f32 %v1228, %v1230
    %1234 = vrot.lane.b32.xlu0 %v1232, 64
    %v1235 = vpop.permute.xlu0 %1234
    %v1237 = vadd.f32 %v178, %v1235
    %v1238 = vtanh.pop %v1237
    %v1239 = vsub.f32 1.0, %v1228
    %1241 = vrot.lane.b32.xlu0 %v1238, 96
    %v1242 = vpop.permute.xlu0 %1241
    %v1244 = vmul.f32 %v1239, %v1242
    %v1246 = vrot.slane %v1095, 6
    %v1248 = vmul.f32 %v1228, %v1246
    %v1249 = vadd.f32 %v1244, %v1248
    %v1251 = vunpack.c.l.b16 %v1173
    %v1252 = vpack.c.b16 %v1251, %v1251
    %v1253 = vrot.slane %v1252, 2
    %1254 = vrot.lane.b32.xlu0 %v1253, 96
    %v1255 = vpop.permute.xlu0 %1254
    %v1257 = vsel %vm163, %v1255, 0
    %1259 = vmatpush.bf16.msra.mxu0 0
    %1260 = vmatpush.bf16.msra.mxu0 0
    %1261 = vmatpush.bf16.msra.mxu0 0
    %1262 = vmatpush.bf16.msra.mxu0 0
    %1263 = vmatpush.bf16.msra.mxu0 0
    %1264 = vmatpush.bf16.msra.mxu0 0
    %1265 = vmatpush.bf16.msra.mxu0 %v333
    %1266 = vmatpush.bf16.msra.mxu0 %v332
    %1267 = vmatmul.bf16.gmra.mxu0 %v1257
    %v1268 = vpop.f32.mrf.mxu0
    %v1269 = vadd.f32 %v322, %v1268
    %v1270 = vpop.f32.mrf.mxu0
    %1271 = vdwg.mxu0
    %v1273 = vrot.slane %v1269, 6
    %v1275 = vadd.f32 %v239, %v1273
    %v1276 = vxor.u32 %v1275, 2147483648
    %v1277 = vmul.f32 %v1276, 1.442695
    %v1278 = vpow.pop %v1277
    %v1279 = vadd.f32 %v1278, 1.0
    %v1280 = vrcp.pop %v1279
    %v1281 = vmul.f32 %v1279, %v1280
    %v1282 = vsub.f32 1.0, %v1281
    %v1283 = vmul.f32 %v1280, %v1282
    %v1284 = vadd.f32 %v1280, %v1283
    %vm1285 = vweird.f32 %v1279
    %vm1286 = vweird.f32 %v1280
    %vm1287 = vmor %vm1285, %vm1286
    %v1288 = vsel %vm1287, %v1280, %v1284
    %v1289 = vand.u32 2147483647, %v1279
    %vm1290 = vcmp.eq.f32.partialorder %v1289, 8.507059e+37
    %v1291 = vand.u32 %v1279, 2147483648
    %v1292 = vor.u32 1.1754944e-38, %v1291
    %v1293 = vsel %vm1290, %v1292, %v1288
    %v1294 = vmul.f32 1.0, %v1293
    %1295 = vrot.lane.b32.xlu0 %v1273, 64
    %v1296 = vpop.permute.xlu0 %1295
    %v1298 = vmul.f32 %v1294, %v1296
    %1300 = vrot.lane.b32.xlu0 %v1298, 64
    %v1301 = vpop.permute.xlu0 %1300
    %v1303 = vadd.f32 %v239, %v1301
    %v1304 = vtanh.pop %v1303
    %v1305 = vsub.f32 1.0, %v1294
    %1307 = vrot.lane.b32.xlu0 %v1304, 96
    %v1308 = vpop.permute.xlu0 %1307
    %v1310 = vmul.f32 %v1305, %v1308
    %v1312 = vrot.slane %v1161, 2
    %v1314 = vmul.f32 %v1294, %v1312
    %v1315 = vadd.f32 %v1310, %v1314
    %v1316 = vpack.c.bf16 %v1249, %v1249
    %1318 = vst [vmem:[#allocation1] sm:$0xff] %v1316
    %s1319 = scalar_lea.vmem [#allocation1], 2
    %v1320 = vld [vmem:[%s1319] ss:$4 sm:$0xff]
    %1322 = vrot.lane.b32.xlu0 %v1320, 96
    %v1323 = vpop.permute.xlu0 %1322
    %s1325 = scalar_lea.vmem %s6, 6
    %1326 = vst.msk [vmem:[%s1325] sm:$0x1] %vm409, %v1323
    %v1327 = vpack.c.bf16 %v1315, %v1315
    %1329 = vst [vmem:[#allocation1] sm:$0xff] %v1327
    %s1330 = scalar_lea.vmem [#allocation1], 1
    %v1331 = vld [vmem:[%s1330] ss:$4 sm:$0xff]
    %1333 = vrot.lane.b32.xlu0 %v1331, 96
    %v1334 = vpop.permute.xlu0 %1333
    %s1336 = scalar_lea.vmem %s85, 1
    %1337 = vst.msk [vmem:[%s1336] sm:$0x1] %vm409, %v1334
    %v1339 = vunpack.c.l.b16 %v1316
    %v1340 = vpack.c.b16 %v1339, %v1339
    %v1341 = vrot.slane %v1340, 2
    %1342 = vrot.lane.b32.xlu0 %v1341, 96
    %v1343 = vpop.permute.xlu0 %1342
    %v1345 = vsel %vm163, %v1343, 0
    %1347 = vmatpush.bf16.msra.mxu0 0
    %1348 = vmatpush.bf16.msra.mxu0 0
    %1349 = vmatpush.bf16.msra.mxu0 0
    %1350 = vmatpush.bf16.msra.mxu0 0
    %1351 = vmatpush.bf16.msra.mxu0 0
    %1352 = vmatpush.bf16.msra.mxu0 0
    %1353 = vmatpush.bf16.msra.mxu0 %v258
    %1354 = vmatpush.bf16.msra.mxu0 %v257
    %1355 = vmatmul.bf16.gmra.mxu0 %v1345
    %v1356 = vpop.f32.mrf.mxu0
    %v1357 = vadd.f32 %v247, %v1356
    %v1358 = vpop.f32.mrf.mxu0
    %1359 = vdwg.mxu0
    %v1361 = vrot.slane %v1357, 2
    %v1363 = vadd.f32 %v178, %v1361
    %v1364 = vxor.u32 %v1363, 2147483648
    %v1365 = vmul.f32 %v1364, 1.442695
    %v1366 = vpow.pop %v1365
    %v1367 = vadd.f32 %v1366, 1.0
    %v1368 = vrcp.pop %v1367
    %v1369 = vmul.f32 %v1367, %v1368
    %v1370 = vsub.f32 1.0, %v1369
    %v1371 = vmul.f32 %v1368, %v1370
    %v1372 = vadd.f32 %v1368, %v1371
    %vm1373 = vweird.f32 %v1367
    %vm1374 = vweird.f32 %v1368
    %vm1375 = vmor %vm1373, %vm1374
    %v1376 = vsel %vm1375, %v1368, %v1372
    %v1377 = vand.u32 2147483647, %v1367
    %vm1378 = vcmp.eq.f32.partialorder %v1377, 8.507059e+37
    %v1379 = vand.u32 %v1367, 2147483648
    %v1380 = vor.u32 1.1754944e-38, %v1379
    %v1381 = vsel %vm1378, %v1380, %v1376
    %v1382 = vmul.f32 1.0, %v1381
    %1383 = vrot.lane.b32.xlu0 %v1361, 64
    %v1384 = vpop.permute.xlu0 %1383
    %v1386 = vmul.f32 %v1382, %v1384
    %1388 = vrot.lane.b32.xlu0 %v1386, 64
    %v1389 = vpop.permute.xlu0 %1388
    %v1391 = vadd.f32 %v178, %v1389
    %v1392 = vtanh.pop %v1391
    %v1393 = vsub.f32 1.0, %v1382
    %1395 = vrot.lane.b32.xlu0 %v1392, 96
    %v1396 = vpop.permute.xlu0 %1395
    %v1398 = vmul.f32 %v1393, %v1396
    %v1400 = vrot.slane %v1249, 6
    %v1402 = vmul.f32 %v1382, %v1400
    %v1403 = vadd.f32 %v1398, %v1402
    %v1405 = vunpack.c.l.b16 %v1327
    %v1406 = vpack.c.b16 %v1405, %v1405
    %v1407 = vrot.slane %v1406, 1
    %1408 = vrot.lane.b32.xlu0 %v1407, 96
    %v1409 = vpop.permute.xlu0 %1408
    %v1411 = vsel %vm163, %v1409, 0
    %1413 = vmatpush.bf16.msra.mxu0 0
    %1414 = vmatpush.bf16.msra.mxu0 0
    %1415 = vmatpush.bf16.msra.mxu0 0
    %1416 = vmatpush.bf16.msra.mxu0 0
    %1417 = vmatpush.bf16.msra.mxu0 0
    %1418 = vmatpush.bf16.msra.mxu0 0
    %1419 = vmatpush.bf16.msra.mxu0 %v333
    %1420 = vmatpush.bf16.msra.mxu0 %v332
    %1421 = vmatmul.bf16.gmra.mxu0 %v1411
    %v1422 = vpop.f32.mrf.mxu0
    %v1423 = vadd.f32 %v322, %v1422
    %v1424 = vpop.f32.mrf.mxu0
    %1425 = vdwg.mxu0
    %v1426 = vadd.f32 %v239, %v1423
    %v1427 = vxor.u32 %v1426, 2147483648
    %v1428 = vmul.f32 %v1427, 1.442695
    %v1429 = vpow.pop %v1428
    %v1430 = vadd.f32 %v1429, 1.0
    %v1431 = vrcp.pop %v1430
    %v1432 = vmul.f32 %v1430, %v1431
    %v1433 = vsub.f32 1.0, %v1432
    %v1434 = vmul.f32 %v1431, %v1433
    %v1435 = vadd.f32 %v1431, %v1434
    %vm1436 = vweird.f32 %v1430
    %vm1437 = vweird.f32 %v1431
    %vm1438 = vmor %vm1436, %vm1437
    %v1439 = vsel %vm1438, %v1431, %v1435
    %v1440 = vand.u32 2147483647, %v1430
    %vm1441 = vcmp.eq.f32.partialorder %v1440, 8.507059e+37
    %v1442 = vand.u32 %v1430, 2147483648
    %v1443 = vor.u32 1.1754944e-38, %v1442
    %v1444 = vsel %vm1441, %v1443, %v1439
    %v1445 = vmul.f32 1.0, %v1444
    %1447 = vrot.lane.b32.xlu0 %v1423, 64
    %v1448 = vpop.permute.xlu0 %1447
    %v1450 = vmul.f32 %v1445, %v1448
    %1452 = vrot.lane.b32.xlu0 %v1450, 64
    %v1453 = vpop.permute.xlu0 %1452
    %v1455 = vadd.f32 %v239, %v1453
    %v1456 = vtanh.pop %v1455
    %v1457 = vsub.f32 1.0, %v1445
    %1459 = vrot.lane.b32.xlu0 %v1456, 96
    %v1460 = vpop.permute.xlu0 %1459
    %v1462 = vmul.f32 %v1457, %v1460
    %v1464 = vrot.slane %v1315, 2
    %v1466 = vmul.f32 %v1445, %v1464
    %v1467 = vadd.f32 %v1462, %v1466
    %v1468 = vpack.c.bf16 %v1403, %v1403
    %1470 = vst [vmem:[#allocation1] sm:$0xff] %v1468
    %s1471 = scalar_lea.vmem [#allocation1], 3
    %v1472 = vld [vmem:[%s1471] ss:$4 sm:$0xff]
    %1474 = vrot.lane.b32.xlu0 %v1472, 96
    %v1475 = vpop.permute.xlu0 %1474
    %s1477 = scalar_lea.vmem %s6, 7
    %1478 = vst.msk [vmem:[%s1477] sm:$0x1] %vm409, %v1475
    %v1479 = vpack.c.bf16 %v1467, %v1467
    %v1481 = vrot.slane %v1479, 3
    %v1484 = vsel %vm401, %v1479, %v1481
    %1486 = vrot.lane.b32.xlu0 %v1484, 96
    %v1487 = vpop.permute.xlu0 %1486
    %1489 = vst.msk [vmem:[%s85] sm:$0x1] %vm409, %v1487
    %1491 = vrot.lane.b32.xlu0 %v1403, 96
    %v1492 = vpop.permute.xlu0 %1491
    %vm1494 = vcmask 261126
    %1495 = vst.msk [vmem:[#allocation2 - $0x6] sm:$0xc0] %vm1494, %v1492
    %1497 = vrot.lane.b32.xlu0 %v1467, 96
    %v1498 = vpop.permute.xlu0 %1497
    %vm1500 = vcmask 254976
    %1501 = vst.msk [vmem:[#allocation3] sm:$0x3] %vm1500, %v1498
    %s1502 = ssub.s32 0, 0
    %s1503 = smul.u32 8, %s1502
    %p1504 = scmp.lt.s32.totalorder %s1503, 7
    %s1505 = scalar_select %p1504, %s1503, 7
    %s1506 = scalar_lea.vmem %s7, %s1505
    // Predicated region
    $region38: #{_lambda_.4} parent=1 // pred_check
      _
    $region39: #{_lambda_.4} parent=1 // pred_check_branch
      %1508 = sbr.rel (0) target = $region41
    $region40: #{_lambda_.4} parent=1 // pred_region
      _
    $region41: #{_lambda_.4} parent=1 // pred_fallthru
      _
    // Predicated region
    $region42: #{_lambda_.4} parent=1 // pred_check
      _
    $region43: #{_lambda_.4} parent=1 // pred_check_branch
      %1510 = sbr.rel (0) target = $region45
    $region44: #{_lambda_.4} parent=1 // pred_region
      %s1511 = ssub.s32 0, 0
      %s1512 = smul.u32 8, %s1511
    $region45: #{_lambda_.4} parent=1 // pred_fallthru
      _
    // Predicated region
    $region46: #{_lambda_.4} parent=1 // pred_check
      _
    $region47: #{_lambda_.4} parent=1 // pred_check_branch
      %1514 = sbr.rel (0) target = $region49
    $region48: #{_lambda_.4} parent=1 // pred_region
      _
    $region49: #{_lambda_.4} parent=1 // pred_fallthru
      _
    // Predicated region
    $region50: #{_lambda_.4} parent=1 // pred_check
      _
    $region51: #{_lambda_.4} parent=1 // pred_check_branch
      %1516 = sbr.rel (0) target = $region53
    $region52: #{_lambda_.4} parent=1 // pred_region
      %s1517 = ssub.s32 0, 0
      %s1518 = smul.u32 8, %s1517
      %p1519 = scmp.lt.s32.totalorder %s1518, 7
      %s1520 = scalar_select %p1519, %s1518, 7
      %s1521 = scalar_lea.vmem %s7, %s1520
    $region53: #{_lambda_.4} parent=1 // pred_fallthru
      _
    %1522 = vsyncpa [#allocation5], 1
    %1523 = vsyncpa [#allocation7], 1

// kernel: _lambda_.5
$region0: #{_lambda_.5}
  #allocation0 [shape = 'u32[]', space=smem, size = 0x4, offset = 0x4, fixed_abs, tag = 'smem constant byte address 0x4 - core index']
  #allocation1 [shape = 'u32[72,128]{1,0:T(1,128)}', space=vmem, size = 0x9000, scoped, tag = 'internal scratch']
  #allocation2 [shape = 'f32[2,32]{1,0:T(2,128)}', space=vmem, size = 0x400, scoped, tag = 'scratch operand']
  #allocation3 [shape = 'f32[2,32]{1,0:T(2,128)}', space=vmem, size = 0x400, scoped, tag = 'scratch operand']
  %s0 = inlined_call_operand.vmem [shape: bf16[8,2,32], index: 0, kind: input, shape index: {}, may-alias: {0,2}]
  %s1 = inlined_call_operand.vmem [shape: bf16[8,2,32], index: 1, kind: input, shape index: {}, may-alias: {1,3}]
  %s2 = inlined_call_operand.vmem [shape: bf16[8,2,32], index: 2, kind: input, shape index: {}, may-alias: {0,2}]
  %s3 = inlined_call_operand.vmem [shape: bf16[8,2,32], index: 3, kind: input, shape index: {}, may-alias: {1,3}]
  %s4 = inlined_call_operand.hbm [shape: bf16[2,64,96], index: 4, kind: input, shape index: {}]
  %s5 = inlined_call_operand.vmem [shape: f32[2,1,96], index: 5, kind: input, shape index: {}]
  %s6 = inlined_call_operand.hbm [shape: bf16[2,32,96], index: 6, kind: input, shape index: {}]
  %s7 = inlined_call_operand.vmem [shape: f32[2,1,96], index: 7, kind: input, shape index: {}]
  %s8 = inlined_call_operand.vmem [shape: f32[8,2,32], index: 8, kind: output, shape index: {0}]
  %s9 = inlined_call_operand.vmem [shape: f32[8,2,32], index: 9, kind: output, shape index: {1}]
  %10 = xla_tuple %s8, %s9
  %s11 = sld [smem:[#allocation0]]
  $region62: #{_lambda_.5} parent=0
    _
  %s13 = ssub.s32 1, %s11
  %s14 = scalar_select 0, %s13, %s11
  $region1: #{_lambda_.5} parent=0
    #allocation4 [shape = 'u8[32768]{0}', space=vmem, size = 0x8000, scoped, tag = 'input window, operand 4, single buffered']
    #allocation5 [shape = 's32[1]{0}', space=sflag, size = 0x4, scoped, tag = 'scoped memory for _lambda_.5']
    #allocation6 [shape = 'u8[16384]{0}', space=vmem, size = 0x4000, scoped, tag = 'input window, operand 6, single buffered']
    #allocation7 [shape = 's32[1]{0}', space=sflag, size = 0x4, scoped, tag = 'scoped memory for _lambda_.5']
    %15 = vsyncpa [#allocation5], 0
    %16 = vsyncpa [#allocation7], 0
    // Predicated region
    $region2: #{_lambda_.5} parent=1 // pred_check
      _
    $region3: #{_lambda_.5} parent=1 // pred_check_branch
      %18 = sbr.rel (0) target = $region5
    $region4: #{_lambda_.5} parent=1 // pred_region
      _
    $region5: #{_lambda_.5} parent=1 // pred_fallthru
      _
    // Predicated region
    $region6: #{_lambda_.5} parent=1 // pred_check
      _
    $region7: #{_lambda_.5} parent=1 // pred_check_branch
      %20 = sbr.rel (0) target = $region9
    $region8: #{_lambda_.5} parent=1 // pred_region
      _
    $region9: #{_lambda_.5} parent=1 // pred_fallthru
      _
    // Predicated region
    $region10: #{_lambda_.5} parent=1 // pred_check
      _
    $region11: #{_lambda_.5} parent=1 // pred_check_branch
      %22 = sbr.rel (0) target = $region13
    $region12: #{_lambda_.5} parent=1 // pred_region
      %s23 = ssub.s32 0, 0
      %s24 = smul.u32 8, %s23
      %p25 = scmp.lt.s32.totalorder %s24, 7
      %s26 = scalar_select %p25, %s24, 7
      %s27 = scalar_lea.vmem %s2, %s26
      %s28 = ssub.s32 0, 0
      %s29 = smul.u32 8, %s28
    $region13: #{_lambda_.5} parent=1 // pred_fallthru
      _
    // Predicated region
    $region14: #{_lambda_.5} parent=1 // pred_check
      _
    $region15: #{_lambda_.5} parent=1 // pred_check_branch
      %31 = sbr.rel (0) target = $region17
    $region16: #{_lambda_.5} parent=1 // pred_region
      %s32 = ssub.s32 0, 0
      %s33 = smul.u32 8, %s32
      %p34 = scmp.lt.s32.totalorder %s33, 7
      %s35 = scalar_select %p34, %s33, 7
      %s36 = scalar_lea.vmem %s3, %s35
      %s37 = ssub.s32 0, 0
      %s38 = smul.u32 8, %s37
    $region17: #{_lambda_.5} parent=1 // pred_fallthru
      _
    // Predicated region
    $region18: #{_lambda_.5} parent=1 // pred_check
      _
    $region19: #{_lambda_.5} parent=1 // pred_check_branch
      %40 = sbr.rel (0) target = $region21
    $region20: #{_lambda_.5} parent=1 // pred_region
      %42 = vsyncadd [#allocation5], 0
      %s43 = sshll.u32 %s4, 4
      %s44 = int_to_ptr.hbm [resolvable:$true] %s43
      %s45 = sshll.u32 [#allocation4], 4
      %s46 = int_to_ptr.vmem [resolvable:$true] %s45
      %51 = dma.hbm_to_vmem [thread:$0]  %s44, 1024, %s46, [#allocation5], 64, 64, 4
    $region21: #{_lambda_.5} parent=1 // pred_fallthru
      _
    // Predicated region
    $region22: #{_lambda_.5} parent=1 // pred_check
      _
    $region23: #{_lambda_.5} parent=1 // pred_check_branch
      %53 = sbr.rel (0) target = $region25
    $region24: #{_lambda_.5} parent=1 // pred_region
      _
    $region25: #{_lambda_.5} parent=1 // pred_fallthru
      _
    // Predicated region
    $region26: #{_lambda_.5} parent=1 // pred_check
      _
    $region27: #{_lambda_.5} parent=1 // pred_check_branch
      %55 = sbr.rel (0) target = $region29
    $region28: #{_lambda_.5} parent=1 // pred_region
      %57 = vsyncadd [#allocation7], 0
      %s58 = sshll.u32 %s6, 4
      %s59 = int_to_ptr.hbm [resolvable:$true] %s58
      %s60 = sshll.u32 [#allocation6], 4
      %s61 = int_to_ptr.vmem [resolvable:$true] %s60
      %66 = dma.hbm_to_vmem [thread:$0]  %s59, 512, %s61, [#allocation7], 64, 64, 4
    $region29: #{_lambda_.5} parent=1 // pred_fallthru
      _
    // Predicated region
    $region30: #{_lambda_.5} parent=1 // pred_check
      _
    $region31: #{_lambda_.5} parent=1 // pred_check_branch
      %68 = sbr.rel (0) target = $region33
    $region32: #{_lambda_.5} parent=1 // pred_region
      _
    $region33: #{_lambda_.5} parent=1 // pred_fallthru
      _
    // Predicated region
    $region34: #{_lambda_.5} parent=1 // pred_check
      _
    $region35: #{_lambda_.5} parent=1 // pred_check_branch
      %70 = sbr.rel (0) target = $region37
    $region36: #{_lambda_.5} parent=1 // pred_region
      %72 = dma.done [#allocation5], 1024
    $region37: #{_lambda_.5} parent=1 // pred_fallthru
      _
    // Predicated region
    $region38: #{_lambda_.5} parent=1 // pred_check
      _
    $region39: #{_lambda_.5} parent=1 // pred_check_branch
      %74 = sbr.rel (0) target = $region41
    $region40: #{_lambda_.5} parent=1 // pred_region
      %76 = dma.done [#allocation7], 512
    $region41: #{_lambda_.5} parent=1 // pred_fallthru
      _
    %s77 = ssub.s32 0, 0
    %s78 = smul.u32 8, %s77
    %p79 = scmp.lt.s32.totalorder %s78, 7
    %s80 = scalar_select %p79, %s78, 7
    %s81 = scalar_lea.vmem %s2, %s80
    %s82 = ssub.s32 0, 0
    %s83 = smul.u32 8, %s82
    %p84 = scmp.lt.s32.totalorder %s83, 7
    %s85 = scalar_select %p84, %s83, 7
    %s86 = scalar_lea.vmem %s3, %s85
    %s87 = ssub.s32 0, 0
    %s88 = smul.u32 8, %s87
    %p89 = scmp.lt.s32.totalorder %s88, 7
    %s90 = scalar_select %p89, %s88, 7
    %s91 = smul.addr %s90, 2
    %s92 = scalar_lea.vmem %s9, %s91
    %s93 = ssub.s32 0, 0
    %s94 = smul.u32 8, %s93
    %p95 = scmp.lt.s32.totalorder %s94, 7
    %s96 = scalar_select %p95, %s94, 7
    %s97 = scalar_lea.vmem %s2, %s96
    %s98 = ssub.s32 0, 0
    %s99 = smul.u32 8, %s98
    %s100 = ssub.s32 0, 0
    %s101 = smul.u32 8, %s100
    %p102 = scmp.lt.s32.totalorder %s101, 7
    %s103 = scalar_select %p102, %s101, 7
    %s104 = scalar_lea.vmem %s3, %s103
    %s105 = ssub.s32 0, 0
    %s106 = smul.u32 8, %s105
    %s107 = ssub.s32 0, 0
    %s108 = smul.u32 8, %s107
    %p109 = scmp.lt.s32.totalorder %s108, 7
    %s110 = scalar_select %p109, %s108, 7
    %s111 = smul.addr %s110, 2
    %s112 = scalar_lea.vmem %s9, %s111
    %s113 = ssub.s32 0, 0
    %s114 = smul.u32 8, %s113
    %p116 = scmp.eq.s32.totalorder 0, 0
    // Predicated region
    $region42: #{_lambda_.5} parent=1 // pred_check
      %p117 = pneg %p116
    $region43: #{_lambda_.5} parent=1 // pred_check_branch
      %119 = sbr.rel (%p117) target = $region45
    $region44: #{_lambda_.5} parent=1 // pred_region
      %vm120 = vcmask 254976
      %121 = vst.msk [vmem:[#allocation2] sm:$0x3] %vm120, 0.0
      %122 = vst.msk [vmem:[#allocation3] sm:$0x3] %vm120, 0.0
    $region45: #{_lambda_.5} parent=1 // pred_fallthru
      _
    %v123 = vld [vmem:[#allocation4] sm:$0xf]
    %v124 = vld [vmem:[#allocation4 + $0x4] sm:$0xf]
    %v125 = vld [vmem:[#allocation4 + $0x8] sm:$0xf]
    %v126 = vld [vmem:[#allocation4 + $0xc] sm:$0xf]
    %v127 = vld [vmem:[#allocation4 + $0x10] sm:$0xf]
    %v128 = vld [vmem:[#allocation4 + $0x14] sm:$0xf]
    %v129 = vld [vmem:[#allocation4 + $0x18] sm:$0xf]
    %v130 = vld [vmem:[#allocation4 + $0x1c] sm:$0xf]
    %v131 = vld [vmem:[#allocation4 + $0x20] sm:$0xf]
    %v132 = vld [vmem:[#allocation4 + $0x24] sm:$0xf]
    %v133 = vld [vmem:[#allocation4 + $0x28] sm:$0xf]
    %v134 = vld [vmem:[#allocation4 + $0x2c] sm:$0xf]
    %v135 = vld [vmem:[#allocation4 + $0x30] sm:$0xf]
    %v136 = vld [vmem:[#allocation4 + $0x34] sm:$0xf]
    %v137 = vld [vmem:[#allocation4 + $0x38] sm:$0xf]
    %v138 = vld [vmem:[#allocation4 + $0x3c] sm:$0xf]
    %v139 = vld [vmem:[%s5] sm:$0x1]
    %v140 = vld [vmem:[%s5 + $0x1] sm:$0x1]
    %v141 = vld [vmem:[#allocation6] sm:$0xf]
    %v142 = vld [vmem:[#allocation6 + $0x4] sm:$0xf]
    %v143 = vld [vmem:[#allocation6 + $0x8] sm:$0xf]
    %v144 = vld [vmem:[#allocation6 + $0xc] sm:$0xf]
    %v145 = vld [vmem:[#allocation6 + $0x10] sm:$0xf]
    %v146 = vld [vmem:[#allocation6 + $0x14] sm:$0xf]
    %v147 = vld [vmem:[#allocation6 + $0x18] sm:$0xf]
    %v148 = vld [vmem:[#allocation6 + $0x1c] sm:$0xf]
    %v149 = vld [vmem:[%s7] sm:$0x1]
    %v150 = vld [vmem:[%s7 + $0x1] sm:$0x1]
    %v151 = vld [vmem:[%s0] sm:$0x1]
    %v152 = vld [vmem:[%s0 + $0x1] sm:$0x1]
    %v153 = vld [vmem:[%s0 + $0x2] sm:$0x1]
    %v154 = vld [vmem:[%s0 + $0x3] sm:$0x1]
    %v155 = vld [vmem:[%s0 + $0x4] sm:$0x1]
    %v156 = vld [vmem:[%s0 + $0x5] sm:$0x1]
    %v157 = vld [vmem:[%s0 + $0x6] sm:$0x1]
    %v158 = vld [vmem:[%s0 + $0x7] sm:$0x1]
    %v159 = vld [vmem:[%s1] sm:$0x1]
    %v160 = vld [vmem:[%s1 + $0x1] sm:$0x1]
    %v161 = vld [vmem:[%s1 + $0x2] sm:$0x1]
    %v162 = vld [vmem:[%s1 + $0x3] sm:$0x1]
    %v163 = vld [vmem:[%s1 + $0x4] sm:$0x1]
    %v164 = vld [vmem:[%s1 + $0x5] sm:$0x1]
    %v165 = vld [vmem:[%s1 + $0x6] sm:$0x1]
    %v166 = vld [vmem:[%s1 + $0x7] sm:$0x1]
    %168 = vst [vmem:[#allocation1] ss:$9 sm:$0xff] %v159
    %s170 = scalar_lea.vmem [#allocation1], 1
    %171 = vst [vmem:[%s170] ss:$9 sm:$0xff] %v160
    %s173 = scalar_lea.vmem [#allocation1], 2
    %174 = vst [vmem:[%s173] ss:$9 sm:$0xff] %v161
    %s176 = scalar_lea.vmem [#allocation1], 3
    %177 = vst [vmem:[%s176] ss:$9 sm:$0xff] %v162
    %s179 = scalar_lea.vmem [#allocation1], 4
    %180 = vst [vmem:[%s179] ss:$9 sm:$0xff] %v163
    %s182 = scalar_lea.vmem [#allocation1], 5
    %183 = vst [vmem:[%s182] ss:$9 sm:$0xff] %v164
    %s185 = scalar_lea.vmem [#allocation1], 6
    %186 = vst [vmem:[%s185] ss:$9 sm:$0xff] %v165
    %s188 = scalar_lea.vmem [#allocation1], 7
    %189 = vst [vmem:[%s188] ss:$9 sm:$0xff] %v166
    %v190 = vld [vmem:[#allocation1] sm:$0xff]
    %v195 = vunpack.c.l.b16 %v127
    %v196 = vunpack.c.l.b16 %v128
    %v197 = vunpack.c.l.b16 %v129
    %v198 = vunpack.c.l.b16 %v130
    %v199 = vpack.c.b16 %v196, %v195
    %v200 = vpack.c.b16 %v198, %v197
    %vm203 = vcmask 261120
    %v204 = vsel %vm203, %v190, 0
    %206 = vmatpush.bf16.msra.mxu0 0
    %207 = vmatpush.bf16.msra.mxu0 0
    %208 = vmatpush.bf16.msra.mxu0 0
    %209 = vmatpush.bf16.msra.mxu0 0
    %210 = vmatpush.bf16.msra.mxu0 0
    %211 = vmatpush.bf16.msra.mxu0 0
    %212 = vmatpush.bf16.msra.mxu0 %v200
    %213 = vmatpush.bf16.msra.mxu0 %v199
    %214 = vmatmul.bf16.gmra.mxu0 %v204
    %v215 = vpop.f32.mrf.mxu0
    %v216 = vadd.f32 0.0, %v215
    %v217 = vpop.f32.mrf.mxu0
    %v218 = vadd.f32 0.0, %v217
    %219 = vdwg.mxu0
    %221 = vst [vmem:[#allocation1] ss:$9 sm:$0xff] %v151
    %s223 = scalar_lea.vmem [#allocation1], 1
    %224 = vst [vmem:[%s223] ss:$9 sm:$0xff] %v152
    %s226 = scalar_lea.vmem [#allocation1], 2
    %227 = vst [vmem:[%s226] ss:$9 sm:$0xff] %v153
    %s229 = scalar_lea.vmem [#allocation1], 3
    %230 = vst [vmem:[%s229] ss:$9 sm:$0xff] %v154
    %s232 = scalar_lea.vmem [#allocation1], 4
    %233 = vst [vmem:[%s232] ss:$9 sm:$0xff] %v155
    %s235 = scalar_lea.vmem [#allocation1], 5
    %236 = vst [vmem:[%s235] ss:$9 sm:$0xff] %v156
    %s238 = scalar_lea.vmem [#allocation1], 6
    %239 = vst [vmem:[%s238] ss:$9 sm:$0xff] %v157
    %s241 = scalar_lea.vmem [#allocation1], 7
    %242 = vst [vmem:[%s241] ss:$9 sm:$0xff] %v158
    %v243 = vld [vmem:[#allocation1] sm:$0xff]
    %v248 = vunpack.c.l.b16 %v123
    %v249 = vunpack.c.l.b16 %v124
    %v250 = vunpack.c.l.b16 %v125
    %v251 = vunpack.c.l.b16 %v126
    %v252 = vpack.c.b16 %v249, %v248
    %v253 = vpack.c.b16 %v251, %v250
    %v256 = vsel %vm203, %v243, 0
    %258 = vmatpush.bf16.msra.mxu0 0
    %259 = vmatpush.bf16.msra.mxu0 0
    %260 = vmatpush.bf16.msra.mxu0 0
    %261 = vmatpush.bf16.msra.mxu0 0
    %262 = vmatpush.bf16.msra.mxu0 0
    %263 = vmatpush.bf16.msra.mxu0 0
    %264 = vmatpush.bf16.msra.mxu0 %v253
    %265 = vmatpush.bf16.msra.mxu0 %v252
    %266 = vmatmul.bf16.gmra.mxu0 %v256
    %v267 = vpop.f32.mrf.mxu0
    %v268 = vadd.f32 %v216, %v267
    %v269 = vpop.f32.mrf.mxu0
    %v270 = vadd.f32 %v218, %v269
    %271 = vdwg.mxu0
    %v273 = vperm.slane %v139, 0
    %v275 = vadd.f32 %v268, %v273
    %v276 = vadd.f32 %v270, %v273
    %v277 = vld [vmem:[%s97] sm:$0x1]
    %v278 = vld [vmem:[%s97 + $0x1] sm:$0x1]
    %v279 = vld [vmem:[%s97 + $0x2] sm:$0x1]
    %v280 = vld [vmem:[%s97 + $0x3] sm:$0x1]
    %v281 = vld [vmem:[%s97 + $0x4] sm:$0x1]
    %v282 = vld [vmem:[%s97 + $0x5] sm:$0x1]
    %v283 = vld [vmem:[%s97 + $0x6] sm:$0x1]
    %v284 = vld [vmem:[%s97 + $0x7] sm:$0x1]
    %v285 = vld [vmem:[%s104] sm:$0x1]
    %v286 = vld [vmem:[%s104 + $0x1] sm:$0x1]
    %v287 = vld [vmem:[%s104 + $0x2] sm:$0x1]
    %v288 = vld [vmem:[%s104 + $0x3] sm:$0x1]
    %v289 = vld [vmem:[%s104 + $0x4] sm:$0x1]
    %v290 = vld [vmem:[%s104 + $0x5] sm:$0x1]
    %v291 = vld [vmem:[%s104 + $0x6] sm:$0x1]
    %v292 = vld [vmem:[%s104 + $0x7] sm:$0x1]
    %294 = vst [vmem:[#allocation1] ss:$9 sm:$0xff] %v285
    %s296 = scalar_lea.vmem [#allocation1], 1
    %297 = vst [vmem:[%s296] ss:$9 sm:$0xff] %v286
    %s299 = scalar_lea.vmem [#allocation1], 2
    %300 = vst [vmem:[%s299] ss:$9 sm:$0xff] %v287
    %s302 = scalar_lea.vmem [#allocation1], 3
    %303 = vst [vmem:[%s302] ss:$9 sm:$0xff] %v288
    %s305 = scalar_lea.vmem [#allocation1], 4
    %306 = vst [vmem:[%s305] ss:$9 sm:$0xff] %v289
    %s308 = scalar_lea.vmem [#allocation1], 5
    %309 = vst [vmem:[%s308] ss:$9 sm:$0xff] %v290
    %s311 = scalar_lea.vmem [#allocation1], 6
    %312 = vst [vmem:[%s311] ss:$9 sm:$0xff] %v291
    %s314 = scalar_lea.vmem [#allocation1], 7
    %315 = vst [vmem:[%s314] ss:$9 sm:$0xff] %v292
    %v316 = vld [vmem:[#allocation1] sm:$0xff]
    %v321 = vunpack.c.l.b16 %v135
    %v322 = vunpack.c.l.b16 %v136
    %v323 = vunpack.c.l.b16 %v137
    %v324 = vunpack.c.l.b16 %v138
    %v325 = vpack.c.b16 %v322, %v321
    %v326 = vpack.c.b16 %v324, %v323
    %v329 = vsel %vm203, %v316, 0
    %331 = vmatpush.bf16.msra.mxu0 0
    %332 = vmatpush.bf16.msra.mxu0 0
    %333 = vmatpush.bf16.msra.mxu0 0
    %334 = vmatpush.bf16.msra.mxu0 0
    %335 = vmatpush.bf16.msra.mxu0 0
    %336 = vmatpush.bf16.msra.mxu0 0
    %337 = vmatpush.bf16.msra.mxu0 %v326
    %338 = vmatpush.bf16.msra.mxu0 %v325
    %339 = vmatmul.bf16.gmra.mxu0 %v329
    %v340 = vpop.f32.mrf.mxu0
    %v341 = vadd.f32 0.0, %v340
    %v342 = vpop.f32.mrf.mxu0
    %v343 = vadd.f32 0.0, %v342
    %344 = vdwg.mxu0
    %346 = vst [vmem:[#allocation1] ss:$9 sm:$0xff] %v277
    %s348 = scalar_lea.vmem [#allocation1], 1
    %349 = vst [vmem:[%s348] ss:$9 sm:$0xff] %v278
    %s351 = scalar_lea.vmem [#allocation1], 2
    %352 = vst [vmem:[%s351] ss:$9 sm:$0xff] %v279
    %s354 = scalar_lea.vmem [#allocation1], 3
    %355 = vst [vmem:[%s354] ss:$9 sm:$0xff] %v280
    %s357 = scalar_lea.vmem [#allocation1], 4
    %358 = vst [vmem:[%s357] ss:$9 sm:$0xff] %v281
    %s360 = scalar_lea.vmem [#allocation1], 5
    %361 = vst [vmem:[%s360] ss:$9 sm:$0xff] %v282
    %s363 = scalar_lea.vmem [#allocation1], 6
    %364 = vst [vmem:[%s363] ss:$9 sm:$0xff] %v283
    %s366 = scalar_lea.vmem [#allocation1], 7
    %367 = vst [vmem:[%s366] ss:$9 sm:$0xff] %v284
    %v368 = vld [vmem:[#allocation1] sm:$0xff]
    %v373 = vunpack.c.l.b16 %v131
    %v374 = vunpack.c.l.b16 %v132
    %v375 = vunpack.c.l.b16 %v133
    %v376 = vunpack.c.l.b16 %v134
    %v377 = vpack.c.b16 %v374, %v373
    %v378 = vpack.c.b16 %v376, %v375
    %v381 = vsel %vm203, %v368, 0
    %383 = vmatpush.bf16.msra.mxu0 0
    %384 = vmatpush.bf16.msra.mxu0 0
    %385 = vmatpush.bf16.msra.mxu0 0
    %386 = vmatpush.bf16.msra.mxu0 0
    %387 = vmatpush.bf16.msra.mxu0 0
    %388 = vmatpush.bf16.msra.mxu0 0
    %389 = vmatpush.bf16.msra.mxu0 %v378
    %390 = vmatpush.bf16.msra.mxu0 %v377
    %391 = vmatmul.bf16.gmra.mxu0 %v381
    %v392 = vpop.f32.mrf.mxu0
    %v393 = vadd.f32 %v341, %v392
    %v394 = vpop.f32.mrf.mxu0
    %v395 = vadd.f32 %v343, %v394
    %396 = vdwg.mxu0
    %v398 = vperm.slane %v140, 0
    %v400 = vadd.f32 %v393, %v398
    %v401 = vadd.f32 %v395, %v398
    %v402 = vld [vmem:[#allocation2] sm:$0x3]
    %v403 = vld [vmem:[#allocation3] sm:$0x3]
    %v404 = vpack.c.bf16 %v402, %v402
    %v406 = vperm.slane %v149, 0
    %v412 = vunpack.c.l.b16 %v141
    %v413 = vunpack.c.l.b16 %v142
    %v414 = vunpack.c.l.b16 %v143
    %v415 = vunpack.c.l.b16 %v144
    %v416 = vpack.c.b16 %v413, %v412
    %v417 = vpack.c.b16 %v415, %v414
    %v421 = vsel %vm203, %v404, 0
    %423 = vmatpush.bf16.msra.mxu0 0
    %424 = vmatpush.bf16.msra.mxu0 0
    %425 = vmatpush.bf16.msra.mxu0 0
    %426 = vmatpush.bf16.msra.mxu0 0
    %427 = vmatpush.bf16.msra.mxu0 0
    %428 = vmatpush.bf16.msra.mxu0 0
    %429 = vmatpush.bf16.msra.mxu0 %v417
    %430 = vmatpush.bf16.msra.mxu0 %v416
    %431 = vmatmul.bf16.gmra.mxu0 %v421
    %v432 = vpop.f32.mrf.mxu0
    %v433 = vadd.f32 %v406, %v432
    %v434 = vpop.f32.mrf.mxu0
    %435 = vdwg.mxu0
    %v436 = vadd.f32 %v275, %v433
    %v437 = vxor.u32 %v436, 2147483648
    %v438 = vmul.f32 %v437, 1.442695
    %v439 = vpow.pop %v438
    %v440 = vadd.f32 %v439, 1.0
    %v441 = vrcp.pop %v440
    %v442 = vmul.f32 %v440, %v441
    %v443 = vsub.f32 1.0, %v442
    %v444 = vmul.f32 %v441, %v443
    %v445 = vadd.f32 %v441, %v444
    %vm446 = vweird.f32 %v440
    %vm447 = vweird.f32 %v441
    %vm448 = vmor %vm446, %vm447
    %v449 = vsel %vm448, %v441, %v445
    %v450 = vand.u32 2147483647, %v440
    %vm451 = vcmp.eq.f32.partialorder %v450, 8.507059e+37
    %v452 = vand.u32 %v440, 2147483648
    %v453 = vor.u32 1.1754944e-38, %v452
    %v454 = vsel %vm451, %v453, %v449
    %v455 = vmul.f32 1.0, %v454
    %457 = vrot.lane.b32.xlu0 %v433, 64
    %v458 = vpop.permute.xlu0 %457
    %v460 = vmul.f32 %v455, %v458
    %462 = vrot.lane.b32.xlu0 %v460, 64
    %v463 = vpop.permute.xlu0 %462
    %v465 = vadd.f32 %v275, %v463
    %v466 = vtanh.pop %v465
    %v467 = vsub.f32 1.0, %v455
    %469 = vrot.lane.b32.xlu0 %v466, 96
    %v470 = vpop.permute.xlu0 %469
    %v472 = vmul.f32 %v467, %v470
    %474 = vrot.lane.b32.xlu0 %v402, 32
    %v475 = vpop.permute.xlu0 %474
    %v477 = vmul.f32 %v455, %v475
    %v478 = vadd.f32 %v472, %v477
    %v479 = vpack.c.bf16 %v403, %v403
    %v481 = vperm.slane %v150, 0
    %v487 = vunpack.c.l.b16 %v145
    %v488 = vunpack.c.l.b16 %v146
    %v489 = vunpack.c.l.b16 %v147
    %v490 = vunpack.c.l.b16 %v148
    %v491 = vpack.c.b16 %v488, %v487
    %v492 = vpack.c.b16 %v490, %v489
    %v496 = vsel %vm203, %v479, 0
    %498 = vmatpush.bf16.msra.mxu0 0
    %499 = vmatpush.bf16.msra.mxu0 0
    %500 = vmatpush.bf16.msra.mxu0 0
    %501 = vmatpush.bf16.msra.mxu0 0
    %502 = vmatpush.bf16.msra.mxu0 0
    %503 = vmatpush.bf16.msra.mxu0 0
    %504 = vmatpush.bf16.msra.mxu0 %v492
    %505 = vmatpush.bf16.msra.mxu0 %v491
    %506 = vmatmul.bf16.gmra.mxu0 %v496
    %v507 = vpop.f32.mrf.mxu0
    %v508 = vadd.f32 %v481, %v507
    %v509 = vpop.f32.mrf.mxu0
    %510 = vdwg.mxu0
    %v512 = vrot.slane %v508, 2
    %v514 = vadd.f32 %v401, %v512
    %v515 = vxor.u32 %v514, 2147483648
    %v516 = vmul.f32 %v515, 1.442695
    %v517 = vpow.pop %v516
    %v518 = vadd.f32 %v517, 1.0
    %v519 = vrcp.pop %v518
    %v520 = vmul.f32 %v518, %v519
    %v521 = vsub.f32 1.0, %v520
    %v522 = vmul.f32 %v519, %v521
    %v523 = vadd.f32 %v519, %v522
    %vm524 = vweird.f32 %v518
    %vm525 = vweird.f32 %v519
    %vm526 = vmor %vm524, %vm525
    %v527 = vsel %vm526, %v519, %v523
    %v528 = vand.u32 2147483647, %v518
    %vm529 = vcmp.eq.f32.partialorder %v528, 8.507059e+37
    %v530 = vand.u32 %v518, 2147483648
    %v531 = vor.u32 1.1754944e-38, %v530
    %v532 = vsel %vm529, %v531, %v527
    %v533 = vmul.f32 1.0, %v532
    %534 = vrot.lane.b32.xlu0 %v512, 64
    %v535 = vpop.permute.xlu0 %534
    %v537 = vmul.f32 %v533, %v535
    %539 = vrot.lane.b32.xlu0 %v537, 64
    %v540 = vpop.permute.xlu0 %539
    %v542 = vadd.f32 %v401, %v540
    %v543 = vtanh.pop %v542
    %v544 = vsub.f32 1.0, %v533
    %546 = vrot.lane.b32.xlu0 %v543, 96
    %v547 = vpop.permute.xlu0 %546
    %v549 = vmul.f32 %v544, %v547
    %v551 = vrot.slane %v403, 2
    %552 = vrot.lane.b32.xlu0 %v551, 32
    %v553 = vpop.permute.xlu0 %552
    %v555 = vmul.f32 %v533, %v553
    %v556 = vadd.f32 %v549, %v555
    %558 = vrot.lane.b32.xlu0 %v478, 96
    %v559 = vpop.permute.xlu0 %558
    %vm561 = vcmask 254976
    %562 = vst.msk [vmem:[%s8] sm:$0x3] %vm561, %v559
    %564 = vrot.lane.b32.xlu0 %v556, 96
    %v565 = vpop.permute.xlu0 %564
    %s567 = scalar_lea.vmem %s112, 14
    %vm568 = vcmask 261126
    %569 = vst.msk [vmem:[%s567 - $0x6] sm:$0xc0] %vm568, %v565
    %v570 = vpack.c.bf16 %v478, %v478
    %572 = vrot.lane.b32.xlu0 %v570, 96
    %v573 = vpop.permute.xlu0 %572
    %v575 = vsel %vm203, %v573, 0
    %577 = vmatpush.bf16.msra.mxu0 0
    %578 = vmatpush.bf16.msra.mxu0 0
    %579 = vmatpush.bf16.msra.mxu0 0
    %580 = vmatpush.bf16.msra.mxu0 0
    %581 = vmatpush.bf16.msra.mxu0 0
    %582 = vmatpush.bf16.msra.mxu0 0
    %583 = vmatpush.bf16.msra.mxu0 %v417
    %584 = vmatpush.bf16.msra.mxu0 %v416
    %585 = vmatmul.bf16.gmra.mxu0 %v575
    %v586 = vpop.f32.mrf.mxu0
    %v587 = vadd.f32 %v406, %v586
    %v588 = vpop.f32.mrf.mxu0
    %589 = vdwg.mxu0
    %v591 = vrot.slane %v587, 6
    %v593 = vadd.f32 %v275, %v591
    %v594 = vxor.u32 %v593, 2147483648
    %v595 = vmul.f32 %v594, 1.442695
    %v596 = vpow.pop %v595
    %v597 = vadd.f32 %v596, 1.0
    %v598 = vrcp.pop %v597
    %v599 = vmul.f32 %v597, %v598
    %v600 = vsub.f32 1.0, %v599
    %v601 = vmul.f32 %v598, %v600
    %v602 = vadd.f32 %v598, %v601
    %vm603 = vweird.f32 %v597
    %vm604 = vweird.f32 %v598
    %vm605 = vmor %vm603, %vm604
    %v606 = vsel %vm605, %v598, %v602
    %v607 = vand.u32 2147483647, %v597
    %vm608 = vcmp.eq.f32.partialorder %v607, 8.507059e+37
    %v609 = vand.u32 %v597, 2147483648
    %v610 = vor.u32 1.1754944e-38, %v609
    %v611 = vsel %vm608, %v610, %v606
    %v612 = vmul.f32 1.0, %v611
    %613 = vrot.lane.b32.xlu0 %v591, 64
    %v614 = vpop.permute.xlu0 %613
    %v616 = vmul.f32 %v612, %v614
    %618 = vrot.lane.b32.xlu0 %v616, 64
    %v619 = vpop.permute.xlu0 %618
    %v621 = vadd.f32 %v275, %v619
    %v622 = vtanh.pop %v621
    %v623 = vsub.f32 1.0, %v612
    %625 = vrot.lane.b32.xlu0 %v622, 96
    %v626 = vpop.permute.xlu0 %625
    %v628 = vmul.f32 %v623, %v626
    %v629 = vrot.slane %v478, 6
    %v631 = vmul.f32 %v612, %v629
    %v632 = vadd.f32 %v628, %v631
    %v633 = vpack.c.bf16 %v556, %v556
    %v635 = vrot.slane %v633, 3
    %636 = vrot.lane.b32.xlu0 %v635, 96
    %v637 = vpop.permute.xlu0 %636
    %v639 = vsel %vm203, %v637, 0
    %641 = vmatpush.bf16.msra.mxu0 0
    %642 = vmatpush.bf16.msra.mxu0 0
    %643 = vmatpush.bf16.msra.mxu0 0
    %644 = vmatpush.bf16.msra.mxu0 0
    %645 = vmatpush.bf16.msra.mxu0 0
    %646 = vmatpush.bf16.msra.mxu0 0
    %647 = vmatpush.bf16.msra.mxu0 %v492
    %648 = vmatpush.bf16.msra.mxu0 %v491
    %649 = vmatmul.bf16.gmra.mxu0 %v639
    %v650 = vpop.f32.mrf.mxu0
    %v651 = vadd.f32 %v481, %v650
    %v652 = vpop.f32.mrf.mxu0
    %653 = vdwg.mxu0
    %v655 = vrot.slane %v651, 4
    %v657 = vadd.f32 %v401, %v655
    %v658 = vxor.u32 %v657, 2147483648
    %v659 = vmul.f32 %v658, 1.442695
    %v660 = vpow.pop %v659
    %v661 = vadd.f32 %v660, 1.0
    %v662 = vrcp.pop %v661
    %v663 = vmul.f32 %v661, %v662
    %v664 = vsub.f32 1.0, %v663
    %v665 = vmul.f32 %v662, %v664
    %v666 = vadd.f32 %v662, %v665
    %vm667 = vweird.f32 %v661
    %vm668 = vweird.f32 %v662
    %vm669 = vmor %vm667, %vm668
    %v670 = vsel %vm669, %v662, %v666
    %v671 = vand.u32 2147483647, %v661
    %vm672 = vcmp.eq.f32.partialorder %v671, 8.507059e+37
    %v673 = vand.u32 %v661, 2147483648
    %v674 = vor.u32 1.1754944e-38, %v673
    %v675 = vsel %vm672, %v674, %v670
    %v676 = vmul.f32 1.0, %v675
    %677 = vrot.lane.b32.xlu0 %v655, 64
    %v678 = vpop.permute.xlu0 %677
    %v680 = vmul.f32 %v676, %v678
    %682 = vrot.lane.b32.xlu0 %v680, 64
    %v683 = vpop.permute.xlu0 %682
    %v685 = vadd.f32 %v401, %v683
    %v686 = vtanh.pop %v685
    %v687 = vsub.f32 1.0, %v676
    %689 = vrot.lane.b32.xlu0 %v686, 96
    %v690 = vpop.permute.xlu0 %689
    %v692 = vmul.f32 %v687, %v690
    %v693 = vrot.slane %v556, 2
    %v695 = vmul.f32 %v676, %v693
    %v696 = vadd.f32 %v692, %v695
    %698 = vrot.lane.b32.xlu0 %v632, 96
    %v699 = vpop.permute.xlu0 %698
    %s701 = scalar_lea.vmem %s8, 2
    %vm702 = vcmask 257026
    %703 = vst.msk [vmem:[%s701 - $0x2] sm:$0xc] %vm702, %v699
    %705 = vrot.lane.b32.xlu0 %v696, 96
    %v706 = vpop.permute.xlu0 %705
    %s708 = scalar_lea.vmem %s112, 12
    %vm709 = vcmask 259076
    %710 = vst.msk [vmem:[%s708 - $0x4] sm:$0x30] %vm709, %v706
    %v711 = vpack.c.bf16 %v632, %v632
    %v713 = vrot.slane %v711, 1
    %714 = vrot.lane.b32.xlu0 %v713, 96
    %v715 = vpop.permute.xlu0 %714
    %v717 = vsel %vm203, %v715, 0
    %719 = vmatpush.bf16.msra.mxu0 0
    %720 = vmatpush.bf16.msra.mxu0 0
    %721 = vmatpush.bf16.msra.mxu0 0
    %722 = vmatpush.bf16.msra.mxu0 0
    %723 = vmatpush.bf16.msra.mxu0 0
    %724 = vmatpush.bf16.msra.mxu0 0
    %725 = vmatpush.bf16.msra.mxu0 %v417
    %726 = vmatpush.bf16.msra.mxu0 %v416
    %727 = vmatmul.bf16.gmra.mxu0 %v717
    %v728 = vpop.f32.mrf.mxu0
    %v729 = vadd.f32 %v406, %v728
    %v730 = vpop.f32.mrf.mxu0
    %731 = vdwg.mxu0
    %v733 = vrot.slane %v729, 4
    %v735 = vadd.f32 %v275, %v733
    %v736 = vxor.u32 %v735, 2147483648
    %v737 = vmul.f32 %v736, 1.442695
    %v738 = vpow.pop %v737
    %v739 = vadd.f32 %v738, 1.0
    %v740 = vrcp.pop %v739
    %v741 = vmul.f32 %v739, %v740
    %v742 = vsub.f32 1.0, %v741
    %v743 = vmul.f32 %v740, %v742
    %v744 = vadd.f32 %v740, %v743
    %vm745 = vweird.f32 %v739
    %vm746 = vweird.f32 %v740
    %vm747 = vmor %vm745, %vm746
    %v748 = vsel %vm747, %v740, %v744
    %v749 = vand.u32 2147483647, %v739
    %vm750 = vcmp.eq.f32.partialorder %v749, 8.507059e+37
    %v751 = vand.u32 %v739, 2147483648
    %v752 = vor.u32 1.1754944e-38, %v751
    %v753 = vsel %vm750, %v752, %v748
    %v754 = vmul.f32 1.0, %v753
    %755 = vrot.lane.b32.xlu0 %v733, 64
    %v756 = vpop.permute.xlu0 %755
    %v758 = vmul.f32 %v754, %v756
    %760 = vrot.lane.b32.xlu0 %v758, 64
    %v761 = vpop.permute.xlu0 %760
    %v763 = vadd.f32 %v275, %v761
    %v764 = vtanh.pop %v763
    %v765 = vsub.f32 1.0, %v754
    %767 = vrot.lane.b32.xlu0 %v764, 96
    %v768 = vpop.permute.xlu0 %767
    %v770 = vmul.f32 %v765, %v768
    %v771 = vrot.slane %v632, 6
    %v773 = vmul.f32 %v754, %v771
    %v774 = vadd.f32 %v770, %v773
    %v775 = vpack.c.bf16 %v696, %v696
    %v777 = vrot.slane %v775, 2
    %778 = vrot.lane.b32.xlu0 %v777, 96
    %v779 = vpop.permute.xlu0 %778
    %v781 = vsel %vm203, %v779, 0
    %783 = vmatpush.bf16.msra.mxu0 0
    %784 = vmatpush.bf16.msra.mxu0 0
    %785 = vmatpush.bf16.msra.mxu0 0
    %786 = vmatpush.bf16.msra.mxu0 0
    %787 = vmatpush.bf16.msra.mxu0 0
    %788 = vmatpush.bf16.msra.mxu0 0
    %789 = vmatpush.bf16.msra.mxu0 %v492
    %790 = vmatpush.bf16.msra.mxu0 %v491
    %791 = vmatmul.bf16.gmra.mxu0 %v781
    %v792 = vpop.f32.mrf.mxu0
    %v793 = vadd.f32 %v481, %v792
    %v794 = vpop.f32.mrf.mxu0
    %795 = vdwg.mxu0
    %v797 = vrot.slane %v793, 6
    %v799 = vadd.f32 %v401, %v797
    %v800 = vxor.u32 %v799, 2147483648
    %v801 = vmul.f32 %v800, 1.442695
    %v802 = vpow.pop %v801
    %v803 = vadd.f32 %v802, 1.0
    %v804 = vrcp.pop %v803
    %v805 = vmul.f32 %v803, %v804
    %v806 = vsub.f32 1.0, %v805
    %v807 = vmul.f32 %v804, %v806
    %v808 = vadd.f32 %v804, %v807
    %vm809 = vweird.f32 %v803
    %vm810 = vweird.f32 %v804
    %vm811 = vmor %vm809, %vm810
    %v812 = vsel %vm811, %v804, %v808
    %v813 = vand.u32 2147483647, %v803
    %vm814 = vcmp.eq.f32.partialorder %v813, 8.507059e+37
    %v815 = vand.u32 %v803, 2147483648
    %v816 = vor.u32 1.1754944e-38, %v815
    %v817 = vsel %vm814, %v816, %v812
    %v818 = vmul.f32 1.0, %v817
    %819 = vrot.lane.b32.xlu0 %v797, 64
    %v820 = vpop.permute.xlu0 %819
    %v822 = vmul.f32 %v818, %v820
    %824 = vrot.lane.b32.xlu0 %v822, 64
    %v825 = vpop.permute.xlu0 %824
    %v827 = vadd.f32 %v401, %v825
    %v828 = vtanh.pop %v827
    %v829 = vsub.f32 1.0, %v818
    %831 = vrot.lane.b32.xlu0 %v828, 96
    %v832 = vpop.permute.xlu0 %831
    %v834 = vmul.f32 %v829, %v832
    %v835 = vrot.slane %v696, 2
    %v837 = vmul.f32 %v818, %v835
    %v838 = vadd.f32 %v834, %v837
    %840 = vrot.lane.b32.xlu0 %v774, 96
    %v841 = vpop.permute.xlu0 %840
    %s843 = scalar_lea.vmem %s8, 4
    %844 = vst.msk [vmem:[%s843 - $0x4] sm:$0x30] %vm709, %v841
    %846 = vrot.lane.b32.xlu0 %v838, 96
    %v847 = vpop.permute.xlu0 %846
    %s849 = scalar_lea.vmem %s112, 10
    %850 = vst.msk [vmem:[%s849 - $0x2] sm:$0xc] %vm702, %v847
    %v851 = vpack.c.bf16 %v774, %v774
    %v853 = vrot.slane %v851, 2
    %854 = vrot.lane.b32.xlu0 %v853, 96
    %v855 = vpop.permute.xlu0 %854
    %v857 = vsel %vm203, %v855, 0
    %859 = vmatpush.bf16.msra.mxu0 0
    %860 = vmatpush.bf16.msra.mxu0 0
    %861 = vmatpush.bf16.msra.mxu0 0
    %862 = vmatpush.bf16.msra.mxu0 0
    %863 = vmatpush.bf16.msra.mxu0 0
    %864 = vmatpush.bf16.msra.mxu0 0
    %865 = vmatpush.bf16.msra.mxu0 %v417
    %866 = vmatpush.bf16.msra.mxu0 %v416
    %867 = vmatmul.bf16.gmra.mxu0 %v857
    %v868 = vpop.f32.mrf.mxu0
    %v869 = vadd.f32 %v406, %v868
    %v870 = vpop.f32.mrf.mxu0
    %871 = vdwg.mxu0
    %v873 = vrot.slane %v869, 2
    %v875 = vadd.f32 %v275, %v873
    %v876 = vxor.u32 %v875, 2147483648
    %v877 = vmul.f32 %v876, 1.442695
    %v878 = vpow.pop %v877
    %v879 = vadd.f32 %v878, 1.0
    %v880 = vrcp.pop %v879
    %v881 = vmul.f32 %v879, %v880
    %v882 = vsub.f32 1.0, %v881
    %v883 = vmul.f32 %v880, %v882
    %v884 = vadd.f32 %v880, %v883
    %vm885 = vweird.f32 %v879
    %vm886 = vweird.f32 %v880
    %vm887 = vmor %vm885, %vm886
    %v888 = vsel %vm887, %v880, %v884
    %v889 = vand.u32 2147483647, %v879
    %vm890 = vcmp.eq.f32.partialorder %v889, 8.507059e+37
    %v891 = vand.u32 %v879, 2147483648
    %v892 = vor.u32 1.1754944e-38, %v891
    %v893 = vsel %vm890, %v892, %v888
    %v894 = vmul.f32 1.0, %v893
    %895 = vrot.lane.b32.xlu0 %v873, 64
    %v896 = vpop.permute.xlu0 %895
    %v898 = vmul.f32 %v894, %v896
    %900 = vrot.lane.b32.xlu0 %v898, 64
    %v901 = vpop.permute.xlu0 %900
    %v903 = vadd.f32 %v275, %v901
    %v904 = vtanh.pop %v903
    %v905 = vsub.f32 1.0, %v894
    %907 = vrot.lane.b32.xlu0 %v904, 96
    %v908 = vpop.permute.xlu0 %907
    %v910 = vmul.f32 %v905, %v908
    %v911 = vrot.slane %v774, 6
    %v913 = vmul.f32 %v894, %v911
    %v914 = vadd.f32 %v910, %v913
    %v915 = vpack.c.bf16 %v838, %v838
    %v917 = vrot.slane %v915, 1
    %918 = vrot.lane.b32.xlu0 %v917, 96
    %v919 = vpop.permute.xlu0 %918
    %v921 = vsel %vm203, %v919, 0
    %923 = vmatpush.bf16.msra.mxu0 0
    %924 = vmatpush.bf16.msra.mxu0 0
    %925 = vmatpush.bf16.msra.mxu0 0
    %926 = vmatpush.bf16.msra.mxu0 0
    %927 = vmatpush.bf16.msra.mxu0 0
    %928 = vmatpush.bf16.msra.mxu0 0
    %929 = vmatpush.bf16.msra.mxu0 %v492
    %930 = vmatpush.bf16.msra.mxu0 %v491
    %931 = vmatmul.bf16.gmra.mxu0 %v921
    %v932 = vpop.f32.mrf.mxu0
    %v933 = vadd.f32 %v481, %v932
    %v934 = vpop.f32.mrf.mxu0
    %935 = vdwg.mxu0
    %v936 = vadd.f32 %v401, %v933
    %v937 = vxor.u32 %v936, 2147483648
    %v938 = vmul.f32 %v937, 1.442695
    %v939 = vpow.pop %v938
    %v940 = vadd.f32 %v939, 1.0
    %v941 = vrcp.pop %v940
    %v942 = vmul.f32 %v940, %v941
    %v943 = vsub.f32 1.0, %v942
    %v944 = vmul.f32 %v941, %v943
    %v945 = vadd.f32 %v941, %v944
    %vm946 = vweird.f32 %v940
    %vm947 = vweird.f32 %v941
    %vm948 = vmor %vm946, %vm947
    %v949 = vsel %vm948, %v941, %v945
    %v950 = vand.u32 2147483647, %v940
    %vm951 = vcmp.eq.f32.partialorder %v950, 8.507059e+37
    %v952 = vand.u32 %v940, 2147483648
    %v953 = vor.u32 1.1754944e-38, %v952
    %v954 = vsel %vm951, %v953, %v949
    %v955 = vmul.f32 1.0, %v954
    %957 = vrot.lane.b32.xlu0 %v933, 64
    %v958 = vpop.permute.xlu0 %957
    %v960 = vmul.f32 %v955, %v958
    %962 = vrot.lane.b32.xlu0 %v960, 64
    %v963 = vpop.permute.xlu0 %962
    %v965 = vadd.f32 %v401, %v963
    %v966 = vtanh.pop %v965
    %v967 = vsub.f32 1.0, %v955
    %969 = vrot.lane.b32.xlu0 %v966, 96
    %v970 = vpop.permute.xlu0 %969
    %v972 = vmul.f32 %v967, %v970
    %v973 = vrot.slane %v838, 2
    %v975 = vmul.f32 %v955, %v973
    %v976 = vadd.f32 %v972, %v975
    %978 = vrot.lane.b32.xlu0 %v914, 96
    %v979 = vpop.permute.xlu0 %978
    %s981 = scalar_lea.vmem %s8, 6
    %982 = vst.msk [vmem:[%s981 - $0x6] sm:$0xc0] %vm568, %v979
    %984 = vrot.lane.b32.xlu0 %v976, 96
    %v985 = vpop.permute.xlu0 %984
    %s987 = scalar_lea.vmem %s112, 8
    %988 = vst.msk [vmem:[%s987] sm:$0x3] %vm561, %v985
    %v989 = vpack.c.bf16 %v914, %v914
    %v991 = vrot.slane %v989, 3
    %992 = vrot.lane.b32.xlu0 %v991, 96
    %v993 = vpop.permute.xlu0 %992
    %v995 = vsel %vm203, %v993, 0
    %997 = vmatpush.bf16.msra.mxu0 0
    %998 = vmatpush.bf16.msra.mxu0 0
    %999 = vmatpush.bf16.msra.mxu0 0
    %1000 = vmatpush.bf16.msra.mxu0 0
    %1001 = vmatpush.bf16.msra.mxu0 0
    %1002 = vmatpush.bf16.msra.mxu0 0
    %1003 = vmatpush.bf16.msra.mxu0 %v417
    %1004 = vmatpush.bf16.msra.mxu0 %v416
    %1005 = vmatmul.bf16.gmra.mxu0 %v995
    %v1006 = vpop.f32.mrf.mxu0
    %v1007 = vadd.f32 %v406, %v1006
    %v1008 = vpop.f32.mrf.mxu0
    %1009 = vdwg.mxu0
    %v1010 = vadd.f32 %v276, %v1007
    %v1011 = vxor.u32 %v1010, 2147483648
    %v1012 = vmul.f32 %v1011, 1.442695
    %v1013 = vpow.pop %v1012
    %v1014 = vadd.f32 %v1013, 1.0
    %v1015 = vrcp.pop %v1014
    %v1016 = vmul.f32 %v1014, %v1015
    %v1017 = vsub.f32 1.0, %v1016
    %v1018 = vmul.f32 %v1015, %v1017
    %v1019 = vadd.f32 %v1015, %v1018
    %vm1020 = vweird.f32 %v1014
    %vm1021 = vweird.f32 %v1015
    %vm1022 = vmor %vm1020, %vm1021
    %v1023 = vsel %vm1022, %v1015, %v1019
    %v1024 = vand.u32 2147483647, %v1014
    %vm1025 = vcmp.eq.f32.partialorder %v1024, 8.507059e+37
    %v1026 = vand.u32 %v1014, 2147483648
    %v1027 = vor.u32 1.1754944e-38, %v1026
    %v1028 = vsel %vm1025, %v1027, %v1023
    %v1029 = vmul.f32 1.0, %v1028
    %1031 = vrot.lane.b32.xlu0 %v1007, 64
    %v1032 = vpop.permute.xlu0 %1031
    %v1034 = vmul.f32 %v1029, %v1032
    %1036 = vrot.lane.b32.xlu0 %v1034, 64
    %v1037 = vpop.permute.xlu0 %1036
    %v1039 = vadd.f32 %v276, %v1037
    %v1040 = vtanh.pop %v1039
    %v1041 = vsub.f32 1.0, %v1029
    %1043 = vrot.lane.b32.xlu0 %v1040, 96
    %v1044 = vpop.permute.xlu0 %1043
    %v1046 = vmul.f32 %v1041, %v1044
    %v1047 = vrot.slane %v914, 6
    %v1049 = vmul.f32 %v1029, %v1047
    %v1050 = vadd.f32 %v1046, %v1049
    %v1051 = vpack.c.bf16 %v976, %v976
    %1053 = vrot.lane.b32.xlu0 %v1051, 96
    %v1054 = vpop.permute.xlu0 %1053
    %v1056 = vsel %vm203, %v1054, 0
    %1058 = vmatpush.bf16.msra.mxu0 0
    %1059 = vmatpush.bf16.msra.mxu0 0
    %1060 = vmatpush.bf16.msra.mxu0 0
    %1061 = vmatpush.bf16.msra.mxu0 0
    %1062 = vmatpush.bf16.msra.mxu0 0
    %1063 = vmatpush.bf16.msra.mxu0 0
    %1064 = vmatpush.bf16.msra.mxu0 %v492
    %1065 = vmatpush.bf16.msra.mxu0 %v491
    %1066 = vmatmul.bf16.gmra.mxu0 %v1056
    %v1067 = vpop.f32.mrf.mxu0
    %v1068 = vadd.f32 %v481, %v1067
    %v1069 = vpop.f32.mrf.mxu0
    %1070 = vdwg.mxu0
    %v1072 = vrot.slane %v1068, 2
    %v1074 = vadd.f32 %v400, %v1072
    %v1075 = vxor.u32 %v1074, 2147483648
    %v1076 = vmul.f32 %v1075, 1.442695
    %v1077 = vpow.pop %v1076
    %v1078 = vadd.f32 %v1077, 1.0
    %v1079 = vrcp.pop %v1078
    %v1080 = vmul.f32 %v1078, %v1079
    %v1081 = vsub.f32 1.0, %v1080
    %v1082 = vmul.f32 %v1079, %v1081
    %v1083 = vadd.f32 %v1079, %v1082
    %vm1084 = vweird.f32 %v1078
    %vm1085 = vweird.f32 %v1079
    %vm1086 = vmor %vm1084, %vm1085
    %v1087 = vsel %vm1086, %v1079, %v1083
    %v1088 = vand.u32 2147483647, %v1078
    %vm1089 = vcmp.eq.f32.partialorder %v1088, 8.507059e+37
    %v1090 = vand.u32 %v1078, 2147483648
    %v1091 = vor.u32 1.1754944e-38, %v1090
    %v1092 = vsel %vm1089, %v1091, %v1087
    %v1093 = vmul.f32 1.0, %v1092
    %1094 = vrot.lane.b32.xlu0 %v1072, 64
    %v1095 = vpop.permute.xlu0 %1094
    %v1097 = vmul.f32 %v1093, %v1095
    %1099 = vrot.lane.b32.xlu0 %v1097, 64
    %v1100 = vpop.permute.xlu0 %1099
    %v1102 = vadd.f32 %v400, %v1100
    %v1103 = vtanh.pop %v1102
    %v1104 = vsub.f32 1.0, %v1093
    %1106 = vrot.lane.b32.xlu0 %v1103, 96
    %v1107 = vpop.permute.xlu0 %1106
    %v1109 = vmul.f32 %v1104, %v1107
    %v1110 = vrot.slane %v976, 2
    %v1112 = vmul.f32 %v1093, %v1110
    %v1113 = vadd.f32 %v1109, %v1112
    %1115 = vrot.lane.b32.xlu0 %v1050, 96
    %v1116 = vpop.permute.xlu0 %1115
    %s1118 = scalar_lea.vmem %s8, 8
    %1119 = vst.msk [vmem:[%s1118] sm:$0x3] %vm561, %v1116
    %1121 = vrot.lane.b32.xlu0 %v1113, 96
    %v1122 = vpop.permute.xlu0 %1121
    %s1124 = scalar_lea.vmem %s112, 6
    %1125 = vst.msk [vmem:[%s1124 - $0x6] sm:$0xc0] %vm568, %v1122
    %v1126 = vpack.c.bf16 %v1050, %v1050
    %1128 = vrot.lane.b32.xlu0 %v1126, 96
    %v1129 = vpop.permute.xlu0 %1128
    %v1131 = vsel %vm203, %v1129, 0
    %1133 = vmatpush.bf16.msra.mxu0 0
    %1134 = vmatpush.bf16.msra.mxu0 0
    %1135 = vmatpush.bf16.msra.mxu0 0
    %1136 = vmatpush.bf16.msra.mxu0 0
    %1137 = vmatpush.bf16.msra.mxu0 0
    %1138 = vmatpush.bf16.msra.mxu0 0
    %1139 = vmatpush.bf16.msra.mxu0 %v417
    %1140 = vmatpush.bf16.msra.mxu0 %v416
    %1141 = vmatmul.bf16.gmra.mxu0 %v1131
    %v1142 = vpop.f32.mrf.mxu0
    %v1143 = vadd.f32 %v406, %v1142
    %v1144 = vpop.f32.mrf.mxu0
    %1145 = vdwg.mxu0
    %v1147 = vrot.slane %v1143, 6
    %v1149 = vadd.f32 %v276, %v1147
    %v1150 = vxor.u32 %v1149, 2147483648
    %v1151 = vmul.f32 %v1150, 1.442695
    %v1152 = vpow.pop %v1151
    %v1153 = vadd.f32 %v1152, 1.0
    %v1154 = vrcp.pop %v1153
    %v1155 = vmul.f32 %v1153, %v1154
    %v1156 = vsub.f32 1.0, %v1155
    %v1157 = vmul.f32 %v1154, %v1156
    %v1158 = vadd.f32 %v1154, %v1157
    %vm1159 = vweird.f32 %v1153
    %vm1160 = vweird.f32 %v1154
    %vm1161 = vmor %vm1159, %vm1160
    %v1162 = vsel %vm1161, %v1154, %v1158
    %v1163 = vand.u32 2147483647, %v1153
    %vm1164 = vcmp.eq.f32.partialorder %v1163, 8.507059e+37
    %v1165 = vand.u32 %v1153, 2147483648
    %v1166 = vor.u32 1.1754944e-38, %v1165
    %v1167 = vsel %vm1164, %v1166, %v1162
    %v1168 = vmul.f32 1.0, %v1167
    %1169 = vrot.lane.b32.xlu0 %v1147, 64
    %v1170 = vpop.permute.xlu0 %1169
    %v1172 = vmul.f32 %v1168, %v1170
    %1174 = vrot.lane.b32.xlu0 %v1172, 64
    %v1175 = vpop.permute.xlu0 %1174
    %v1177 = vadd.f32 %v276, %v1175
    %v1178 = vtanh.pop %v1177
    %v1179 = vsub.f32 1.0, %v1168
    %1181 = vrot.lane.b32.xlu0 %v1178, 96
    %v1182 = vpop.permute.xlu0 %1181
    %v1184 = vmul.f32 %v1179, %v1182
    %v1185 = vrot.slane %v1050, 6
    %v1187 = vmul.f32 %v1168, %v1185
    %v1188 = vadd.f32 %v1184, %v1187
    %v1189 = vpack.c.bf16 %v1113, %v1113
    %v1191 = vrot.slane %v1189, 3
    %1192 = vrot.lane.b32.xlu0 %v1191, 96
    %v1193 = vpop.permute.xlu0 %1192
    %v1195 = vsel %vm203, %v1193, 0
    %1197 = vmatpush.bf16.msra.mxu0 0
    %1198 = vmatpush.bf16.msra.mxu0 0
    %1199 = vmatpush.bf16.msra.mxu0 0
    %1200 = vmatpush.bf16.msra.mxu0 0
    %1201 = vmatpush.bf16.msra.mxu0 0
    %1202 = vmatpush.bf16.msra.mxu0 0
    %1203 = vmatpush.bf16.msra.mxu0 %v492
    %1204 = vmatpush.bf16.msra.mxu0 %v491
    %1205 = vmatmul.bf16.gmra.mxu0 %v1195
    %v1206 = vpop.f32.mrf.mxu0
    %v1207 = vadd.f32 %v481, %v1206
    %v1208 = vpop.f32.mrf.mxu0
    %1209 = vdwg.mxu0
    %v1211 = vrot.slane %v1207, 4
    %v1213 = vadd.f32 %v400, %v1211
    %v1214 = vxor.u32 %v1213, 2147483648
    %v1215 = vmul.f32 %v1214, 1.442695
    %v1216 = vpow.pop %v1215
    %v1217 = vadd.f32 %v1216, 1.0
    %v1218 = vrcp.pop %v1217
    %v1219 = vmul.f32 %v1217, %v1218
    %v1220 = vsub.f32 1.0, %v1219
    %v1221 = vmul.f32 %v1218, %v1220
    %v1222 = vadd.f32 %v1218, %v1221
    %vm1223 = vweird.f32 %v1217
    %vm1224 = vweird.f32 %v1218
    %vm1225 = vmor %vm1223, %vm1224
    %v1226 = vsel %vm1225, %v1218, %v1222
    %v1227 = vand.u32 2147483647, %v1217
    %vm1228 = vcmp.eq.f32.partialorder %v1227, 8.507059e+37
    %v1229 = vand.u32 %v1217, 2147483648
    %v1230 = vor.u32 1.1754944e-38, %v1229
    %v1231 = vsel %vm1228, %v1230, %v1226
    %v1232 = vmul.f32 1.0, %v1231
    %1233 = vrot.lane.b32.xlu0 %v1211, 64
    %v1234 = vpop.permute.xlu0 %1233
    %v1236 = vmul.f32 %v1232, %v1234
    %1238 = vrot.lane.b32.xlu0 %v1236, 64
    %v1239 = vpop.permute.xlu0 %1238
    %v1241 = vadd.f32 %v400, %v1239
    %v1242 = vtanh.pop %v1241
    %v1243 = vsub.f32 1.0, %v1232
    %1245 = vrot.lane.b32.xlu0 %v1242, 96
    %v1246 = vpop.permute.xlu0 %1245
    %v1248 = vmul.f32 %v1243, %v1246
    %v1249 = vrot.slane %v1113, 2
    %v1251 = vmul.f32 %v1232, %v1249
    %v1252 = vadd.f32 %v1248, %v1251
    %1254 = vrot.lane.b32.xlu0 %v1188, 96
    %v1255 = vpop.permute.xlu0 %1254
    %s1257 = scalar_lea.vmem %s8, 10
    %1258 = vst.msk [vmem:[%s1257 - $0x2] sm:$0xc] %vm702, %v1255
    %1260 = vrot.lane.b32.xlu0 %v1252, 96
    %v1261 = vpop.permute.xlu0 %1260
    %s1263 = scalar_lea.vmem %s112, 4
    %1264 = vst.msk [vmem:[%s1263 - $0x4] sm:$0x30] %vm709, %v1261
    %v1265 = vpack.c.bf16 %v1188, %v1188
    %v1267 = vrot.slane %v1265, 1
    %1268 = vrot.lane.b32.xlu0 %v1267, 96
    %v1269 = vpop.permute.xlu0 %1268
    %v1271 = vsel %vm203, %v1269, 0
    %1273 = vmatpush.bf16.msra.mxu0 0
    %1274 = vmatpush.bf16.msra.mxu0 0
    %1275 = vmatpush.bf16.msra.mxu0 0
    %1276 = vmatpush.bf16.msra.mxu0 0
    %1277 = vmatpush.bf16.msra.mxu0 0
    %1278 = vmatpush.bf16.msra.mxu0 0
    %1279 = vmatpush.bf16.msra.mxu0 %v417
    %1280 = vmatpush.bf16.msra.mxu0 %v416
    %1281 = vmatmul.bf16.gmra.mxu0 %v1271
    %v1282 = vpop.f32.mrf.mxu0
    %v1283 = vadd.f32 %v406, %v1282
    %v1284 = vpop.f32.mrf.mxu0
    %1285 = vdwg.mxu0
    %v1287 = vrot.slane %v1283, 4
    %v1289 = vadd.f32 %v276, %v1287
    %v1290 = vxor.u32 %v1289, 2147483648
    %v1291 = vmul.f32 %v1290, 1.442695
    %v1292 = vpow.pop %v1291
    %v1293 = vadd.f32 %v1292, 1.0
    %v1294 = vrcp.pop %v1293
    %v1295 = vmul.f32 %v1293, %v1294
    %v1296 = vsub.f32 1.0, %v1295
    %v1297 = vmul.f32 %v1294, %v1296
    %v1298 = vadd.f32 %v1294, %v1297
    %vm1299 = vweird.f32 %v1293
    %vm1300 = vweird.f32 %v1294
    %vm1301 = vmor %vm1299, %vm1300
    %v1302 = vsel %vm1301, %v1294, %v1298
    %v1303 = vand.u32 2147483647, %v1293
    %vm1304 = vcmp.eq.f32.partialorder %v1303, 8.507059e+37
    %v1305 = vand.u32 %v1293, 2147483648
    %v1306 = vor.u32 1.1754944e-38, %v1305
    %v1307 = vsel %vm1304, %v1306, %v1302
    %v1308 = vmul.f32 1.0, %v1307
    %1309 = vrot.lane.b32.xlu0 %v1287, 64
    %v1310 = vpop.permute.xlu0 %1309
    %v1312 = vmul.f32 %v1308, %v1310
    %1314 = vrot.lane.b32.xlu0 %v1312, 64
    %v1315 = vpop.permute.xlu0 %1314
    %v1317 = vadd.f32 %v276, %v1315
    %v1318 = vtanh.pop %v1317
    %v1319 = vsub.f32 1.0, %v1308
    %1321 = vrot.lane.b32.xlu0 %v1318, 96
    %v1322 = vpop.permute.xlu0 %1321
    %v1324 = vmul.f32 %v1319, %v1322
    %v1325 = vrot.slane %v1188, 6
    %v1327 = vmul.f32 %v1308, %v1325
    %v1328 = vadd.f32 %v1324, %v1327
    %v1329 = vpack.c.bf16 %v1252, %v1252
    %v1331 = vrot.slane %v1329, 2
    %1332 = vrot.lane.b32.xlu0 %v1331, 96
    %v1333 = vpop.permute.xlu0 %1332
    %v1335 = vsel %vm203, %v1333, 0
    %1337 = vmatpush.bf16.msra.mxu0 0
    %1338 = vmatpush.bf16.msra.mxu0 0
    %1339 = vmatpush.bf16.msra.mxu0 0
    %1340 = vmatpush.bf16.msra.mxu0 0
    %1341 = vmatpush.bf16.msra.mxu0 0
    %1342 = vmatpush.bf16.msra.mxu0 0
    %1343 = vmatpush.bf16.msra.mxu0 %v492
    %1344 = vmatpush.bf16.msra.mxu0 %v491
    %1345 = vmatmul.bf16.gmra.mxu0 %v1335
    %v1346 = vpop.f32.mrf.mxu0
    %v1347 = vadd.f32 %v481, %v1346
    %v1348 = vpop.f32.mrf.mxu0
    %1349 = vdwg.mxu0
    %v1351 = vrot.slane %v1347, 6
    %v1353 = vadd.f32 %v400, %v1351
    %v1354 = vxor.u32 %v1353, 2147483648
    %v1355 = vmul.f32 %v1354, 1.442695
    %v1356 = vpow.pop %v1355
    %v1357 = vadd.f32 %v1356, 1.0
    %v1358 = vrcp.pop %v1357
    %v1359 = vmul.f32 %v1357, %v1358
    %v1360 = vsub.f32 1.0, %v1359
    %v1361 = vmul.f32 %v1358, %v1360
    %v1362 = vadd.f32 %v1358, %v1361
    %vm1363 = vweird.f32 %v1357
    %vm1364 = vweird.f32 %v1358
    %vm1365 = vmor %vm1363, %vm1364
    %v1366 = vsel %vm1365, %v1358, %v1362
    %v1367 = vand.u32 2147483647, %v1357
    %vm1368 = vcmp.eq.f32.partialorder %v1367, 8.507059e+37
    %v1369 = vand.u32 %v1357, 2147483648
    %v1370 = vor.u32 1.1754944e-38, %v1369
    %v1371 = vsel %vm1368, %v1370, %v1366
    %v1372 = vmul.f32 1.0, %v1371
    %1373 = vrot.lane.b32.xlu0 %v1351, 64
    %v1374 = vpop.permute.xlu0 %1373
    %v1376 = vmul.f32 %v1372, %v1374
    %1378 = vrot.lane.b32.xlu0 %v1376, 64
    %v1379 = vpop.permute.xlu0 %1378
    %v1381 = vadd.f32 %v400, %v1379
    %v1382 = vtanh.pop %v1381
    %v1383 = vsub.f32 1.0, %v1372
    %1385 = vrot.lane.b32.xlu0 %v1382, 96
    %v1386 = vpop.permute.xlu0 %1385
    %v1388 = vmul.f32 %v1383, %v1386
    %v1389 = vrot.slane %v1252, 2
    %v1391 = vmul.f32 %v1372, %v1389
    %v1392 = vadd.f32 %v1388, %v1391
    %1394 = vrot.lane.b32.xlu0 %v1328, 96
    %v1395 = vpop.permute.xlu0 %1394
    %s1397 = scalar_lea.vmem %s8, 12
    %1398 = vst.msk [vmem:[%s1397 - $0x4] sm:$0x30] %vm709, %v1395
    %1400 = vrot.lane.b32.xlu0 %v1392, 96
    %v1401 = vpop.permute.xlu0 %1400
    %s1403 = scalar_lea.vmem %s112, 2
    %1404 = vst.msk [vmem:[%s1403 - $0x2] sm:$0xc] %vm702, %v1401
    %v1405 = vpack.c.bf16 %v1328, %v1328
    %v1407 = vrot.slane %v1405, 2
    %1408 = vrot.lane.b32.xlu0 %v1407, 96
    %v1409 = vpop.permute.xlu0 %1408
    %v1411 = vsel %vm203, %v1409, 0
    %1413 = vmatpush.bf16.msra.mxu0 0
    %1414 = vmatpush.bf16.msra.mxu0 0
    %1415 = vmatpush.bf16.msra.mxu0 0
    %1416 = vmatpush.bf16.msra.mxu0 0
    %1417 = vmatpush.bf16.msra.mxu0 0
    %1418 = vmatpush.bf16.msra.mxu0 0
    %1419 = vmatpush.bf16.msra.mxu0 %v417
    %1420 = vmatpush.bf16.msra.mxu0 %v416
    %1421 = vmatmul.bf16.gmra.mxu0 %v1411
    %v1422 = vpop.f32.mrf.mxu0
    %v1423 = vadd.f32 %v406, %v1422
    %v1424 = vpop.f32.mrf.mxu0
    %1425 = vdwg.mxu0
    %v1427 = vrot.slane %v1423, 2
    %v1429 = vadd.f32 %v276, %v1427
    %v1430 = vxor.u32 %v1429, 2147483648
    %v1431 = vmul.f32 %v1430, 1.442695
    %v1432 = vpow.pop %v1431
    %v1433 = vadd.f32 %v1432, 1.0
    %v1434 = vrcp.pop %v1433
    %v1435 = vmul.f32 %v1433, %v1434
    %v1436 = vsub.f32 1.0, %v1435
    %v1437 = vmul.f32 %v1434, %v1436
    %v1438 = vadd.f32 %v1434, %v1437
    %vm1439 = vweird.f32 %v1433
    %vm1440 = vweird.f32 %v1434
    %vm1441 = vmor %vm1439, %vm1440
    %v1442 = vsel %vm1441, %v1434, %v1438
    %v1443 = vand.u32 2147483647, %v1433
    %vm1444 = vcmp.eq.f32.partialorder %v1443, 8.507059e+37
    %v1445 = vand.u32 %v1433, 2147483648
    %v1446 = vor.u32 1.1754944e-38, %v1445
    %v1447 = vsel %vm1444, %v1446, %v1442
    %v1448 = vmul.f32 1.0, %v1447
    %1449 = vrot.lane.b32.xlu0 %v1427, 64
    %v1450 = vpop.permute.xlu0 %1449
    %v1452 = vmul.f32 %v1448, %v1450
    %1454 = vrot.lane.b32.xlu0 %v1452, 64
    %v1455 = vpop.permute.xlu0 %1454
    %v1457 = vadd.f32 %v276, %v1455
    %v1458 = vtanh.pop %v1457
    %v1459 = vsub.f32 1.0, %v1448
    %1461 = vrot.lane.b32.xlu0 %v1458, 96
    %v1462 = vpop.permute.xlu0 %1461
    %v1464 = vmul.f32 %v1459, %v1462
    %v1465 = vrot.slane %v1328, 6
    %v1467 = vmul.f32 %v1448, %v1465
    %v1468 = vadd.f32 %v1464, %v1467
    %v1469 = vpack.c.bf16 %v1392, %v1392
    %v1471 = vrot.slane %v1469, 1
    %1472 = vrot.lane.b32.xlu0 %v1471, 96
    %v1473 = vpop.permute.xlu0 %1472
    %v1475 = vsel %vm203, %v1473, 0
    %1477 = vmatpush.bf16.msra.mxu0 0
    %1478 = vmatpush.bf16.msra.mxu0 0
    %1479 = vmatpush.bf16.msra.mxu0 0
    %1480 = vmatpush.bf16.msra.mxu0 0
    %1481 = vmatpush.bf16.msra.mxu0 0
    %1482 = vmatpush.bf16.msra.mxu0 0
    %1483 = vmatpush.bf16.msra.mxu0 %v492
    %1484 = vmatpush.bf16.msra.mxu0 %v491
    %1485 = vmatmul.bf16.gmra.mxu0 %v1475
    %v1486 = vpop.f32.mrf.mxu0
    %v1487 = vadd.f32 %v481, %v1486
    %v1488 = vpop.f32.mrf.mxu0
    %1489 = vdwg.mxu0
    %v1490 = vadd.f32 %v400, %v1487
    %v1491 = vxor.u32 %v1490, 2147483648
    %v1492 = vmul.f32 %v1491, 1.442695
    %v1493 = vpow.pop %v1492
    %v1494 = vadd.f32 %v1493, 1.0
    %v1495 = vrcp.pop %v1494
    %v1496 = vmul.f32 %v1494, %v1495
    %v1497 = vsub.f32 1.0, %v1496
    %v1498 = vmul.f32 %v1495, %v1497
    %v1499 = vadd.f32 %v1495, %v1498
    %vm1500 = vweird.f32 %v1494
    %vm1501 = vweird.f32 %v1495
    %vm1502 = vmor %vm1500, %vm1501
    %v1503 = vsel %vm1502, %v1495, %v1499
    %v1504 = vand.u32 2147483647, %v1494
    %vm1505 = vcmp.eq.f32.partialorder %v1504, 8.507059e+37
    %v1506 = vand.u32 %v1494, 2147483648
    %v1507 = vor.u32 1.1754944e-38, %v1506
    %v1508 = vsel %vm1505, %v1507, %v1503
    %v1509 = vmul.f32 1.0, %v1508
    %1511 = vrot.lane.b32.xlu0 %v1487, 64
    %v1512 = vpop.permute.xlu0 %1511
    %v1514 = vmul.f32 %v1509, %v1512
    %1516 = vrot.lane.b32.xlu0 %v1514, 64
    %v1517 = vpop.permute.xlu0 %1516
    %v1519 = vadd.f32 %v400, %v1517
    %v1520 = vtanh.pop %v1519
    %v1521 = vsub.f32 1.0, %v1509
    %1523 = vrot.lane.b32.xlu0 %v1520, 96
    %v1524 = vpop.permute.xlu0 %1523
    %v1526 = vmul.f32 %v1521, %v1524
    %v1527 = vrot.slane %v1392, 2
    %v1529 = vmul.f32 %v1509, %v1527
    %v1530 = vadd.f32 %v1526, %v1529
    %1532 = vrot.lane.b32.xlu0 %v1468, 96
    %v1533 = vpop.permute.xlu0 %1532
    %s1535 = scalar_lea.vmem %s8, 14
    %1536 = vst.msk [vmem:[%s1535 - $0x6] sm:$0xc0] %vm568, %v1533
    %1538 = vrot.lane.b32.xlu0 %v1530, 96
    %v1539 = vpop.permute.xlu0 %1538
    %1541 = vst.msk [vmem:[%s112] sm:$0x3] %vm561, %v1539
    %1542 = vst.msk [vmem:[#allocation2 - $0x6] sm:$0xc0] %vm568, %v1533
    %1543 = vst.msk [vmem:[#allocation3] sm:$0x3] %vm561, %v1539
    %s1544 = ssub.s32 0, 0
    %s1545 = smul.u32 8, %s1544
    %p1546 = scmp.lt.s32.totalorder %s1545, 7
    %s1547 = scalar_select %p1546, %s1545, 7
    %s1548 = smul.addr %s1547, 2
    %s1549 = scalar_lea.vmem %s9, %s1548
    // Predicated region
    $region46: #{_lambda_.5} parent=1 // pred_check
      _
    $region47: #{_lambda_.5} parent=1 // pred_check_branch
      %1551 = sbr.rel (0) target = $region49
    $region48: #{_lambda_.5} parent=1 // pred_region
      _
    $region49: #{_lambda_.5} parent=1 // pred_fallthru
      _
    // Predicated region
    $region50: #{_lambda_.5} parent=1 // pred_check
      _
    $region51: #{_lambda_.5} parent=1 // pred_check_branch
      %1553 = sbr.rel (0) target = $region53
    $region52: #{_lambda_.5} parent=1 // pred_region
      %s1554 = ssub.s32 0, 0
      %s1555 = smul.u32 8, %s1554
    $region53: #{_lambda_.5} parent=1 // pred_fallthru
      _
    // Predicated region
    $region54: #{_lambda_.5} parent=1 // pred_check
      _
    $region55: #{_lambda_.5} parent=1 // pred_check_branch
      %1557 = sbr.rel (0) target = $region57
    $region56: #{_lambda_.5} parent=1 // pred_region
      _
    $region57: #{_lambda_.5} parent=1 // pred_fallthru
      _
    // Predicated region
    $region58: #{_lambda_.5} parent=1 // pred_check
      _
    $region59: #{_lambda_.5} parent=1 // pred_check_branch
      %1559 = sbr.rel (0) target = $region61
    $region60: #{_lambda_.5} parent=1 // pred_region
      %s1560 = ssub.s32 0, 0
      %s1561 = smul.u32 8, %s1560
      %p1562 = scmp.lt.s32.totalorder %s1561, 7
      %s1563 = scalar_select %p1562, %s1561, 7
      %s1564 = smul.addr %s1563, 2
      %s1565 = scalar_lea.vmem %s9, %s1564
    $region61: #{_lambda_.5} parent=1 // pred_fallthru
      _
    %1566 = vsyncpa [#allocation5], 1
    %1567 = vsyncpa [#allocation7], 1

</llo_original>
